<compile_context>
chip_gen: v7x
topology: tpu7x:2x2x1
jax: 0.10.0
libtpu: 0.0.40
codegen_flags: <defaults>
</compile_context>

<pallas_src>
import jax
import jax.numpy as jnp
from jax.experimental import pallas as pl
from jax.experimental.pallas import tpu as pltpu

# ---- model hyper-parameters (small, consistent with the module) -------------
D_MODEL = 32
D_INNER = 64
N_HEAD = 4
D_K = 8
D_V = 8
HDK = N_HEAD * D_K
HDV = N_HEAD * D_V
LN_EPS = 1e-5          # PyTorch nn.LayerNorm default
NEG_MASK = -1e30       # large finite negative (NaN-safe vs. -inf masked_fill)
INV_TEMP = 1.0 / (float(D_K) ** 0.5)


def _layer_norm(y, gamma, beta):
    mean = jnp.mean(y, axis=-1, keepdims=True)
    var = jnp.mean(jnp.square(y - mean), axis=-1, keepdims=True)
    return (y - mean) * jax.lax.rsqrt(var + LN_EPS) * gamma + beta


def _split_heads(x, d):
    # (L, N_HEAD * d) -> (N_HEAD, L, d); matches PyTorch .view(b, l, h, d)
    return jnp.stack([x[:, h * d:(h + 1) * d] for h in range(N_HEAD)], axis=0)


def _mha_core(q, k, v, mask, wo, bo, gamma, beta, residual):
    """Batched-head attention core + output proj + residual + layernorm.

    q:    (LQ, H*Dk)  (already scaled by 1/sqrt(d_k))
    k:    (LK, H*Dk)
    v:    (LK, H*Dv)
    mask: (LQ, LK)    1.0 means "masked out"
    returns: (out (LQ, D_MODEL), probs (N_HEAD, LQ, LK))
    """
    qh = _split_heads(q, D_K)        # (H, LQ, Dk)
    kh = _split_heads(k, D_K)        # (H, LK, Dk)
    vh = _split_heads(v, D_V)        # (H, LK, Dv)

    # all heads in one batched contraction instead of H tiny per-head dots
    s = jnp.einsum('hqd,hkd->hqk', qh, kh,
                   preferred_element_type=jnp.float32)                # (H, LQ, LK)
    s = s + mask[None, :, :] * NEG_MASK                               # additive mask

    m = jnp.max(s, axis=-1, keepdims=True)
    e = jnp.exp(s - m)
    denom = jnp.sum(e, axis=-1, keepdims=True)
    p = e * pl.reciprocal(denom, approx=True)                         # EUP reciprocal

    ctx = jnp.einsum('hqk,hkd->hqd', p, vh,
                     preferred_element_type=jnp.float32)              # (H, LQ, Dv)
    o = jnp.concatenate([ctx[h] for h in range(N_HEAD)], axis=-1)     # (LQ, H*Dv)
    o = jnp.dot(o, wo, preferred_element_type=jnp.float32) + bo
    out = _layer_norm(o + residual, gamma, beta)
    return out, p


# ---------------------------------------------------------------------------
# Fused decoder-layer kernel: one grid step == one batch element, all three
# stages executed back-to-back with the activation kept in VMEM/vregs.
# ---------------------------------------------------------------------------
def decoder_layer_kernel(
        dec_ref, enc_ref, slf_mask_ref, enc_mask_ref, npm_ref,
        # self-attention params (fused QKV)
        s_wqkv, s_bqkv, s_wo, s_bo, s_g, s_bt,
        # encoder-decoder attention params (fused KV)
        e_wq, e_bq, e_wkv, e_bkv, e_wo, e_bo, e_g, e_bt,
        # position-wise FFN params
        f_w1, f_b1, f_w2, f_b2, f_g, f_bt,
        # outputs
        out_ref, slf_attn_ref, enc_attn_ref):
    npm = npm_ref[0]                        # (LQ, 1)
    x = dec_ref[0]                          # (LQ, D_MODEL)
    enc = enc_ref[0]                        # (LK, D_MODEL)

    # ----- stage 1: masked self-attention (+ add&norm, non-pad mask) -----
    qkv = jnp.dot(x, s_wqkv[...], preferred_element_type=jnp.float32) + s_bqkv[...]
    q = qkv[:, :HDK] * INV_TEMP
    k = qkv[:, HDK:2 * HDK]
    v = qkv[:, 2 * HDK:]
    y, p_slf = _mha_core(q, k, v, slf_mask_ref[0],
                         s_wo[...], s_bo[...], s_g[...], s_bt[...], residual=x)
    slf_attn_ref[:, 0, :, :] = p_slf        # head-major layout, single store
    x = y * npm

    # ----- stage 2: encoder-decoder attention -----
    q = (jnp.dot(x, e_wq[...], preferred_element_type=jnp.float32)
         + e_bq[...]) * INV_TEMP
    kv = jnp.dot(enc, e_wkv[...], preferred_element_type=jnp.float32) + e_bkv[...]
    k = kv[:, :HDK]
    v = kv[:, HDK:]
    y, p_enc = _mha_core(q, k, v, enc_mask_ref[0],
                         e_wo[...], e_bo[...], e_g[...], e_bt[...], residual=x)
    enc_attn_ref[:, 0, :, :] = p_enc
    x = y * npm

    # ----- stage 3: position-wise FFN (Conv1d k=1 == matmul) -----
    h = jnp.dot(x, f_w1[...], preferred_element_type=jnp.float32) + f_b1[...]
    h = jnp.maximum(h, 0.0)                 # ReLU
    o = jnp.dot(h, f_w2[...], preferred_element_type=jnp.float32) + f_b2[...]
    y = _layer_norm(o + x, f_g[...], f_bt[...])
    out_ref[0] = y * npm


# ---------------------------------------------------------------------------
# Wrapper
# ---------------------------------------------------------------------------
@jax.jit
def decoder_layer(dec_input, enc_output, non_pad_mask,
                  slf_attn_mask, dec_enc_attn_mask, weights):
    slf_p, enc_p, ffn_p = weights
    (s_wq, s_bq, s_wk, s_bk, s_wv, s_bv, s_wo, s_bo, s_g, s_bt) = slf_p
    (e_wq, e_bq, e_wk, e_bk, e_wv, e_bv, e_wo, e_bo, e_g, e_bt) = enc_p

    # One-time weight layout prep (tiny; in a real model these live pre-fused):
    # fuse self-attn QKV and enc-attn KV projections into single matmul slabs.
    s_wqkv = jnp.concatenate([s_wq, s_wk, s_wv], axis=1)   # (D_MODEL, 3*H*Dk)
    s_bqkv = jnp.concatenate([s_bq, s_bk, s_bv], axis=1)   # (1, 3*H*Dk)
    e_wkv = jnp.concatenate([e_wk, e_wv], axis=1)          # (D_MODEL, 2*H*Dk)
    e_bkv = jnp.concatenate([e_bk, e_bv], axis=1)          # (1, 2*H*Dk)

    params = (s_wqkv, s_bqkv, s_wo, s_bo, s_g, s_bt,
              e_wq, e_bq, e_wkv, e_bkv, e_wo, e_bo, e_g, e_bt,
              *ffn_p)

    B, LQ, _ = dec_input.shape
    LK = enc_output.shape[1]

    def full_spec(shape):
        rank = len(shape)
        return pl.BlockSpec(shape, lambda b, _r=rank: (0,) * _r)

    in_specs = [
        pl.BlockSpec((1, LQ, D_MODEL), lambda b: (b, 0, 0)),   # dec_input
        pl.BlockSpec((1, LK, D_MODEL), lambda b: (b, 0, 0)),   # enc_output
        pl.BlockSpec((1, LQ, LQ), lambda b: (b, 0, 0)),        # slf_attn_mask
        pl.BlockSpec((1, LQ, LK), lambda b: (b, 0, 0)),        # dec_enc_attn_mask
        pl.BlockSpec((1, LQ, 1), lambda b: (b, 0, 0)),         # non_pad_mask
    ] + [full_spec(p.shape) for p in params]

    out_specs = (
        pl.BlockSpec((1, LQ, D_MODEL), lambda b: (b, 0, 0)),
        pl.BlockSpec((N_HEAD, 1, LQ, LQ), lambda b: (0, b, 0, 0)),   # head-major
        pl.BlockSpec((N_HEAD, 1, LQ, LK), lambda b: (0, b, 0, 0)),   # head-major
    )
    out_shape = (
        jax.ShapeDtypeStruct((B, LQ, D_MODEL), jnp.float32),
        jax.ShapeDtypeStruct((N_HEAD, B, LQ, LQ), jnp.float32),
        jax.ShapeDtypeStruct((N_HEAD, B, LQ, LK), jnp.float32),
    )

    dec_out, slf_attn, enc_attn = pl.pallas_call(
        decoder_layer_kernel,
        out_shape=out_shape,
        grid=(B,),
        in_specs=in_specs,
        out_specs=out_specs,
        compiler_params=pltpu.CompilerParams(
            dimension_semantics=("parallel",)),   # shard batch across TCs on v7x
    )(dec_input, enc_output, slf_attn_mask, dec_enc_attn_mask, non_pad_mask,
      *params)

    # Already head-major: reshape to PyTorch's (n_head*B, LQ, LK) is a free view.
    slf_attn = slf_attn.reshape(N_HEAD * B, LQ, LQ)
    enc_attn = enc_attn.reshape(N_HEAD * B, LQ, LK)
    return dec_out, slf_attn, enc_attn


# ---------------------------------------------------------------------------
# Deterministic parameter construction (PyTorch-style separate linears)
# ---------------------------------------------------------------------------
def make_mha_params(key):
    ks = jax.random.split(key, 4)
    wq = jax.random.normal(ks[0], (D_MODEL, N_HEAD * D_K), jnp.float32) * 0.05
    wk = jax.random.normal(ks[1], (D_MODEL, N_HEAD * D_K), jnp.float32) * 0.05
    wv = jax.random.normal(ks[2], (D_MODEL, N_HEAD * D_V), jnp.float32) * 0.05
    wfc = jax.random.normal(ks[3], (N_HEAD * D_V, D_MODEL), jnp.float32) * 0.05
    bq = jnp.zeros((1, N_HEAD * D_K), jnp.float32)
    bk = jnp.zeros((1, N_HEAD * D_K), jnp.float32)
    bv = jnp.zeros((1, N_HEAD * D_V), jnp.float32)
    bfc = jnp.zeros((1, D_MODEL), jnp.float32)
    gamma = jnp.ones((1, D_MODEL), jnp.float32)
    beta = jnp.zeros((1, D_MODEL), jnp.float32)
    return (wq, bq, wk, bk, wv, bv, wfc, bfc, gamma, beta)


def make_ffn_params(key):
    k1, k2 = jax.random.split(key, 2)
    w1 = jax.random.normal(k1, (D_MODEL, D_INNER), jnp.float32) * 0.05
    w2 = jax.random.normal(k2, (D_INNER, D_MODEL), jnp.float32) * 0.05
    b1 = jnp.zeros((1, D_INNER), jnp.float32)
    b2 = jnp.zeros((1, D_MODEL), jnp.float32)
    gamma = jnp.ones((1, D_MODEL), jnp.float32)
    beta = jnp.zeros((1, D_MODEL), jnp.float32)
    return (w1, b1, w2, b2, gamma, beta)


if __name__ == "__main__":
    B, LEN_DEC, LEN_ENC = 2, 8, 16

    root = jax.random.PRNGKey(0)
    k_in, k_enc, k_slf, k_xattn, k_ffn = jax.random.split(root, 5)

    dec_input = jax.random.normal(k_in, (B, LEN_DEC, D_MODEL), jnp.float32)
    enc_output = jax.random.normal(k_enc, (B, LEN_ENC, D_MODEL), jnp.float32)

    # non_pad_mask: (B, LEN_DEC, 1); mark last decoder position as padding.
    non_pad_mask = jnp.ones((B, LEN_DEC, 1), jnp.float32)
    non_pad_mask = non_pad_mask.at[:, -1, :].set(0.0)

    # slf_attn_mask: causal mask (1.0 == masked), (B, LEN_DEC, LEN_DEC)
    causal = (jnp.arange(LEN_DEC)[None, :] > jnp.arange(LEN_DEC)[:, None])
    slf_attn_mask = jnp.broadcast_to(
        causal.astype(jnp.float32), (B, LEN_DEC, LEN_DEC))

    # dec_enc_attn_mask: mask encoder padding positions >= 12
    enc_pad = (jnp.arange(LEN_ENC) >= 12).astype(jnp.float32)
    dec_enc_attn_mask = jnp.broadcast_to(
        enc_pad[None, None, :], (B, LEN_DEC, LEN_ENC))

    weights = (make_mha_params(k_slf), make_mha_params(k_xattn),
               make_ffn_params(k_ffn))

    dec_out, slf_attn, enc_attn = decoder_layer(
        dec_input, enc_output, non_pad_mask,
        slf_attn_mask, dec_enc_attn_mask, weights)
    jax.block_until_ready((dec_out, slf_attn, enc_attn))

    assert dec_out.shape == (B, LEN_DEC, D_MODEL)
    assert slf_attn.shape == (N_HEAD * B, LEN_DEC, LEN_DEC)
    assert enc_attn.shape == (N_HEAD * B, LEN_DEC, LEN_ENC)
    assert bool(jnp.all(jnp.isfinite(dec_out)))
    assert bool(jnp.all(jnp.isfinite(slf_attn)))
    assert bool(jnp.all(jnp.isfinite(enc_attn)))
    print("KERNEL_OK")
</pallas_src>

<mosaic_0001>
module attributes {stable_mosaic.version = 11 : i64} {
  func.func @decoder_layer_kernel(%arg0: i32, %arg1: memref<1x8x32xf32, #tpu.memory_space<vmem>>, %arg2: memref<1x16x32xf32, #tpu.memory_space<vmem>>, %arg3: memref<1x8x8xf32, #tpu.memory_space<vmem>>, %arg4: memref<1x8x16xf32, #tpu.memory_space<vmem>>, %arg5: memref<1x8x1xf32, #tpu.memory_space<vmem>>, %arg6: memref<32x96xf32, #tpu.memory_space<vmem>>, %arg7: memref<1x96xf32, #tpu.memory_space<vmem>>, %arg8: memref<32x32xf32, #tpu.memory_space<vmem>>, %arg9: memref<1x32xf32, #tpu.memory_space<vmem>>, %arg10: memref<1x32xf32, #tpu.memory_space<vmem>>, %arg11: memref<1x32xf32, #tpu.memory_space<vmem>>, %arg12: memref<32x32xf32, #tpu.memory_space<vmem>>, %arg13: memref<1x32xf32, #tpu.memory_space<vmem>>, %arg14: memref<32x64xf32, #tpu.memory_space<vmem>>, %arg15: memref<1x64xf32, #tpu.memory_space<vmem>>, %arg16: memref<32x32xf32, #tpu.memory_space<vmem>>, %arg17: memref<1x32xf32, #tpu.memory_space<vmem>>, %arg18: memref<1x32xf32, #tpu.memory_space<vmem>>, %arg19: memref<1x32xf32, #tpu.memory_space<vmem>>, %arg20: memref<32x64xf32, #tpu.memory_space<vmem>>, %arg21: memref<1x64xf32, #tpu.memory_space<vmem>>, %arg22: memref<64x32xf32, #tpu.memory_space<vmem>>, %arg23: memref<1x32xf32, #tpu.memory_space<vmem>>, %arg24: memref<1x32xf32, #tpu.memory_space<vmem>>, %arg25: memref<1x32xf32, #tpu.memory_space<vmem>>, %arg26: memref<1x8x32xf32, #tpu.memory_space<vmem>>, %arg27: memref<4x1x8x8xf32, #tpu.memory_space<vmem>>, %arg28: memref<4x1x8x16xf32, #tpu.memory_space<vmem>>) attributes {dimension_semantics = [#tpu.dimension_semantics<parallel>], iteration_bounds = array<i64: 2>, scalar_prefetch = 0 : i64, scratch_operands = 0 : i64, tpu.core_type = #tpu.core_type<tc>, window_params = [{transform_indices = @transform_0, window_bounds = array<i64: 1, 8, 32>}, {transform_indices = @transform_1, window_bounds = array<i64: 1, 16, 32>}, {transform_indices = @transform_2, window_bounds = array<i64: 1, 8, 8>}, {transform_indices = @transform_3, window_bounds = array<i64: 1, 8, 16>}, {transform_indices = @transform_4, window_bounds = array<i64: 1, 8, 1>}, {pipeline_mode = #tpu.pipeline_mode<synchronous>, transform_indices = @transform_5, window_bounds = array<i64: 32, 96>}, {pipeline_mode = #tpu.pipeline_mode<synchronous>, transform_indices = @transform_6, window_bounds = array<i64: 1, 96>}, {pipeline_mode = #tpu.pipeline_mode<synchronous>, transform_indices = @transform_7, window_bounds = array<i64: 32, 32>}, {pipeline_mode = #tpu.pipeline_mode<synchronous>, transform_indices = @transform_8, window_bounds = array<i64: 1, 32>}, {pipeline_mode = #tpu.pipeline_mode<synchronous>, transform_indices = @transform_9, window_bounds = array<i64: 1, 32>}, {pipeline_mode = #tpu.pipeline_mode<synchronous>, transform_indices = @transform_10, window_bounds = array<i64: 1, 32>}, {pipeline_mode = #tpu.pipeline_mode<synchronous>, transform_indices = @transform_11, window_bounds = array<i64: 32, 32>}, {pipeline_mode = #tpu.pipeline_mode<synchronous>, transform_indices = @transform_12, window_bounds = array<i64: 1, 32>}, {pipeline_mode = #tpu.pipeline_mode<synchronous>, transform_indices = @transform_13, window_bounds = array<i64: 32, 64>}, {pipeline_mode = #tpu.pipeline_mode<synchronous>, transform_indices = @transform_14, window_bounds = array<i64: 1, 64>}, {pipeline_mode = #tpu.pipeline_mode<synchronous>, transform_indices = @transform_15, window_bounds = array<i64: 32, 32>}, {pipeline_mode = #tpu.pipeline_mode<synchronous>, transform_indices = @transform_16, window_bounds = array<i64: 1, 32>}, {pipeline_mode = #tpu.pipeline_mode<synchronous>, transform_indices = @transform_17, window_bounds = array<i64: 1, 32>}, {pipeline_mode = #tpu.pipeline_mode<synchronous>, transform_indices = @transform_18, window_bounds = array<i64: 1, 32>}, {pipeline_mode = #tpu.pipeline_mode<synchronous>, transform_indices = @transform_19, window_bounds = array<i64: 32, 64>}, {pipeline_mode = #tpu.pipeline_mode<synchronous>, transform_indices = @transform_20, window_bounds = array<i64: 1, 64>}, {pipeline_mode = #tpu.pipeline_mode<synchronous>, transform_indices = @transform_21, window_bounds = array<i64: 64, 32>}, {pipeline_mode = #tpu.pipeline_mode<synchronous>, transform_indices = @transform_22, window_bounds = array<i64: 1, 32>}, {pipeline_mode = #tpu.pipeline_mode<synchronous>, transform_indices = @transform_23, window_bounds = array<i64: 1, 32>}, {pipeline_mode = #tpu.pipeline_mode<synchronous>, transform_indices = @transform_24, window_bounds = array<i64: 1, 32>}, {transform_indices = @transform_25, window_bounds = array<i64: 1, 8, 32>}, {transform_indices = @transform_26, window_bounds = array<i64: 4, 1, 8, 8>}, {transform_indices = @transform_27, window_bounds = array<i64: 4, 1, 8, 16>}]} {
    %c0 = arith.constant 0 : index
    %c0_0 = arith.constant 0 : index
    %c0_1 = arith.constant 0 : index
    %0 = vector.load %arg5[%c0, %c0_0, %c0_1] : memref<1x8x1xf32, #tpu.memory_space<vmem>>, vector<1x8x1xf32>
    %1 = vector.shape_cast %0 : vector<1x8x1xf32> to vector<8x1xf32>
    %c0_2 = arith.constant 0 : index
    %c0_3 = arith.constant 0 : index
    %c0_4 = arith.constant 0 : index
    %2 = vector.load %arg1[%c0_2, %c0_3, %c0_4] : memref<1x8x32xf32, #tpu.memory_space<vmem>>, vector<1x8x32xf32>
    %3 = vector.shape_cast %2 : vector<1x8x32xf32> to vector<8x32xf32>
    %c0_5 = arith.constant 0 : index
    %c0_6 = arith.constant 0 : index
    %c0_7 = arith.constant 0 : index
    %4 = vector.load %arg2[%c0_5, %c0_6, %c0_7] : memref<1x16x32xf32, #tpu.memory_space<vmem>>, vector<1x16x32xf32>
    %5 = vector.shape_cast %4 : vector<1x16x32xf32> to vector<16x32xf32>
    %c0_8 = arith.constant 0 : index
    %c0_9 = arith.constant 0 : index
    %6 = vector.load %arg6[%c0_8, %c0_9] : memref<32x96xf32, #tpu.memory_space<vmem>>, vector<32x96xf32>
    %cst = arith.constant dense<0.000000e+00> : vector<8x96xf32>
    %7 = tpu.matmul %3, %6, %cst {dimension_numbers = #tpu.dot_dimension_numbers<[1], [0], [0], [1], [0, 0, 1, 1], [], []>} : vector<8x32xf32>, vector<32x96xf32>, vector<8x96xf32> -> vector<8x96xf32>
    %c0_10 = arith.constant 0 : index
    %c0_11 = arith.constant 0 : index
    %8 = vector.load %arg7[%c0_10, %c0_11] : memref<1x96xf32, #tpu.memory_space<vmem>>, vector<1x96xf32>
    %9 = vector.broadcast %8 : vector<1x96xf32> to vector<8x96xf32>
    %10 = arith.addf %7, %9 : vector<8x96xf32>
    %11 = vector.extract_strided_slice %10 {offsets = [0, 0], sizes = [8, 32], strides = [1, 1]} : vector<8x96xf32> to vector<8x32xf32>
    %cst_12 = arith.constant 0.353553385 : f32
    %12 = vector.broadcast %cst_12 : f32 to vector<8x32xf32>
    %13 = arith.mulf %11, %12 : vector<8x32xf32>
    %14 = vector.extract_strided_slice %10 {offsets = [0, 32], sizes = [8, 32], strides = [1, 1]} : vector<8x96xf32> to vector<8x32xf32>
    %15 = vector.extract_strided_slice %10 {offsets = [0, 64], sizes = [8, 32], strides = [1, 1]} : vector<8x96xf32> to vector<8x32xf32>
    %c0_13 = arith.constant 0 : index
    %c0_14 = arith.constant 0 : index
    %c0_15 = arith.constant 0 : index
    %16 = vector.load %arg3[%c0_13, %c0_14, %c0_15] : memref<1x8x8xf32, #tpu.memory_space<vmem>>, vector<1x8x8xf32>
    %17 = vector.shape_cast %16 : vector<1x8x8xf32> to vector<8x8xf32>
    %c0_16 = arith.constant 0 : index
    %c0_17 = arith.constant 0 : index
    %18 = vector.load %arg8[%c0_16, %c0_17] : memref<32x32xf32, #tpu.memory_space<vmem>>, vector<32x32xf32>
    %c0_18 = arith.constant 0 : index
    %c0_19 = arith.constant 0 : index
    %19 = vector.load %arg9[%c0_18, %c0_19] : memref<1x32xf32, #tpu.memory_space<vmem>>, vector<1x32xf32>
    %c0_20 = arith.constant 0 : index
    %c0_21 = arith.constant 0 : index
    %20 = vector.load %arg10[%c0_20, %c0_21] : memref<1x32xf32, #tpu.memory_space<vmem>>, vector<1x32xf32>
    %c0_22 = arith.constant 0 : index
    %c0_23 = arith.constant 0 : index
    %21 = vector.load %arg11[%c0_22, %c0_23] : memref<1x32xf32, #tpu.memory_space<vmem>>, vector<1x32xf32>
    %22 = vector.extract_strided_slice %13 {offsets = [0, 0], sizes = [8, 8], strides = [1, 1]} : vector<8x32xf32> to vector<8x8xf32>
    %23 = vector.extract_strided_slice %13 {offsets = [0, 8], sizes = [8, 8], strides = [1, 1]} : vector<8x32xf32> to vector<8x8xf32>
    %24 = vector.extract_strided_slice %13 {offsets = [0, 16], sizes = [8, 8], strides = [1, 1]} : vector<8x32xf32> to vector<8x8xf32>
    %25 = vector.extract_strided_slice %13 {offsets = [0, 24], sizes = [8, 8], strides = [1, 1]} : vector<8x32xf32> to vector<8x8xf32>
    %26 = vector.shape_cast %22 : vector<8x8xf32> to vector<1x8x8xf32>
    %27 = vector.shape_cast %23 : vector<8x8xf32> to vector<1x8x8xf32>
    %28 = vector.shape_cast %24 : vector<8x8xf32> to vector<1x8x8xf32>
    %29 = vector.shape_cast %25 : vector<8x8xf32> to vector<1x8x8xf32>
    %30 = tpu.concatenate %26, %27, %28, %29 in 0 : vector<1x8x8xf32>, vector<1x8x8xf32>, vector<1x8x8xf32>, vector<1x8x8xf32> -> vector<4x8x8xf32>
    %31 = vector.extract_strided_slice %14 {offsets = [0, 0], sizes = [8, 8], strides = [1, 1]} : vector<8x32xf32> to vector<8x8xf32>
    %32 = vector.extract_strided_slice %14 {offsets = [0, 8], sizes = [8, 8], strides = [1, 1]} : vector<8x32xf32> to vector<8x8xf32>
    %33 = vector.extract_strided_slice %14 {offsets = [0, 16], sizes = [8, 8], strides = [1, 1]} : vector<8x32xf32> to vector<8x8xf32>
    %34 = vector.extract_strided_slice %14 {offsets = [0, 24], sizes = [8, 8], strides = [1, 1]} : vector<8x32xf32> to vector<8x8xf32>
    %35 = vector.shape_cast %31 : vector<8x8xf32> to vector<1x8x8xf32>
    %36 = vector.shape_cast %32 : vector<8x8xf32> to vector<1x8x8xf32>
    %37 = vector.shape_cast %33 : vector<8x8xf32> to vector<1x8x8xf32>
    %38 = vector.shape_cast %34 : vector<8x8xf32> to vector<1x8x8xf32>
    %39 = tpu.concatenate %35, %36, %37, %38 in 0 : vector<1x8x8xf32>, vector<1x8x8xf32>, vector<1x8x8xf32>, vector<1x8x8xf32> -> vector<4x8x8xf32>
    %40 = vector.extract_strided_slice %15 {offsets = [0, 0], sizes = [8, 8], strides = [1, 1]} : vector<8x32xf32> to vector<8x8xf32>
    %41 = vector.extract_strided_slice %15 {offsets = [0, 8], sizes = [8, 8], strides = [1, 1]} : vector<8x32xf32> to vector<8x8xf32>
    %42 = vector.extract_strided_slice %15 {offsets = [0, 16], sizes = [8, 8], strides = [1, 1]} : vector<8x32xf32> to vector<8x8xf32>
    %43 = vector.extract_strided_slice %15 {offsets = [0, 24], sizes = [8, 8], strides = [1, 1]} : vector<8x32xf32> to vector<8x8xf32>
    %44 = vector.shape_cast %40 : vector<8x8xf32> to vector<1x8x8xf32>
    %45 = vector.shape_cast %41 : vector<8x8xf32> to vector<1x8x8xf32>
    %46 = vector.shape_cast %42 : vector<8x8xf32> to vector<1x8x8xf32>
    %47 = vector.shape_cast %43 : vector<8x8xf32> to vector<1x8x8xf32>
    %48 = tpu.concatenate %44, %45, %46, %47 in 0 : vector<1x8x8xf32>, vector<1x8x8xf32>, vector<1x8x8xf32>, vector<1x8x8xf32> -> vector<4x8x8xf32>
    "tpu.trace_start"() <{level = 10 : i32, message = "hqd,hkd->hqk"}> : () -> ()
    %cst_24 = arith.constant dense<0.000000e+00> : vector<4x8x8xf32>
    %49 = tpu.matmul %30, %39, %cst_24 {dimension_numbers = #tpu.dot_dimension_numbers<[2], [2], [1], [1], [0, 0, 0, 1, 1, 1], [0], [0]>} : vector<4x8x8xf32>, vector<4x8x8xf32>, vector<4x8x8xf32> -> vector<4x8x8xf32>
    "tpu.trace_stop"() : () -> ()
    %50 = vector.shape_cast %17 : vector<8x8xf32> to vector<1x8x8xf32>
    %cst_25 = arith.constant -1.000000e+30 : f32
    %51 = vector.broadcast %cst_25 : f32 to vector<1x8x8xf32>
    %52 = arith.mulf %50, %51 : vector<1x8x8xf32>
    %53 = vector.broadcast %52 : vector<1x8x8xf32> to vector<4x8x8xf32>
    %54 = arith.addf %49, %53 : vector<4x8x8xf32>
    %cst_26 = arith.constant dense<0xFF800000> : vector<4x8xf32>
    %55 = vector.multi_reduction <maximumf>, %54, %cst_26 [2] : vector<4x8x8xf32> to vector<4x8xf32>
    %56 = vector.shape_cast %55 : vector<4x8xf32> to vector<4x8x1xf32>
    %57 = vector.broadcast %56 : vector<4x8x1xf32> to vector<4x8x8xf32>
    %58 = arith.subf %54, %57 : vector<4x8x8xf32>
    %59 = math.exp %58 : vector<4x8x8xf32>
    %cst_27 = arith.constant dense<0.000000e+00> : vector<4x8xf32>
    %60 = vector.multi_reduction <add>, %59, %cst_27 [2] : vector<4x8x8xf32> to vector<4x8xf32>
    %61 = vector.shape_cast %60 : vector<4x8xf32> to vector<4x8x1xf32>
    %62 = tpu.reciprocal %61 {approx = true} : vector<4x8x1xf32> -> vector<4x8x1xf32>
    %63 = vector.broadcast %62 : vector<4x8x1xf32> to vector<4x8x8xf32>
    %64 = arith.mulf %59, %63 : vector<4x8x8xf32>
    "tpu.trace_start"() <{level = 10 : i32, message = "hqk,hkd->hqd"}> : () -> ()
    %cst_28 = arith.constant dense<0.000000e+00> : vector<4x8x8xf32>
    %65 = tpu.matmul %64, %48, %cst_28 {dimension_numbers = #tpu.dot_dimension_numbers<[2], [1], [1], [2], [0, 0, 0, 1, 1, 2], [0], [0]>} : vector<4x8x8xf32>, vector<4x8x8xf32>, vector<4x8x8xf32> -> vector<4x8x8xf32>
    "tpu.trace_stop"() : () -> ()
    %66 = vector.extract_strided_slice %65 {offsets = [0, 0, 0], sizes = [1, 8, 8], strides = [1, 1, 1]} : vector<4x8x8xf32> to vector<1x8x8xf32>
    %67 = vector.shape_cast %66 : vector<1x8x8xf32> to vector<8x8xf32>
    %68 = vector.extract_strided_slice %65 {offsets = [1, 0, 0], sizes = [1, 8, 8], strides = [1, 1, 1]} : vector<4x8x8xf32> to vector<1x8x8xf32>
    %69 = vector.shape_cast %68 : vector<1x8x8xf32> to vector<8x8xf32>
    %70 = vector.extract_strided_slice %65 {offsets = [2, 0, 0], sizes = [1, 8, 8], strides = [1, 1, 1]} : vector<4x8x8xf32> to vector<1x8x8xf32>
    %71 = vector.shape_cast %70 : vector<1x8x8xf32> to vector<8x8xf32>
    %72 = vector.extract_strided_slice %65 {offsets = [3, 0, 0], sizes = [1, 8, 8], strides = [1, 1, 1]} : vector<4x8x8xf32> to vector<1x8x8xf32>
    %73 = vector.shape_cast %72 : vector<1x8x8xf32> to vector<8x8xf32>
    %74 = tpu.concatenate %67, %69, %71, %73 in 1 : vector<8x8xf32>, vector<8x8xf32>, vector<8x8xf32>, vector<8x8xf32> -> vector<8x32xf32>
    %cst_29 = arith.constant dense<0.000000e+00> : vector<8x32xf32>
    %75 = tpu.matmul %74, %18, %cst_29 {dimension_numbers = #tpu.dot_dimension_numbers<[1], [0], [0], [1], [0, 0, 1, 1], [], []>} : vector<8x32xf32>, vector<32x32xf32>, vector<8x32xf32> -> vector<8x32xf32>
    %76 = vector.broadcast %19 : vector<1x32xf32> to vector<8x32xf32>
    %77 = arith.addf %75, %76 : vector<8x32xf32>
    %78 = arith.addf %77, %3 : vector<8x32xf32>
    %cst_30 = arith.constant dense<0.000000e+00> : vector<8xf32>
    %79 = vector.multi_reduction <add>, %78, %cst_30 [1] : vector<8x32xf32> to vector<8xf32>
    %80 = vector.shape_cast %79 : vector<8xf32> to vector<8x1xf32>
    %cst_31 = arith.constant 3.200000e+01 : f32
    %81 = vector.broadcast %cst_31 : f32 to vector<8x1xf32>
    %82 = arith.divf %80, %81 : vector<8x1xf32>
    %83 = vector.broadcast %82 : vector<8x1xf32> to vector<8x32xf32>
    %84 = arith.subf %78, %83 : vector<8x32xf32>
    %85 = arith.mulf %84, %84 : vector<8x32xf32>
    %cst_32 = arith.constant dense<0.000000e+00> : vector<8xf32>
    %86 = vector.multi_reduction <add>, %85, %cst_32 [1] : vector<8x32xf32> to vector<8xf32>
    %87 = vector.shape_cast %86 : vector<8xf32> to vector<8x1xf32>
    %cst_33 = arith.constant 3.200000e+01 : f32
    %88 = vector.broadcast %cst_33 : f32 to vector<8x1xf32>
    %89 = arith.divf %87, %88 : vector<8x1xf32>
    %90 = vector.broadcast %82 : vector<8x1xf32> to vector<8x32xf32>
    %91 = arith.subf %78, %90 : vector<8x32xf32>
    %cst_34 = arith.constant 9.99999974E-6 : f32
    %92 = vector.broadcast %cst_34 : f32 to vector<8x1xf32>
    %93 = arith.addf %89, %92 : vector<8x1xf32>
    %94 = math.rsqrt %93 : vector<8x1xf32>
    %95 = vector.broadcast %94 : vector<8x1xf32> to vector<8x32xf32>
    %96 = arith.mulf %91, %95 : vector<8x32xf32>
    %97 = vector.broadcast %20 : vector<1x32xf32> to vector<8x32xf32>
    %98 = arith.mulf %96, %97 : vector<8x32xf32>
    %99 = vector.broadcast %21 : vector<1x32xf32> to vector<8x32xf32>
    %100 = arith.addf %98, %99 : vector<8x32xf32>
    %c0_35 = arith.constant 0 : index
    %c0_36 = arith.constant 0 : index
    %c0_37 = arith.constant 0 : index
    %c0_38 = arith.constant 0 : index
    %101 = vector.load %arg27[%c0_35, %c0_36, %c0_37, %c0_38] : memref<4x1x8x8xf32, #tpu.memory_space<vmem>>, vector<4x1x8x8xf32>
    %102 = vector.shape_cast %101 : vector<4x1x8x8xf32> to vector<4x8x8xf32>
    %103 = vector.shape_cast %64 : vector<4x8x8xf32> to vector<4x1x8x8xf32>
    tpu.vector_store %arg27[%c0_35, %c0_36, %c0_37, %c0_38], %103 {strides = array<i32>} : memref<4x1x8x8xf32, #tpu.memory_space<vmem>>, vector<4x1x8x8xf32>,
    %104 = vector.broadcast %1 : vector<8x1xf32> to vector<8x32xf32>
    %105 = arith.mulf %100, %104 : vector<8x32xf32>
    %c0_39 = arith.constant 0 : index
    %c0_40 = arith.constant 0 : index
    %106 = vector.load %arg12[%c0_39, %c0_40] : memref<32x32xf32, #tpu.memory_space<vmem>>, vector<32x32xf32>
    %cst_41 = arith.constant dense<0.000000e+00> : vector<8x32xf32>
    %107 = tpu.matmul %105, %106, %cst_41 {dimension_numbers = #tpu.dot_dimension_numbers<[1], [0], [0], [1], [0, 0, 1, 1], [], []>} : vector<8x32xf32>, vector<32x32xf32>, vector<8x32xf32> -> vector<8x32xf32>
    %c0_42 = arith.constant 0 : index
    %c0_43 = arith.constant 0 : index
    %108 = vector.load %arg13[%c0_42, %c0_43] : memref<1x32xf32, #tpu.memory_space<vmem>>, vector<1x32xf32>
    %109 = vector.broadcast %108 : vector<1x32xf32> to vector<8x32xf32>
    %110 = arith.addf %107, %109 : vector<8x32xf32>
    %cst_44 = arith.constant 0.353553385 : f32
    %111 = vector.broadcast %cst_44 : f32 to vector<8x32xf32>
    %112 = arith.mulf %110, %111 : vector<8x32xf32>
    %c0_45 = arith.constant 0 : index
    %c0_46 = arith.constant 0 : index
    %113 = vector.load %arg14[%c0_45, %c0_46] : memref<32x64xf32, #tpu.memory_space<vmem>>, vector<32x64xf32>
    %cst_47 = arith.constant dense<0.000000e+00> : vector<16x64xf32>
    %114 = tpu.matmul %5, %113, %cst_47 {dimension_numbers = #tpu.dot_dimension_numbers<[1], [0], [0], [1], [0, 0, 1, 1], [], []>} : vector<16x32xf32>, vector<32x64xf32>, vector<16x64xf32> -> vector<16x64xf32>
    %c0_48 = arith.constant 0 : index
    %c0_49 = arith.constant 0 : index
    %115 = vector.load %arg15[%c0_48, %c0_49] : memref<1x64xf32, #tpu.memory_space<vmem>>, vector<1x64xf32>
    %116 = vector.broadcast %115 : vector<1x64xf32> to vector<16x64xf32>
    %117 = arith.addf %114, %116 : vector<16x64xf32>
    %118 = vector.extract_strided_slice %117 {offsets = [0, 0], sizes = [16, 32], strides = [1, 1]} : vector<16x64xf32> to vector<16x32xf32>
    %119 = vector.extract_strided_slice %117 {offsets = [0, 32], sizes = [16, 32], strides = [1, 1]} : vector<16x64xf32> to vector<16x32xf32>
    %c0_50 = arith.constant 0 : index
    %c0_51 = arith.constant 0 : index
    %c0_52 = arith.constant 0 : index
    %120 = vector.load %arg4[%c0_50, %c0_51, %c0_52] : memref<1x8x16xf32, #tpu.memory_space<vmem>>, vector<1x8x16xf32>
    %121 = vector.shape_cast %120 : vector<1x8x16xf32> to vector<8x16xf32>
    %c0_53 = arith.constant 0 : index
    %c0_54 = arith.constant 0 : index
    %122 = vector.load %arg16[%c0_53, %c0_54] : memref<32x32xf32, #tpu.memory_space<vmem>>, vector<32x32xf32>
    %c0_55 = arith.constant 0 : index
    %c0_56 = arith.constant 0 : index
    %123 = vector.load %arg17[%c0_55, %c0_56] : memref<1x32xf32, #tpu.memory_space<vmem>>, vector<1x32xf32>
    %c0_57 = arith.constant 0 : index
    %c0_58 = arith.constant 0 : index
    %124 = vector.load %arg18[%c0_57, %c0_58] : memref<1x32xf32, #tpu.memory_space<vmem>>, vector<1x32xf32>
    %c0_59 = arith.constant 0 : index
    %c0_60 = arith.constant 0 : index
    %125 = vector.load %arg19[%c0_59, %c0_60] : memref<1x32xf32, #tpu.memory_space<vmem>>, vector<1x32xf32>
    %126 = vector.extract_strided_slice %112 {offsets = [0, 0], sizes = [8, 8], strides = [1, 1]} : vector<8x32xf32> to vector<8x8xf32>
    %127 = vector.extract_strided_slice %112 {offsets = [0, 8], sizes = [8, 8], strides = [1, 1]} : vector<8x32xf32> to vector<8x8xf32>
    %128 = vector.extract_strided_slice %112 {offsets = [0, 16], sizes = [8, 8], strides = [1, 1]} : vector<8x32xf32> to vector<8x8xf32>
    %129 = vector.extract_strided_slice %112 {offsets = [0, 24], sizes = [8, 8], strides = [1, 1]} : vector<8x32xf32> to vector<8x8xf32>
    %130 = vector.shape_cast %126 : vector<8x8xf32> to vector<1x8x8xf32>
    %131 = vector.shape_cast %127 : vector<8x8xf32> to vector<1x8x8xf32>
    %132 = vector.shape_cast %128 : vector<8x8xf32> to vector<1x8x8xf32>
    %133 = vector.shape_cast %129 : vector<8x8xf32> to vector<1x8x8xf32>
    %134 = tpu.concatenate %130, %131, %132, %133 in 0 : vector<1x8x8xf32>, vector<1x8x8xf32>, vector<1x8x8xf32>, vector<1x8x8xf32> -> vector<4x8x8xf32>
    %135 = vector.extract_strided_slice %118 {offsets = [0, 0], sizes = [16, 8], strides = [1, 1]} : vector<16x32xf32> to vector<16x8xf32>
    %136 = vector.extract_strided_slice %118 {offsets = [0, 8], sizes = [16, 8], strides = [1, 1]} : vector<16x32xf32> to vector<16x8xf32>
    %137 = vector.extract_strided_slice %118 {offsets = [0, 16], sizes = [16, 8], strides = [1, 1]} : vector<16x32xf32> to vector<16x8xf32>
    %138 = vector.extract_strided_slice %118 {offsets = [0, 24], sizes = [16, 8], strides = [1, 1]} : vector<16x32xf32> to vector<16x8xf32>
    %139 = vector.shape_cast %135 : vector<16x8xf32> to vector<1x16x8xf32>
    %140 = vector.shape_cast %136 : vector<16x8xf32> to vector<1x16x8xf32>
    %141 = vector.shape_cast %137 : vector<16x8xf32> to vector<1x16x8xf32>
    %142 = vector.shape_cast %138 : vector<16x8xf32> to vector<1x16x8xf32>
    %143 = tpu.concatenate %139, %140, %141, %142 in 0 : vector<1x16x8xf32>, vector<1x16x8xf32>, vector<1x16x8xf32>, vector<1x16x8xf32> -> vector<4x16x8xf32>
    %144 = vector.extract_strided_slice %119 {offsets = [0, 0], sizes = [16, 8], strides = [1, 1]} : vector<16x32xf32> to vector<16x8xf32>
    %145 = vector.extract_strided_slice %119 {offsets = [0, 8], sizes = [16, 8], strides = [1, 1]} : vector<16x32xf32> to vector<16x8xf32>
    %146 = vector.extract_strided_slice %119 {offsets = [0, 16], sizes = [16, 8], strides = [1, 1]} : vector<16x32xf32> to vector<16x8xf32>
    %147 = vector.extract_strided_slice %119 {offsets = [0, 24], sizes = [16, 8], strides = [1, 1]} : vector<16x32xf32> to vector<16x8xf32>
    %148 = vector.shape_cast %144 : vector<16x8xf32> to vector<1x16x8xf32>
    %149 = vector.shape_cast %145 : vector<16x8xf32> to vector<1x16x8xf32>
    %150 = vector.shape_cast %146 : vector<16x8xf32> to vector<1x16x8xf32>
    %151 = vector.shape_cast %147 : vector<16x8xf32> to vector<1x16x8xf32>
    %152 = tpu.concatenate %148, %149, %150, %151 in 0 : vector<1x16x8xf32>, vector<1x16x8xf32>, vector<1x16x8xf32>, vector<1x16x8xf32> -> vector<4x16x8xf32>
    "tpu.trace_start"() <{level = 10 : i32, message = "hqd,hkd->hqk"}> : () -> ()
    %cst_61 = arith.constant dense<0.000000e+00> : vector<4x8x16xf32>
    %153 = tpu.matmul %134, %143, %cst_61 {dimension_numbers = #tpu.dot_dimension_numbers<[2], [2], [1], [1], [0, 0, 0, 1, 1, 1], [0], [0]>} : vector<4x8x8xf32>, vector<4x16x8xf32>, vector<4x8x16xf32> -> vector<4x8x16xf32>
    "tpu.trace_stop"() : () -> ()
    %154 = vector.shape_cast %121 : vector<8x16xf32> to vector<1x8x16xf32>
    %cst_62 = arith.constant -1.000000e+30 : f32
    %155 = vector.broadcast %cst_62 : f32 to vector<1x8x16xf32>
    %156 = arith.mulf %154, %155 : vector<1x8x16xf32>
    %157 = vector.broadcast %156 : vector<1x8x16xf32> to vector<4x8x16xf32>
    %158 = arith.addf %153, %157 : vector<4x8x16xf32>
    %cst_63 = arith.constant dense<0xFF800000> : vector<4x8xf32>
    %159 = vector.multi_reduction <maximumf>, %158, %cst_63 [2] : vector<4x8x16xf32> to vector<4x8xf32>
    %160 = vector.shape_cast %159 : vector<4x8xf32> to vector<4x8x1xf32>
    %161 = vector.broadcast %160 : vector<4x8x1xf32> to vector<4x8x16xf32>
    %162 = arith.subf %158, %161 : vector<4x8x16xf32>
    %163 = math.exp %162 : vector<4x8x16xf32>
    %cst_64 = arith.constant dense<0.000000e+00> : vector<4x8xf32>
    %164 = vector.multi_reduction <add>, %163, %cst_64 [2] : vector<4x8x16xf32> to vector<4x8xf32>
    %165 = vector.shape_cast %164 : vector<4x8xf32> to vector<4x8x1xf32>
    %166 = tpu.reciprocal %165 {approx = true} : vector<4x8x1xf32> -> vector<4x8x1xf32>
    %167 = vector.broadcast %166 : vector<4x8x1xf32> to vector<4x8x16xf32>
    %168 = arith.mulf %163, %167 : vector<4x8x16xf32>
    "tpu.trace_start"() <{level = 10 : i32, message = "hqk,hkd->hqd"}> : () -> ()
    %cst_65 = arith.constant dense<0.000000e+00> : vector<4x8x8xf32>
    %169 = tpu.matmul %168, %152, %cst_65 {dimension_numbers = #tpu.dot_dimension_numbers<[2], [1], [1], [2], [0, 0, 0, 1, 1, 2], [0], [0]>} : vector<4x8x16xf32>, vector<4x16x8xf32>, vector<4x8x8xf32> -> vector<4x8x8xf32>
    "tpu.trace_stop"() : () -> ()
    %170 = vector.extract_strided_slice %169 {offsets = [0, 0, 0], sizes = [1, 8, 8], strides = [1, 1, 1]} : vector<4x8x8xf32> to vector<1x8x8xf32>
    %171 = vector.shape_cast %170 : vector<1x8x8xf32> to vector<8x8xf32>
    %172 = vector.extract_strided_slice %169 {offsets = [1, 0, 0], sizes = [1, 8, 8], strides = [1, 1, 1]} : vector<4x8x8xf32> to vector<1x8x8xf32>
    %173 = vector.shape_cast %172 : vector<1x8x8xf32> to vector<8x8xf32>
    %174 = vector.extract_strided_slice %169 {offsets = [2, 0, 0], sizes = [1, 8, 8], strides = [1, 1, 1]} : vector<4x8x8xf32> to vector<1x8x8xf32>
    %175 = vector.shape_cast %174 : vector<1x8x8xf32> to vector<8x8xf32>
    %176 = vector.extract_strided_slice %169 {offsets = [3, 0, 0], sizes = [1, 8, 8], strides = [1, 1, 1]} : vector<4x8x8xf32> to vector<1x8x8xf32>
    %177 = vector.shape_cast %176 : vector<1x8x8xf32> to vector<8x8xf32>
    %178 = tpu.concatenate %171, %173, %175, %177 in 1 : vector<8x8xf32>, vector<8x8xf32>, vector<8x8xf32>, vector<8x8xf32> -> vector<8x32xf32>
    %cst_66 = arith.constant dense<0.000000e+00> : vector<8x32xf32>
    %179 = tpu.matmul %178, %122, %cst_66 {dimension_numbers = #tpu.dot_dimension_numbers<[1], [0], [0], [1], [0, 0, 1, 1], [], []>} : vector<8x32xf32>, vector<32x32xf32>, vector<8x32xf32> -> vector<8x32xf32>
    %180 = vector.broadcast %123 : vector<1x32xf32> to vector<8x32xf32>
    %181 = arith.addf %179, %180 : vector<8x32xf32>
    %182 = arith.addf %181, %105 : vector<8x32xf32>
    %cst_67 = arith.constant dense<0.000000e+00> : vector<8xf32>
    %183 = vector.multi_reduction <add>, %182, %cst_67 [1] : vector<8x32xf32> to vector<8xf32>
    %184 = vector.shape_cast %183 : vector<8xf32> to vector<8x1xf32>
    %cst_68 = arith.constant 3.200000e+01 : f32
    %185 = vector.broadcast %cst_68 : f32 to vector<8x1xf32>
    %186 = arith.divf %184, %185 : vector<8x1xf32>
    %187 = vector.broadcast %186 : vector<8x1xf32> to vector<8x32xf32>
    %188 = arith.subf %182, %187 : vector<8x32xf32>
    %189 = arith.mulf %188, %188 : vector<8x32xf32>
    %cst_69 = arith.constant dense<0.000000e+00> : vector<8xf32>
    %190 = vector.multi_reduction <add>, %189, %cst_69 [1] : vector<8x32xf32> to vector<8xf32>
    %191 = vector.shape_cast %190 : vector<8xf32> to vector<8x1xf32>
    %cst_70 = arith.constant 3.200000e+01 : f32
    %192 = vector.broadcast %cst_70 : f32 to vector<8x1xf32>
    %193 = arith.divf %191, %192 : vector<8x1xf32>
    %194 = vector.broadcast %186 : vector<8x1xf32> to vector<8x32xf32>
    %195 = arith.subf %182, %194 : vector<8x32xf32>
    %cst_71 = arith.constant 9.99999974E-6 : f32
    %196 = vector.broadcast %cst_71 : f32 to vector<8x1xf32>
    %197 = arith.addf %193, %196 : vector<8x1xf32>
    %198 = math.rsqrt %197 : vector<8x1xf32>
    %199 = vector.broadcast %198 : vector<8x1xf32> to vector<8x32xf32>
    %200 = arith.mulf %195, %199 : vector<8x32xf32>
    %201 = vector.broadcast %124 : vector<1x32xf32> to vector<8x32xf32>
    %202 = arith.mulf %200, %201 : vector<8x32xf32>
    %203 = vector.broadcast %125 : vector<1x32xf32> to vector<8x32xf32>
    %204 = arith.addf %202, %203 : vector<8x32xf32>
    %c0_72 = arith.constant 0 : index
    %c0_73 = arith.constant 0 : index
    %c0_74 = arith.constant 0 : index
    %c0_75 = arith.constant 0 : index
    %205 = vector.load %arg28[%c0_72, %c0_73, %c0_74, %c0_75] : memref<4x1x8x16xf32, #tpu.memory_space<vmem>>, vector<4x1x8x16xf32>
    %206 = vector.shape_cast %205 : vector<4x1x8x16xf32> to vector<4x8x16xf32>
    %207 = vector.shape_cast %168 : vector<4x8x16xf32> to vector<4x1x8x16xf32>
    tpu.vector_store %arg28[%c0_72, %c0_73, %c0_74, %c0_75], %207 {strides = array<i32>} : memref<4x1x8x16xf32, #tpu.memory_space<vmem>>, vector<4x1x8x16xf32>,
    %208 = vector.broadcast %1 : vector<8x1xf32> to vector<8x32xf32>
    %209 = arith.mulf %204, %208 : vector<8x32xf32>
    %c0_76 = arith.constant 0 : index
    %c0_77 = arith.constant 0 : index
    %210 = vector.load %arg20[%c0_76, %c0_77] : memref<32x64xf32, #tpu.memory_space<vmem>>, vector<32x64xf32>
    %cst_78 = arith.constant dense<0.000000e+00> : vector<8x64xf32>
    %211 = tpu.matmul %209, %210, %cst_78 {dimension_numbers = #tpu.dot_dimension_numbers<[1], [0], [0], [1], [0, 0, 1, 1], [], []>} : vector<8x32xf32>, vector<32x64xf32>, vector<8x64xf32> -> vector<8x64xf32>
    %c0_79 = arith.constant 0 : index
    %c0_80 = arith.constant 0 : index
    %212 = vector.load %arg21[%c0_79, %c0_80] : memref<1x64xf32, #tpu.memory_space<vmem>>, vector<1x64xf32>
    %213 = vector.broadcast %212 : vector<1x64xf32> to vector<8x64xf32>
    %214 = arith.addf %211, %213 : vector<8x64xf32>
    %cst_81 = arith.constant 0.000000e+00 : f32
    %215 = vector.broadcast %cst_81 : f32 to vector<8x64xf32>
    %216 = arith.maximumf %214, %215 : vector<8x64xf32>
    %c0_82 = arith.constant 0 : index
    %c0_83 = arith.constant 0 : index
    %217 = vector.load %arg22[%c0_82, %c0_83] : memref<64x32xf32, #tpu.memory_space<vmem>>, vector<64x32xf32>
    %cst_84 = arith.constant dense<0.000000e+00> : vector<8x32xf32>
    %218 = tpu.matmul %216, %217, %cst_84 {dimension_numbers = #tpu.dot_dimension_numbers<[1], [0], [0], [1], [0, 0, 1, 1], [], []>} : vector<8x64xf32>, vector<64x32xf32>, vector<8x32xf32> -> vector<8x32xf32>
    %c0_85 = arith.constant 0 : index
    %c0_86 = arith.constant 0 : index
    %219 = vector.load %arg23[%c0_85, %c0_86] : memref<1x32xf32, #tpu.memory_space<vmem>>, vector<1x32xf32>
    %220 = vector.broadcast %219 : vector<1x32xf32> to vector<8x32xf32>
    %221 = arith.addf %218, %220 : vector<8x32xf32>
    %222 = arith.addf %221, %209 : vector<8x32xf32>
    %c0_87 = arith.constant 0 : index
    %c0_88 = arith.constant 0 : index
    %223 = vector.load %arg24[%c0_87, %c0_88] : memref<1x32xf32, #tpu.memory_space<vmem>>, vector<1x32xf32>
    %c0_89 = arith.constant 0 : index
    %c0_90 = arith.constant 0 : index
    %224 = vector.load %arg25[%c0_89, %c0_90] : memref<1x32xf32, #tpu.memory_space<vmem>>, vector<1x32xf32>
    %cst_91 = arith.constant dense<0.000000e+00> : vector<8xf32>
    %225 = vector.multi_reduction <add>, %222, %cst_91 [1] : vector<8x32xf32> to vector<8xf32>
    %226 = vector.shape_cast %225 : vector<8xf32> to vector<8x1xf32>
    %cst_92 = arith.constant 3.200000e+01 : f32
    %227 = vector.broadcast %cst_92 : f32 to vector<8x1xf32>
    %228 = arith.divf %226, %227 : vector<8x1xf32>
    %229 = vector.broadcast %228 : vector<8x1xf32> to vector<8x32xf32>
    %230 = arith.subf %222, %229 : vector<8x32xf32>
    %231 = arith.mulf %230, %230 : vector<8x32xf32>
    %cst_93 = arith.constant dense<0.000000e+00> : vector<8xf32>
    %232 = vector.multi_reduction <add>, %231, %cst_93 [1] : vector<8x32xf32> to vector<8xf32>
    %233 = vector.shape_cast %232 : vector<8xf32> to vector<8x1xf32>
    %cst_94 = arith.constant 3.200000e+01 : f32
    %234 = vector.broadcast %cst_94 : f32 to vector<8x1xf32>
    %235 = arith.divf %233, %234 : vector<8x1xf32>
    %236 = vector.broadcast %228 : vector<8x1xf32> to vector<8x32xf32>
    %237 = arith.subf %222, %236 : vector<8x32xf32>
    %cst_95 = arith.constant 9.99999974E-6 : f32
    %238 = vector.broadcast %cst_95 : f32 to vector<8x1xf32>
    %239 = arith.addf %235, %238 : vector<8x1xf32>
    %240 = math.rsqrt %239 : vector<8x1xf32>
    %241 = vector.broadcast %240 : vector<8x1xf32> to vector<8x32xf32>
    %242 = arith.mulf %237, %241 : vector<8x32xf32>
    %243 = vector.broadcast %223 : vector<1x32xf32> to vector<8x32xf32>
    %244 = arith.mulf %242, %243 : vector<8x32xf32>
    %245 = vector.broadcast %224 : vector<1x32xf32> to vector<8x32xf32>
    %246 = arith.addf %244, %245 : vector<8x32xf32>
    %247 = vector.broadcast %1 : vector<8x1xf32> to vector<8x32xf32>
    %248 = arith.mulf %246, %247 : vector<8x32xf32>
    %c0_96 = arith.constant 0 : index
    %c0_97 = arith.constant 0 : index
    %c0_98 = arith.constant 0 : index
    %249 = vector.load %arg26[%c0_96, %c0_97, %c0_98] : memref<1x8x32xf32, #tpu.memory_space<vmem>>, vector<1x8x32xf32>
    %250 = vector.shape_cast %249 : vector<1x8x32xf32> to vector<8x32xf32>
    %251 = vector.shape_cast %248 : vector<8x32xf32> to vector<1x8x32xf32>
    tpu.vector_store %arg26[%c0_96, %c0_97, %c0_98], %251 {strides = array<i32>} : memref<1x8x32xf32, #tpu.memory_space<vmem>>, vector<1x8x32xf32>,
    return
  }
  func.func @transform_0(%arg0: i32) -> (i32, i32, i32) {
    %c0_i32 = arith.constant 0 : i32
    %c0_i32_0 = arith.constant 0 : i32
    %c0_i32_1 = arith.constant 0 : i32
    return %arg0, %c0_i32, %c0_i32_0 : i32, i32, i32
  }
  func.func @transform_1(%arg0: i32) -> (i32, i32, i32) {
    %c0_i32 = arith.constant 0 : i32
    %c0_i32_0 = arith.constant 0 : i32
    %c0_i32_1 = arith.constant 0 : i32
    return %arg0, %c0_i32, %c0_i32_0 : i32, i32, i32
  }
  func.func @transform_2(%arg0: i32) -> (i32, i32, i32) {
    %c0_i32 = arith.constant 0 : i32
    %c0_i32_0 = arith.constant 0 : i32
    %c0_i32_1 = arith.constant 0 : i32
    return %arg0, %c0_i32, %c0_i32_0 : i32, i32, i32
  }
  func.func @transform_3(%arg0: i32) -> (i32, i32, i32) {
    %c0_i32 = arith.constant 0 : i32
    %c0_i32_0 = arith.constant 0 : i32
    %c0_i32_1 = arith.constant 0 : i32
    return %arg0, %c0_i32, %c0_i32_0 : i32, i32, i32
  }
  func.func @transform_4(%arg0: i32) -> (i32, i32, i32) {
    %c0_i32 = arith.constant 0 : i32
    %c0_i32_0 = arith.constant 0 : i32
    %c0_i32_1 = arith.constant 0 : i32
    return %arg0, %c0_i32, %c0_i32_0 : i32, i32, i32
  }
  func.func @transform_5(%arg0: i32) -> (i32, i32) {
    %c0_i32 = arith.constant 0 : i32
    %c0_i32_0 = arith.constant 0 : i32
    %c0_i32_1 = arith.constant 0 : i32
    return %c0_i32, %c0_i32_0 : i32, i32
  }
  func.func @transform_6(%arg0: i32) -> (i32, i32) {
    %c0_i32 = arith.constant 0 : i32
    %c0_i32_0 = arith.constant 0 : i32
    %c0_i32_1 = arith.constant 0 : i32
    return %c0_i32, %c0_i32_0 : i32, i32
  }
  func.func @transform_7(%arg0: i32) -> (i32, i32) {
    %c0_i32 = arith.constant 0 : i32
    %c0_i32_0 = arith.constant 0 : i32
    %c0_i32_1 = arith.constant 0 : i32
    return %c0_i32, %c0_i32_0 : i32, i32
  }
  func.func @transform_8(%arg0: i32) -> (i32, i32) {
    %c0_i32 = arith.constant 0 : i32
    %c0_i32_0 = arith.constant 0 : i32
    %c0_i32_1 = arith.constant 0 : i32
    return %c0_i32, %c0_i32_0 : i32, i32
  }
  func.func @transform_9(%arg0: i32) -> (i32, i32) {
    %c0_i32 = arith.constant 0 : i32
    %c0_i32_0 = arith.constant 0 : i32
    %c0_i32_1 = arith.constant 0 : i32
    return %c0_i32, %c0_i32_0 : i32, i32
  }
  func.func @transform_10(%arg0: i32) -> (i32, i32) {
    %c0_i32 = arith.constant 0 : i32
    %c0_i32_0 = arith.constant 0 : i32
    %c0_i32_1 = arith.constant 0 : i32
    return %c0_i32, %c0_i32_0 : i32, i32
  }
  func.func @transform_11(%arg0: i32) -> (i32, i32) {
    %c0_i32 = arith.constant 0 : i32
    %c0_i32_0 = arith.constant 0 : i32
    %c0_i32_1 = arith.constant 0 : i32
    return %c0_i32, %c0_i32_0 : i32, i32
  }
  func.func @transform_12(%arg0: i32) -> (i32, i32) {
    %c0_i32 = arith.constant 0 : i32
    %c0_i32_0 = arith.constant 0 : i32
    %c0_i32_1 = arith.constant 0 : i32
    return %c0_i32, %c0_i32_0 : i32, i32
  }
  func.func @transform_13(%arg0: i32) -> (i32, i32) {
    %c0_i32 = arith.constant 0 : i32
    %c0_i32_0 = arith.constant 0 : i32
    %c0_i32_1 = arith.constant 0 : i32
    return %c0_i32, %c0_i32_0 : i32, i32
  }
  func.func @transform_14(%arg0: i32) -> (i32, i32) {
    %c0_i32 = arith.constant 0 : i32
    %c0_i32_0 = arith.constant 0 : i32
    %c0_i32_1 = arith.constant 0 : i32
    return %c0_i32, %c0_i32_0 : i32, i32
  }
  func.func @transform_15(%arg0: i32) -> (i32, i32) {
    %c0_i32 = arith.constant 0 : i32
    %c0_i32_0 = arith.constant 0 : i32
    %c0_i32_1 = arith.constant 0 : i32
    return %c0_i32, %c0_i32_0 : i32, i32
  }
  func.func @transform_16(%arg0: i32) -> (i32, i32) {
    %c0_i32 = arith.constant 0 : i32
    %c0_i32_0 = arith.constant 0 : i32
    %c0_i32_1 = arith.constant 0 : i32
    return %c0_i32, %c0_i32_0 : i32, i32
  }
  func.func @transform_17(%arg0: i32) -> (i32, i32) {
    %c0_i32 = arith.constant 0 : i32
    %c0_i32_0 = arith.constant 0 : i32
    %c0_i32_1 = arith.constant 0 : i32
    return %c0_i32, %c0_i32_0 : i32, i32
  }
  func.func @transform_18(%arg0: i32) -> (i32, i32) {
    %c0_i32 = arith.constant 0 : i32
    %c0_i32_0 = arith.constant 0 : i32
    %c0_i32_1 = arith.constant 0 : i32
    return %c0_i32, %c0_i32_0 : i32, i32
  }
  func.func @transform_19(%arg0: i32) -> (i32, i32) {
    %c0_i32 = arith.constant 0 : i32
    %c0_i32_0 = arith.constant 0 : i32
    %c0_i32_1 = arith.constant 0 : i32
    return %c0_i32, %c0_i32_0 : i32, i32
  }
  func.func @transform_20(%arg0: i32) -> (i32, i32) {
    %c0_i32 = arith.constant 0 : i32
    %c0_i32_0 = arith.constant 0 : i32
    %c0_i32_1 = arith.constant 0 : i32
    return %c0_i32, %c0_i32_0 : i32, i32
  }
  func.func @transform_21(%arg0: i32) -> (i32, i32) {
    %c0_i32 = arith.constant 0 : i32
    %c0_i32_0 = arith.constant 0 : i32
    %c0_i32_1 = arith.constant 0 : i32
    return %c0_i32, %c0_i32_0 : i32, i32
  }
  func.func @transform_22(%arg0: i32) -> (i32, i32) {
    %c0_i32 = arith.constant 0 : i32
    %c0_i32_0 = arith.constant 0 : i32
    %c0_i32_1 = arith.constant 0 : i32
    return %c0_i32, %c0_i32_0 : i32, i32
  }
  func.func @transform_23(%arg0: i32) -> (i32, i32) {
    %c0_i32 = arith.constant 0 : i32
    %c0_i32_0 = arith.constant 0 : i32
    %c0_i32_1 = arith.constant 0 : i32
    return %c0_i32, %c0_i32_0 : i32, i32
  }
  func.func @transform_24(%arg0: i32) -> (i32, i32) {
    %c0_i32 = arith.constant 0 : i32
    %c0_i32_0 = arith.constant 0 : i32
    %c0_i32_1 = arith.constant 0 : i32
    return %c0_i32, %c0_i32_0 : i32, i32
  }
  func.func @transform_25(%arg0: i32) -> (i32, i32, i32) {
    %c0_i32 = arith.constant 0 : i32
    %c0_i32_0 = arith.constant 0 : i32
    %c0_i32_1 = arith.constant 0 : i32
    return %arg0, %c0_i32, %c0_i32_0 : i32, i32, i32
  }
  func.func @transform_26(%arg0: i32) -> (i32, i32, i32, i32) {
    %c0_i32 = arith.constant 0 : i32
    %c0_i32_0 = arith.constant 0 : i32
    %c0_i32_1 = arith.constant 0 : i32
    %c0_i32_2 = arith.constant 0 : i32
    return %c0_i32, %arg0, %c0_i32_0, %c0_i32_1 : i32, i32, i32, i32
  }
  func.func @transform_27(%arg0: i32) -> (i32, i32, i32, i32) {
    %c0_i32 = arith.constant 0 : i32
    %c0_i32_0 = arith.constant 0 : i32
    %c0_i32_1 = arith.constant 0 : i32
    %c0_i32_2 = arith.constant 0 : i32
    return %c0_i32, %arg0, %c0_i32_0, %c0_i32_1 : i32, i32, i32, i32
  }
}

</mosaic_0001>

<llo_original>
// kernel: decoder_layer.1
$region0: #{decoder_layer.1}
  #allocation0 [shape = 'u32[]', space=smem, size = 0x4, offset = 0x4, fixed_abs, tag = 'smem constant byte address 0x4 - core index']
  #allocation1 [shape = 'u32[144,128]{1,0:T(1,128)}', space=vmem, size = 0x12000, scoped, tag = 'internal scratch']
  %s0 = inlined_call_operand.vmem [shape: f32[2,8,32], index: 0, kind: input, shape index: {}]
  %s1 = inlined_call_operand.vmem [shape: f32[2,16,32], index: 1, kind: input, shape index: {}]
  %s2 = inlined_call_operand.vmem [shape: f32[2,8,8], index: 2, kind: input, shape index: {}]
  %s3 = inlined_call_operand.vmem [shape: f32[2,8,16], index: 3, kind: input, shape index: {}]
  %s4 = inlined_call_operand.vmem [shape: f32[2,8,1], index: 4, kind: input, shape index: {}]
  %s5 = inlined_call_operand.vmem [shape: f32[32,96], index: 5, kind: input, shape index: {}]
  %s6 = inlined_call_operand.vmem [shape: f32[1,96], index: 6, kind: input, shape index: {}]
  %s7 = inlined_call_operand.vmem [shape: f32[32,32], index: 7, kind: input, shape index: {}]
  %s8 = inlined_call_operand.vmem [shape: f32[1,32], index: 8, kind: input, shape index: {}]
  %s9 = inlined_call_operand.vmem [shape: f32[1,32], index: 9, kind: input, shape index: {}]
  %s10 = inlined_call_operand.vmem [shape: f32[1,32], index: 10, kind: input, shape index: {}]
  %s11 = inlined_call_operand.vmem [shape: f32[32,32], index: 11, kind: input, shape index: {}]
  %s12 = inlined_call_operand.vmem [shape: f32[1,32], index: 12, kind: input, shape index: {}]
  %s13 = inlined_call_operand.vmem [shape: f32[32,64], index: 13, kind: input, shape index: {}]
  %s14 = inlined_call_operand.vmem [shape: f32[1,64], index: 14, kind: input, shape index: {}]
  %s15 = inlined_call_operand.vmem [shape: f32[32,32], index: 15, kind: input, shape index: {}]
  %s16 = inlined_call_operand.vmem [shape: f32[1,32], index: 16, kind: input, shape index: {}]
  %s17 = inlined_call_operand.vmem [shape: f32[1,32], index: 17, kind: input, shape index: {}]
  %s18 = inlined_call_operand.vmem [shape: f32[1,32], index: 18, kind: input, shape index: {}]
  %s19 = inlined_call_operand.vmem [shape: f32[32,64], index: 19, kind: input, shape index: {}]
  %s20 = inlined_call_operand.vmem [shape: f32[1,64], index: 20, kind: input, shape index: {}]
  %s21 = inlined_call_operand.vmem [shape: f32[64,32], index: 21, kind: input, shape index: {}]
  %s22 = inlined_call_operand.vmem [shape: f32[1,32], index: 22, kind: input, shape index: {}]
  %s23 = inlined_call_operand.vmem [shape: f32[1,32], index: 23, kind: input, shape index: {}]
  %s24 = inlined_call_operand.vmem [shape: f32[1,32], index: 24, kind: input, shape index: {}]
  %s25 = inlined_call_operand.hbm [shape: f32[2,8,32], index: 25, kind: output, shape index: {0}]
  %s26 = inlined_call_operand.hbm [shape: f32[4,2,8,8], index: 26, kind: output, shape index: {1}]
  %s27 = inlined_call_operand.hbm [shape: f32[4,2,8,16], index: 27, kind: output, shape index: {2}]
  %28 = xla_tuple %s25, %s26, %s27
  %s29 = sld [smem:[#allocation0]]
  $region149: #{decoder_layer.1} parent=0
    _
  %s31 = ssub.s32 1, %s29
  %s32 = scalar_select 0, %s31, %s29
  $region1: #{decoder_layer.1} parent=0
    #allocation2 [shape = 'u8[8192]{0}', space=vmem, size = 0x2000, scoped, tag = 'output window, operand 0']
    #allocation3 [shape = 's32[2]{0}', space=sflag, size = 0x8, scoped, tag = 'scoped memory for decoder_layer.1']
    #allocation4 [shape = 'u8[32768]{0}', space=vmem, size = 0x8000, scoped, tag = 'output window, operand 1']
    #allocation5 [shape = 's32[2]{0}', space=sflag, size = 0x8, scoped, tag = 'scoped memory for decoder_layer.1']
    #allocation6 [shape = 'u8[32768]{0}', space=vmem, size = 0x8000, scoped, tag = 'output window, operand 2']
    %33 = vsyncpa [#allocation3], 0
    %s34 = scalar_lea.sflag [#allocation3], 1
    %35 = vsyncpa %s34, 0
    %36 = vsyncpa [#allocation5], 0
    %s37 = scalar_lea.sflag [#allocation5], 1
    %38 = vsyncpa %s37, 0
    loop: start=0, step=1, limit=4
    $region2: #{decoder_layer.1} parent=1 // loop_pre_header
      _
    $region3: #{decoder_layer.1} parent=1 // loop_header
      %s40 = sphi 0, %s44
      %p41 = scmp.ge.s32.totalorder %s40, 4
      %s50 = sphi 0, %s52
      %s53 = sphi 0, %s50
      %s54 = sphi 0, %s53
      %s70 = sphi 0, %s54
      %s76 = sphi 0, %s78
      %s79 = sphi 0, %s76
      %s80 = sphi 0, %s79
      %s96 = sphi 0, %s80
      %s102 = sphi 0, %s104
      %s105 = sphi 0, %s102
      %s106 = sphi 0, %s105
      %s122 = sphi 0, %s106
      %s128 = sphi 0, %s130
      %s131 = sphi 0, %s128
      %s132 = sphi 0, %s131
      %s148 = sphi 0, %s132
      %s154 = sphi 0, %s156
      %s157 = sphi 0, %s154
      %s158 = sphi 0, %s157
      %s174 = sphi 0, %s158
      %s178 = sphi 0, %s178
      %s180 = sphi 0, %s178
      %s181 = sphi 0, %s180
      %s195 = sphi 0, %s181
      %s199 = sphi 0, %s199
      %s201 = sphi 0, %s199
      %s202 = sphi 0, %s201
      %s216 = sphi 0, %s202
      %s220 = sphi 0, %s220
      %s222 = sphi 0, %s220
      %s223 = sphi 0, %s222
      %s237 = sphi 0, %s223
      %s241 = sphi 0, %s241
      %s243 = sphi 0, %s241
      %s244 = sphi 0, %s243
      %s258 = sphi 0, %s244
      %s262 = sphi 0, %s262
      %s264 = sphi 0, %s262
      %s265 = sphi 0, %s264
      %s279 = sphi 0, %s265
      %s283 = sphi 0, %s283
      %s285 = sphi 0, %s283
      %s286 = sphi 0, %s285
      %s300 = sphi 0, %s286
      %s304 = sphi 0, %s304
      %s306 = sphi 0, %s304
      %s307 = sphi 0, %s306
      %s321 = sphi 0, %s307
      %s325 = sphi 0, %s325
      %s327 = sphi 0, %s325
      %s328 = sphi 0, %s327
      %s342 = sphi 0, %s328
      %s346 = sphi 0, %s346
      %s348 = sphi 0, %s346
      %s349 = sphi 0, %s348
      %s363 = sphi 0, %s349
      %s367 = sphi 0, %s367
      %s369 = sphi 0, %s367
      %s370 = sphi 0, %s369
      %s384 = sphi 0, %s370
      %s388 = sphi 0, %s388
      %s390 = sphi 0, %s388
      %s391 = sphi 0, %s390
      %s405 = sphi 0, %s391
      %s409 = sphi 0, %s409
      %s411 = sphi 0, %s409
      %s412 = sphi 0, %s411
      %s426 = sphi 0, %s412
      %s430 = sphi 0, %s430
      %s432 = sphi 0, %s430
      %s433 = sphi 0, %s432
      %s447 = sphi 0, %s433
      %s451 = sphi 0, %s451
      %s453 = sphi 0, %s451
      %s454 = sphi 0, %s453
      %s468 = sphi 0, %s454
      %s472 = sphi 0, %s472
      %s474 = sphi 0, %s472
      %s475 = sphi 0, %s474
      %s489 = sphi 0, %s475
      %s493 = sphi 0, %s493
      %s495 = sphi 0, %s493
      %s496 = sphi 0, %s495
      %s510 = sphi 0, %s496
      %s514 = sphi 0, %s514
      %s516 = sphi 0, %s514
      %s517 = sphi 0, %s516
      %s531 = sphi 0, %s517
      %s535 = sphi 0, %s535
      %s537 = sphi 0, %s535
      %s538 = sphi 0, %s537
      %s552 = sphi 0, %s538
      %s556 = sphi 0, %s556
      %s558 = sphi 0, %s556
      %s559 = sphi 0, %s558
      %s573 = sphi 0, %s559
      %s577 = sphi 0, %s577
      %s579 = sphi 0, %s577
      %s580 = sphi 0, %s579
      %s594 = sphi 0, %s580
      %s600 = sphi 0, %s602
      %s603 = sphi 0, %s600
      %s604 = sphi 0, %s603
      %s620 = sphi 0, %s604
      %s626 = sphi 0, %s628
      %s629 = sphi 0, %s626
      %s630 = sphi 0, %s629
      %s646 = sphi 0, %s630
      %s652 = sphi 0, %s654
      %s655 = sphi 0, %s652
      %s656 = sphi 0, %s655
      %s672 = sphi 0, %s656
    $region4: #{decoder_layer.1} parent=1 // loop_header_branch
      %43 = sbr.rel (%p41) target = $region8
    $region5: #{decoder_layer.1} parent=1 // loop_body
      %s45 = ssub.s32 %s40, 1
      %s46 = ssub.s32 %s40, 2
      %s47 = sadd.s32 %s40, 1
      %s48 = ssub.s32 %s40, %s47
      %p49 = scmp.eq.s32.totalorder %s48, 0
      %s51 = sadd.s32 %s50, 1
      %s52 = scalar_select %p49, %s50, %s51
      %p55 = pneg %p49
      %p56 = scmp.eq.s32.totalorder %s40, 1
      %p57 = por %p55, %p56
      %p58 = scmp.ne.s32.totalorder %s50, %s53
      %p59 = scmp.eq.s32.totalorder %s40, 0
      %p60 = por %p58, %p59
      %p61 = scmp.ne.s32.totalorder %s50, %s53
      %p62 = scmp.eq.s32.totalorder %s45, 1
      %p63 = por %p61, %p62
      %p64 = scmp.ne.s32.totalorder %s53, %s54
      %p65 = scmp.eq.s32.totalorder %s45, 0
      %p66 = por %p64, %p65
      %p67 = scmp.ne.s32.totalorder %s53, %s54
      %p68 = scmp.eq.s32.totalorder %s46, 1
      %p69 = por %p67, %p68
      %p71 = scmp.ne.s32.totalorder %s54, %s70
      %p72 = scmp.eq.s32.totalorder %s46, 0
      %p73 = por %p71, %p72
      %s74 = ssub.s32 %s40, %s47
      %p75 = scmp.eq.s32.totalorder %s74, 0
      %s77 = sadd.s32 %s76, 1
      %s78 = scalar_select %p75, %s76, %s77
      %p81 = pneg %p75
      %p82 = scmp.eq.s32.totalorder %s40, 1
      %p83 = por %p81, %p82
      %p84 = scmp.ne.s32.totalorder %s76, %s79
      %p85 = scmp.eq.s32.totalorder %s40, 0
      %p86 = por %p84, %p85
      %p87 = scmp.ne.s32.totalorder %s76, %s79
      %p88 = scmp.eq.s32.totalorder %s45, 1
      %p89 = por %p87, %p88
      %p90 = scmp.ne.s32.totalorder %s79, %s80
      %p91 = scmp.eq.s32.totalorder %s45, 0
      %p92 = por %p90, %p91
      %p93 = scmp.ne.s32.totalorder %s79, %s80
      %p94 = scmp.eq.s32.totalorder %s46, 1
      %p95 = por %p93, %p94
      %p97 = scmp.ne.s32.totalorder %s80, %s96
      %p98 = scmp.eq.s32.totalorder %s46, 0
      %p99 = por %p97, %p98
      %s100 = ssub.s32 %s40, %s47
      %p101 = scmp.eq.s32.totalorder %s100, 0
      %s103 = sadd.s32 %s102, 1
      %s104 = scalar_select %p101, %s102, %s103
      %p107 = pneg %p101
      %p108 = scmp.eq.s32.totalorder %s40, 1
      %p109 = por %p107, %p108
      %p110 = scmp.ne.s32.totalorder %s102, %s105
      %p111 = scmp.eq.s32.totalorder %s40, 0
      %p112 = por %p110, %p111
      %p113 = scmp.ne.s32.totalorder %s102, %s105
      %p114 = scmp.eq.s32.totalorder %s45, 1
      %p115 = por %p113, %p114
      %p116 = scmp.ne.s32.totalorder %s105, %s106
      %p117 = scmp.eq.s32.totalorder %s45, 0
      %p118 = por %p116, %p117
      %p119 = scmp.ne.s32.totalorder %s105, %s106
      %p120 = scmp.eq.s32.totalorder %s46, 1
      %p121 = por %p119, %p120
      %p123 = scmp.ne.s32.totalorder %s106, %s122
      %p124 = scmp.eq.s32.totalorder %s46, 0
      %p125 = por %p123, %p124
      %s126 = ssub.s32 %s40, %s47
      %p127 = scmp.eq.s32.totalorder %s126, 0
      %s129 = sadd.s32 %s128, 1
      %s130 = scalar_select %p127, %s128, %s129
      %p133 = pneg %p127
      %p134 = scmp.eq.s32.totalorder %s40, 1
      %p135 = por %p133, %p134
      %p136 = scmp.ne.s32.totalorder %s128, %s131
      %p137 = scmp.eq.s32.totalorder %s40, 0
      %p138 = por %p136, %p137
      %p139 = scmp.ne.s32.totalorder %s128, %s131
      %p140 = scmp.eq.s32.totalorder %s45, 1
      %p141 = por %p139, %p140
      %p142 = scmp.ne.s32.totalorder %s131, %s132
      %p143 = scmp.eq.s32.totalorder %s45, 0
      %p144 = por %p142, %p143
      %p145 = scmp.ne.s32.totalorder %s131, %s132
      %p146 = scmp.eq.s32.totalorder %s46, 1
      %p147 = por %p145, %p146
      %p149 = scmp.ne.s32.totalorder %s132, %s148
      %p150 = scmp.eq.s32.totalorder %s46, 0
      %p151 = por %p149, %p150
      %s152 = ssub.s32 %s40, %s47
      %p153 = scmp.eq.s32.totalorder %s152, 0
      %s155 = sadd.s32 %s154, 1
      %s156 = scalar_select %p153, %s154, %s155
      %p159 = pneg %p153
      %p160 = scmp.eq.s32.totalorder %s40, 1
      %p161 = por %p159, %p160
      %p162 = scmp.ne.s32.totalorder %s154, %s157
      %p163 = scmp.eq.s32.totalorder %s40, 0
      %p164 = por %p162, %p163
      %p165 = scmp.ne.s32.totalorder %s154, %s157
      %p166 = scmp.eq.s32.totalorder %s45, 1
      %p167 = por %p165, %p166
      %p168 = scmp.ne.s32.totalorder %s157, %s158
      %p169 = scmp.eq.s32.totalorder %s45, 0
      %p170 = por %p168, %p169
      %p171 = scmp.ne.s32.totalorder %s157, %s158
      %p172 = scmp.eq.s32.totalorder %s46, 1
      %p173 = por %p171, %p172
      %p175 = scmp.ne.s32.totalorder %s158, %s174
      %p176 = scmp.eq.s32.totalorder %s46, 0
      %p177 = por %p175, %p176
      %s179 = sadd.s32 %s178, 1
      %p182 = scmp.eq.s32.totalorder %s40, 1
      %p183 = scmp.ne.s32.totalorder %s178, %s180
      %p184 = scmp.eq.s32.totalorder %s40, 0
      %p185 = por %p183, %p184
      %p186 = scmp.ne.s32.totalorder %s178, %s180
      %p187 = scmp.eq.s32.totalorder %s45, 1
      %p188 = por %p186, %p187
      %p189 = scmp.ne.s32.totalorder %s180, %s181
      %p190 = scmp.eq.s32.totalorder %s45, 0
      %p191 = por %p189, %p190
      %p192 = scmp.ne.s32.totalorder %s180, %s181
      %p193 = scmp.eq.s32.totalorder %s46, 1
      %p194 = por %p192, %p193
      %p196 = scmp.ne.s32.totalorder %s181, %s195
      %p197 = scmp.eq.s32.totalorder %s46, 0
      %p198 = por %p196, %p197
      %s200 = sadd.s32 %s199, 1
      %p203 = scmp.eq.s32.totalorder %s40, 1
      %p204 = scmp.ne.s32.totalorder %s199, %s201
      %p205 = scmp.eq.s32.totalorder %s40, 0
      %p206 = por %p204, %p205
      %p207 = scmp.ne.s32.totalorder %s199, %s201
      %p208 = scmp.eq.s32.totalorder %s45, 1
      %p209 = por %p207, %p208
      %p210 = scmp.ne.s32.totalorder %s201, %s202
      %p211 = scmp.eq.s32.totalorder %s45, 0
      %p212 = por %p210, %p211
      %p213 = scmp.ne.s32.totalorder %s201, %s202
      %p214 = scmp.eq.s32.totalorder %s46, 1
      %p215 = por %p213, %p214
      %p217 = scmp.ne.s32.totalorder %s202, %s216
      %p218 = scmp.eq.s32.totalorder %s46, 0
      %p219 = por %p217, %p218
      %s221 = sadd.s32 %s220, 1
      %p224 = scmp.eq.s32.totalorder %s40, 1
      %p225 = scmp.ne.s32.totalorder %s220, %s222
      %p226 = scmp.eq.s32.totalorder %s40, 0
      %p227 = por %p225, %p226
      %p228 = scmp.ne.s32.totalorder %s220, %s222
      %p229 = scmp.eq.s32.totalorder %s45, 1
      %p230 = por %p228, %p229
      %p231 = scmp.ne.s32.totalorder %s222, %s223
      %p232 = scmp.eq.s32.totalorder %s45, 0
      %p233 = por %p231, %p232
      %p234 = scmp.ne.s32.totalorder %s222, %s223
      %p235 = scmp.eq.s32.totalorder %s46, 1
      %p236 = por %p234, %p235
      %p238 = scmp.ne.s32.totalorder %s223, %s237
      %p239 = scmp.eq.s32.totalorder %s46, 0
      %p240 = por %p238, %p239
      %s242 = sadd.s32 %s241, 1
      %p245 = scmp.eq.s32.totalorder %s40, 1
      %p246 = scmp.ne.s32.totalorder %s241, %s243
      %p247 = scmp.eq.s32.totalorder %s40, 0
      %p248 = por %p246, %p247
      %p249 = scmp.ne.s32.totalorder %s241, %s243
      %p250 = scmp.eq.s32.totalorder %s45, 1
      %p251 = por %p249, %p250
      %p252 = scmp.ne.s32.totalorder %s243, %s244
      %p253 = scmp.eq.s32.totalorder %s45, 0
      %p254 = por %p252, %p253
      %p255 = scmp.ne.s32.totalorder %s243, %s244
      %p256 = scmp.eq.s32.totalorder %s46, 1
      %p257 = por %p255, %p256
      %p259 = scmp.ne.s32.totalorder %s244, %s258
      %p260 = scmp.eq.s32.totalorder %s46, 0
      %p261 = por %p259, %p260
      %s263 = sadd.s32 %s262, 1
      %p266 = scmp.eq.s32.totalorder %s40, 1
      %p267 = scmp.ne.s32.totalorder %s262, %s264
      %p268 = scmp.eq.s32.totalorder %s40, 0
      %p269 = por %p267, %p268
      %p270 = scmp.ne.s32.totalorder %s262, %s264
      %p271 = scmp.eq.s32.totalorder %s45, 1
      %p272 = por %p270, %p271
      %p273 = scmp.ne.s32.totalorder %s264, %s265
      %p274 = scmp.eq.s32.totalorder %s45, 0
      %p275 = por %p273, %p274
      %p276 = scmp.ne.s32.totalorder %s264, %s265
      %p277 = scmp.eq.s32.totalorder %s46, 1
      %p278 = por %p276, %p277
      %p280 = scmp.ne.s32.totalorder %s265, %s279
      %p281 = scmp.eq.s32.totalorder %s46, 0
      %p282 = por %p280, %p281
      %s284 = sadd.s32 %s283, 1
      %p287 = scmp.eq.s32.totalorder %s40, 1
      %p288 = scmp.ne.s32.totalorder %s283, %s285
      %p289 = scmp.eq.s32.totalorder %s40, 0
      %p290 = por %p288, %p289
      %p291 = scmp.ne.s32.totalorder %s283, %s285
      %p292 = scmp.eq.s32.totalorder %s45, 1
      %p293 = por %p291, %p292
      %p294 = scmp.ne.s32.totalorder %s285, %s286
      %p295 = scmp.eq.s32.totalorder %s45, 0
      %p296 = por %p294, %p295
      %p297 = scmp.ne.s32.totalorder %s285, %s286
      %p298 = scmp.eq.s32.totalorder %s46, 1
      %p299 = por %p297, %p298
      %p301 = scmp.ne.s32.totalorder %s286, %s300
      %p302 = scmp.eq.s32.totalorder %s46, 0
      %p303 = por %p301, %p302
      %s305 = sadd.s32 %s304, 1
      %p308 = scmp.eq.s32.totalorder %s40, 1
      %p309 = scmp.ne.s32.totalorder %s304, %s306
      %p310 = scmp.eq.s32.totalorder %s40, 0
      %p311 = por %p309, %p310
      %p312 = scmp.ne.s32.totalorder %s304, %s306
      %p313 = scmp.eq.s32.totalorder %s45, 1
      %p314 = por %p312, %p313
      %p315 = scmp.ne.s32.totalorder %s306, %s307
      %p316 = scmp.eq.s32.totalorder %s45, 0
      %p317 = por %p315, %p316
      %p318 = scmp.ne.s32.totalorder %s306, %s307
      %p319 = scmp.eq.s32.totalorder %s46, 1
      %p320 = por %p318, %p319
      %p322 = scmp.ne.s32.totalorder %s307, %s321
      %p323 = scmp.eq.s32.totalorder %s46, 0
      %p324 = por %p322, %p323
      %s326 = sadd.s32 %s325, 1
      %p329 = scmp.eq.s32.totalorder %s40, 1
      %p330 = scmp.ne.s32.totalorder %s325, %s327
      %p331 = scmp.eq.s32.totalorder %s40, 0
      %p332 = por %p330, %p331
      %p333 = scmp.ne.s32.totalorder %s325, %s327
      %p334 = scmp.eq.s32.totalorder %s45, 1
      %p335 = por %p333, %p334
      %p336 = scmp.ne.s32.totalorder %s327, %s328
      %p337 = scmp.eq.s32.totalorder %s45, 0
      %p338 = por %p336, %p337
      %p339 = scmp.ne.s32.totalorder %s327, %s328
      %p340 = scmp.eq.s32.totalorder %s46, 1
      %p341 = por %p339, %p340
      %p343 = scmp.ne.s32.totalorder %s328, %s342
      %p344 = scmp.eq.s32.totalorder %s46, 0
      %p345 = por %p343, %p344
      %s347 = sadd.s32 %s346, 1
      %p350 = scmp.eq.s32.totalorder %s40, 1
      %p351 = scmp.ne.s32.totalorder %s346, %s348
      %p352 = scmp.eq.s32.totalorder %s40, 0
      %p353 = por %p351, %p352
      %p354 = scmp.ne.s32.totalorder %s346, %s348
      %p355 = scmp.eq.s32.totalorder %s45, 1
      %p356 = por %p354, %p355
      %p357 = scmp.ne.s32.totalorder %s348, %s349
      %p358 = scmp.eq.s32.totalorder %s45, 0
      %p359 = por %p357, %p358
      %p360 = scmp.ne.s32.totalorder %s348, %s349
      %p361 = scmp.eq.s32.totalorder %s46, 1
      %p362 = por %p360, %p361
      %p364 = scmp.ne.s32.totalorder %s349, %s363
      %p365 = scmp.eq.s32.totalorder %s46, 0
      %p366 = por %p364, %p365
      %s368 = sadd.s32 %s367, 1
      %p371 = scmp.eq.s32.totalorder %s40, 1
      %p372 = scmp.ne.s32.totalorder %s367, %s369
      %p373 = scmp.eq.s32.totalorder %s40, 0
      %p374 = por %p372, %p373
      %p375 = scmp.ne.s32.totalorder %s367, %s369
      %p376 = scmp.eq.s32.totalorder %s45, 1
      %p377 = por %p375, %p376
      %p378 = scmp.ne.s32.totalorder %s369, %s370
      %p379 = scmp.eq.s32.totalorder %s45, 0
      %p380 = por %p378, %p379
      %p381 = scmp.ne.s32.totalorder %s369, %s370
      %p382 = scmp.eq.s32.totalorder %s46, 1
      %p383 = por %p381, %p382
      %p385 = scmp.ne.s32.totalorder %s370, %s384
      %p386 = scmp.eq.s32.totalorder %s46, 0
      %p387 = por %p385, %p386
      %s389 = sadd.s32 %s388, 1
      %p392 = scmp.eq.s32.totalorder %s40, 1
      %p393 = scmp.ne.s32.totalorder %s388, %s390
      %p394 = scmp.eq.s32.totalorder %s40, 0
      %p395 = por %p393, %p394
      %p396 = scmp.ne.s32.totalorder %s388, %s390
      %p397 = scmp.eq.s32.totalorder %s45, 1
      %p398 = por %p396, %p397
      %p399 = scmp.ne.s32.totalorder %s390, %s391
      %p400 = scmp.eq.s32.totalorder %s45, 0
      %p401 = por %p399, %p400
      %p402 = scmp.ne.s32.totalorder %s390, %s391
      %p403 = scmp.eq.s32.totalorder %s46, 1
      %p404 = por %p402, %p403
      %p406 = scmp.ne.s32.totalorder %s391, %s405
      %p407 = scmp.eq.s32.totalorder %s46, 0
      %p408 = por %p406, %p407
      %s410 = sadd.s32 %s409, 1
      %p413 = scmp.eq.s32.totalorder %s40, 1
      %p414 = scmp.ne.s32.totalorder %s409, %s411
      %p415 = scmp.eq.s32.totalorder %s40, 0
      %p416 = por %p414, %p415
      %p417 = scmp.ne.s32.totalorder %s409, %s411
      %p418 = scmp.eq.s32.totalorder %s45, 1
      %p419 = por %p417, %p418
      %p420 = scmp.ne.s32.totalorder %s411, %s412
      %p421 = scmp.eq.s32.totalorder %s45, 0
      %p422 = por %p420, %p421
      %p423 = scmp.ne.s32.totalorder %s411, %s412
      %p424 = scmp.eq.s32.totalorder %s46, 1
      %p425 = por %p423, %p424
      %p427 = scmp.ne.s32.totalorder %s412, %s426
      %p428 = scmp.eq.s32.totalorder %s46, 0
      %p429 = por %p427, %p428
      %s431 = sadd.s32 %s430, 1
      %p434 = scmp.eq.s32.totalorder %s40, 1
      %p435 = scmp.ne.s32.totalorder %s430, %s432
      %p436 = scmp.eq.s32.totalorder %s40, 0
      %p437 = por %p435, %p436
      %p438 = scmp.ne.s32.totalorder %s430, %s432
      %p439 = scmp.eq.s32.totalorder %s45, 1
      %p440 = por %p438, %p439
      %p441 = scmp.ne.s32.totalorder %s432, %s433
      %p442 = scmp.eq.s32.totalorder %s45, 0
      %p443 = por %p441, %p442
      %p444 = scmp.ne.s32.totalorder %s432, %s433
      %p445 = scmp.eq.s32.totalorder %s46, 1
      %p446 = por %p444, %p445
      %p448 = scmp.ne.s32.totalorder %s433, %s447
      %p449 = scmp.eq.s32.totalorder %s46, 0
      %p450 = por %p448, %p449
      %s452 = sadd.s32 %s451, 1
      %p455 = scmp.eq.s32.totalorder %s40, 1
      %p456 = scmp.ne.s32.totalorder %s451, %s453
      %p457 = scmp.eq.s32.totalorder %s40, 0
      %p458 = por %p456, %p457
      %p459 = scmp.ne.s32.totalorder %s451, %s453
      %p460 = scmp.eq.s32.totalorder %s45, 1
      %p461 = por %p459, %p460
      %p462 = scmp.ne.s32.totalorder %s453, %s454
      %p463 = scmp.eq.s32.totalorder %s45, 0
      %p464 = por %p462, %p463
      %p465 = scmp.ne.s32.totalorder %s453, %s454
      %p466 = scmp.eq.s32.totalorder %s46, 1
      %p467 = por %p465, %p466
      %p469 = scmp.ne.s32.totalorder %s454, %s468
      %p470 = scmp.eq.s32.totalorder %s46, 0
      %p471 = por %p469, %p470
      %s473 = sadd.s32 %s472, 1
      %p476 = scmp.eq.s32.totalorder %s40, 1
      %p477 = scmp.ne.s32.totalorder %s472, %s474
      %p478 = scmp.eq.s32.totalorder %s40, 0
      %p479 = por %p477, %p478
      %p480 = scmp.ne.s32.totalorder %s472, %s474
      %p481 = scmp.eq.s32.totalorder %s45, 1
      %p482 = por %p480, %p481
      %p483 = scmp.ne.s32.totalorder %s474, %s475
      %p484 = scmp.eq.s32.totalorder %s45, 0
      %p485 = por %p483, %p484
      %p486 = scmp.ne.s32.totalorder %s474, %s475
      %p487 = scmp.eq.s32.totalorder %s46, 1
      %p488 = por %p486, %p487
      %p490 = scmp.ne.s32.totalorder %s475, %s489
      %p491 = scmp.eq.s32.totalorder %s46, 0
      %p492 = por %p490, %p491
      %s494 = sadd.s32 %s493, 1
      %p497 = scmp.eq.s32.totalorder %s40, 1
      %p498 = scmp.ne.s32.totalorder %s493, %s495
      %p499 = scmp.eq.s32.totalorder %s40, 0
      %p500 = por %p498, %p499
      %p501 = scmp.ne.s32.totalorder %s493, %s495
      %p502 = scmp.eq.s32.totalorder %s45, 1
      %p503 = por %p501, %p502
      %p504 = scmp.ne.s32.totalorder %s495, %s496
      %p505 = scmp.eq.s32.totalorder %s45, 0
      %p506 = por %p504, %p505
      %p507 = scmp.ne.s32.totalorder %s495, %s496
      %p508 = scmp.eq.s32.totalorder %s46, 1
      %p509 = por %p507, %p508
      %p511 = scmp.ne.s32.totalorder %s496, %s510
      %p512 = scmp.eq.s32.totalorder %s46, 0
      %p513 = por %p511, %p512
      %s515 = sadd.s32 %s514, 1
      %p518 = scmp.eq.s32.totalorder %s40, 1
      %p519 = scmp.ne.s32.totalorder %s514, %s516
      %p520 = scmp.eq.s32.totalorder %s40, 0
      %p521 = por %p519, %p520
      %p522 = scmp.ne.s32.totalorder %s514, %s516
      %p523 = scmp.eq.s32.totalorder %s45, 1
      %p524 = por %p522, %p523
      %p525 = scmp.ne.s32.totalorder %s516, %s517
      %p526 = scmp.eq.s32.totalorder %s45, 0
      %p527 = por %p525, %p526
      %p528 = scmp.ne.s32.totalorder %s516, %s517
      %p529 = scmp.eq.s32.totalorder %s46, 1
      %p530 = por %p528, %p529
      %p532 = scmp.ne.s32.totalorder %s517, %s531
      %p533 = scmp.eq.s32.totalorder %s46, 0
      %p534 = por %p532, %p533
      %s536 = sadd.s32 %s535, 1
      %p539 = scmp.eq.s32.totalorder %s40, 1
      %p540 = scmp.ne.s32.totalorder %s535, %s537
      %p541 = scmp.eq.s32.totalorder %s40, 0
      %p542 = por %p540, %p541
      %p543 = scmp.ne.s32.totalorder %s535, %s537
      %p544 = scmp.eq.s32.totalorder %s45, 1
      %p545 = por %p543, %p544
      %p546 = scmp.ne.s32.totalorder %s537, %s538
      %p547 = scmp.eq.s32.totalorder %s45, 0
      %p548 = por %p546, %p547
      %p549 = scmp.ne.s32.totalorder %s537, %s538
      %p550 = scmp.eq.s32.totalorder %s46, 1
      %p551 = por %p549, %p550
      %p553 = scmp.ne.s32.totalorder %s538, %s552
      %p554 = scmp.eq.s32.totalorder %s46, 0
      %p555 = por %p553, %p554
      %s557 = sadd.s32 %s556, 1
      %p560 = scmp.eq.s32.totalorder %s40, 1
      %p561 = scmp.ne.s32.totalorder %s556, %s558
      %p562 = scmp.eq.s32.totalorder %s40, 0
      %p563 = por %p561, %p562
      %p564 = scmp.ne.s32.totalorder %s556, %s558
      %p565 = scmp.eq.s32.totalorder %s45, 1
      %p566 = por %p564, %p565
      %p567 = scmp.ne.s32.totalorder %s558, %s559
      %p568 = scmp.eq.s32.totalorder %s45, 0
      %p569 = por %p567, %p568
      %p570 = scmp.ne.s32.totalorder %s558, %s559
      %p571 = scmp.eq.s32.totalorder %s46, 1
      %p572 = por %p570, %p571
      %p574 = scmp.ne.s32.totalorder %s559, %s573
      %p575 = scmp.eq.s32.totalorder %s46, 0
      %p576 = por %p574, %p575
      %s578 = sadd.s32 %s577, 1
      %p581 = scmp.eq.s32.totalorder %s40, 1
      %p582 = scmp.ne.s32.totalorder %s577, %s579
      %p583 = scmp.eq.s32.totalorder %s40, 0
      %p584 = por %p582, %p583
      %p585 = scmp.ne.s32.totalorder %s577, %s579
      %p586 = scmp.eq.s32.totalorder %s45, 1
      %p587 = por %p585, %p586
      %p588 = scmp.ne.s32.totalorder %s579, %s580
      %p589 = scmp.eq.s32.totalorder %s45, 0
      %p590 = por %p588, %p589
      %p591 = scmp.ne.s32.totalorder %s579, %s580
      %p592 = scmp.eq.s32.totalorder %s46, 1
      %p593 = por %p591, %p592
      %p595 = scmp.ne.s32.totalorder %s580, %s594
      %p596 = scmp.eq.s32.totalorder %s46, 0
      %p597 = por %p595, %p596
      %s598 = ssub.s32 %s40, %s47
      %p599 = scmp.eq.s32.totalorder %s598, 0
      %s601 = sadd.s32 %s600, 1
      %s602 = scalar_select %p599, %s600, %s601
      %p605 = pneg %p599
      %p606 = scmp.eq.s32.totalorder %s40, 1
      %p607 = por %p605, %p606
      %p608 = scmp.ne.s32.totalorder %s600, %s603
      %p609 = scmp.eq.s32.totalorder %s40, 0
      %p610 = por %p608, %p609
      %p611 = scmp.ne.s32.totalorder %s600, %s603
      %p612 = scmp.eq.s32.totalorder %s45, 1
      %p613 = por %p611, %p612
      %p614 = scmp.ne.s32.totalorder %s603, %s604
      %p615 = scmp.eq.s32.totalorder %s45, 0
      %p616 = por %p614, %p615
      %p617 = scmp.ne.s32.totalorder %s603, %s604
      %p618 = scmp.eq.s32.totalorder %s46, 1
      %p619 = por %p617, %p618
      %p621 = scmp.ne.s32.totalorder %s604, %s620
      %p622 = scmp.eq.s32.totalorder %s46, 0
      %p623 = por %p621, %p622
      %s624 = ssub.s32 %s40, %s47
      %p625 = scmp.eq.s32.totalorder %s624, 0
      %s627 = sadd.s32 %s626, 1
      %s628 = scalar_select %p625, %s626, %s627
      %p631 = pneg %p625
      %p632 = scmp.eq.s32.totalorder %s40, 1
      %p633 = por %p631, %p632
      %p634 = scmp.ne.s32.totalorder %s626, %s629
      %p635 = scmp.eq.s32.totalorder %s40, 0
      %p636 = por %p634, %p635
      %p637 = scmp.ne.s32.totalorder %s626, %s629
      %p638 = scmp.eq.s32.totalorder %s45, 1
      %p639 = por %p637, %p638
      %p640 = scmp.ne.s32.totalorder %s629, %s630
      %p641 = scmp.eq.s32.totalorder %s45, 0
      %p642 = por %p640, %p641
      %p643 = scmp.ne.s32.totalorder %s629, %s630
      %p644 = scmp.eq.s32.totalorder %s46, 1
      %p645 = por %p643, %p644
      %p647 = scmp.ne.s32.totalorder %s630, %s646
      %p648 = scmp.eq.s32.totalorder %s46, 0
      %p649 = por %p647, %p648
      %s650 = ssub.s32 %s40, %s47
      %p651 = scmp.eq.s32.totalorder %s650, 0
      %s653 = sadd.s32 %s652, 1
      %s654 = scalar_select %p651, %s652, %s653
      %p657 = pneg %p651
      %p658 = scmp.eq.s32.totalorder %s40, 1
      %p659 = por %p657, %p658
      %p660 = scmp.ne.s32.totalorder %s652, %s655
      %p661 = scmp.eq.s32.totalorder %s40, 0
      %p662 = por %p660, %p661
      %p663 = scmp.ne.s32.totalorder %s652, %s655
      %p664 = scmp.eq.s32.totalorder %s45, 1
      %p665 = por %p663, %p664
      %p666 = scmp.ne.s32.totalorder %s655, %s656
      %p667 = scmp.eq.s32.totalorder %s45, 0
      %p668 = por %p666, %p667
      %p669 = scmp.ne.s32.totalorder %s655, %s656
      %p670 = scmp.eq.s32.totalorder %s46, 1
      %p671 = por %p669, %p670
      %p673 = scmp.ne.s32.totalorder %s656, %s672
      %p674 = scmp.eq.s32.totalorder %s46, 0
      %p675 = por %p673, %p674
      %p676 = scmp.le.s32.totalorder 1, %s40
      %p677 = scmp.lt.s32.totalorder %s40, 3
      %p678 = pnand %p676, %p677
      %p679 = pneg %p678
      // Predicated region
      $region9: #{decoder_layer.1} parent=5 // pred_check
        _
      $region10: #{decoder_layer.1} parent=5 // pred_check_branch
        %681 = sbr.rel (%p678) target = $region12
      $region11: #{decoder_layer.1} parent=5 // pred_region
        %s682 = ssub.s32 %s40, 1
        // Predicated region
        $region13: #{decoder_layer.1} parent=11 // pred_check
          %p683 = pneg %p191
        $region14: #{decoder_layer.1} parent=11 // pred_check_branch
          %685 = sbr.rel (%p683) target = $region16
        $region15: #{decoder_layer.1} parent=11 // pred_region
          _
        $region16: #{decoder_layer.1} parent=11 // pred_fallthru
          _
        // Predicated region
        $region17: #{decoder_layer.1} parent=11 // pred_check
          %p686 = pneg %p212
        $region18: #{decoder_layer.1} parent=11 // pred_check_branch
          %688 = sbr.rel (%p686) target = $region20
        $region19: #{decoder_layer.1} parent=11 // pred_region
          _
        $region20: #{decoder_layer.1} parent=11 // pred_fallthru
          _
        // Predicated region
        $region21: #{decoder_layer.1} parent=11 // pred_check
          %p689 = pneg %p233
        $region22: #{decoder_layer.1} parent=11 // pred_check_branch
          %691 = sbr.rel (%p689) target = $region24
        $region23: #{decoder_layer.1} parent=11 // pred_region
          _
        $region24: #{decoder_layer.1} parent=11 // pred_fallthru
          _
        // Predicated region
        $region25: #{decoder_layer.1} parent=11 // pred_check
          %p692 = pneg %p254
        $region26: #{decoder_layer.1} parent=11 // pred_check_branch
          %694 = sbr.rel (%p692) target = $region28
        $region27: #{decoder_layer.1} parent=11 // pred_region
          _
        $region28: #{decoder_layer.1} parent=11 // pred_fallthru
          _
        // Predicated region
        $region29: #{decoder_layer.1} parent=11 // pred_check
          %p695 = pneg %p275
        $region30: #{decoder_layer.1} parent=11 // pred_check_branch
          %697 = sbr.rel (%p695) target = $region32
        $region31: #{decoder_layer.1} parent=11 // pred_region
          _
        $region32: #{decoder_layer.1} parent=11 // pred_fallthru
          _
        // Predicated region
        $region33: #{decoder_layer.1} parent=11 // pred_check
          %p698 = pneg %p296
        $region34: #{decoder_layer.1} parent=11 // pred_check_branch
          %700 = sbr.rel (%p698) target = $region36
        $region35: #{decoder_layer.1} parent=11 // pred_region
          _
        $region36: #{decoder_layer.1} parent=11 // pred_fallthru
          _
        // Predicated region
        $region37: #{decoder_layer.1} parent=11 // pred_check
          %p701 = pneg %p317
        $region38: #{decoder_layer.1} parent=11 // pred_check_branch
          %703 = sbr.rel (%p701) target = $region40
        $region39: #{decoder_layer.1} parent=11 // pred_region
          _
        $region40: #{decoder_layer.1} parent=11 // pred_fallthru
          _
        // Predicated region
        $region41: #{decoder_layer.1} parent=11 // pred_check
          %p704 = pneg %p338
        $region42: #{decoder_layer.1} parent=11 // pred_check_branch
          %706 = sbr.rel (%p704) target = $region44
        $region43: #{decoder_layer.1} parent=11 // pred_region
          _
        $region44: #{decoder_layer.1} parent=11 // pred_fallthru
          _
        // Predicated region
        $region45: #{decoder_layer.1} parent=11 // pred_check
          %p707 = pneg %p359
        $region46: #{decoder_layer.1} parent=11 // pred_check_branch
          %709 = sbr.rel (%p707) target = $region48
        $region47: #{decoder_layer.1} parent=11 // pred_region
          _
        $region48: #{decoder_layer.1} parent=11 // pred_fallthru
          _
        // Predicated region
        $region49: #{decoder_layer.1} parent=11 // pred_check
          %p710 = pneg %p380
        $region50: #{decoder_layer.1} parent=11 // pred_check_branch
          %712 = sbr.rel (%p710) target = $region52
        $region51: #{decoder_layer.1} parent=11 // pred_region
          _
        $region52: #{decoder_layer.1} parent=11 // pred_fallthru
          _
        // Predicated region
        $region53: #{decoder_layer.1} parent=11 // pred_check
          %p713 = pneg %p401
        $region54: #{decoder_layer.1} parent=11 // pred_check_branch
          %715 = sbr.rel (%p713) target = $region56
        $region55: #{decoder_layer.1} parent=11 // pred_region
          _
        $region56: #{decoder_layer.1} parent=11 // pred_fallthru
          _
        // Predicated region
        $region57: #{decoder_layer.1} parent=11 // pred_check
          %p716 = pneg %p422
        $region58: #{decoder_layer.1} parent=11 // pred_check_branch
          %718 = sbr.rel (%p716) target = $region60
        $region59: #{decoder_layer.1} parent=11 // pred_region
          _
        $region60: #{decoder_layer.1} parent=11 // pred_fallthru
          _
        // Predicated region
        $region61: #{decoder_layer.1} parent=11 // pred_check
          %p719 = pneg %p443
        $region62: #{decoder_layer.1} parent=11 // pred_check_branch
          %721 = sbr.rel (%p719) target = $region64
        $region63: #{decoder_layer.1} parent=11 // pred_region
          _
        $region64: #{decoder_layer.1} parent=11 // pred_fallthru
          _
        // Predicated region
        $region65: #{decoder_layer.1} parent=11 // pred_check
          %p722 = pneg %p464
        $region66: #{decoder_layer.1} parent=11 // pred_check_branch
          %724 = sbr.rel (%p722) target = $region68
        $region67: #{decoder_layer.1} parent=11 // pred_region
          _
        $region68: #{decoder_layer.1} parent=11 // pred_fallthru
          _
        // Predicated region
        $region69: #{decoder_layer.1} parent=11 // pred_check
          %p725 = pneg %p485
        $region70: #{decoder_layer.1} parent=11 // pred_check_branch
          %727 = sbr.rel (%p725) target = $region72
        $region71: #{decoder_layer.1} parent=11 // pred_region
          _
        $region72: #{decoder_layer.1} parent=11 // pred_fallthru
          _
        // Predicated region
        $region73: #{decoder_layer.1} parent=11 // pred_check
          %p728 = pneg %p506
        $region74: #{decoder_layer.1} parent=11 // pred_check_branch
          %730 = sbr.rel (%p728) target = $region76
        $region75: #{decoder_layer.1} parent=11 // pred_region
          _
        $region76: #{decoder_layer.1} parent=11 // pred_fallthru
          _
        // Predicated region
        $region77: #{decoder_layer.1} parent=11 // pred_check
          %p731 = pneg %p527
        $region78: #{decoder_layer.1} parent=11 // pred_check_branch
          %733 = sbr.rel (%p731) target = $region80
        $region79: #{decoder_layer.1} parent=11 // pred_region
          _
        $region80: #{decoder_layer.1} parent=11 // pred_fallthru
          _
        // Predicated region
        $region81: #{decoder_layer.1} parent=11 // pred_check
          %p734 = pneg %p548
        $region82: #{decoder_layer.1} parent=11 // pred_check_branch
          %736 = sbr.rel (%p734) target = $region84
        $region83: #{decoder_layer.1} parent=11 // pred_region
          _
        $region84: #{decoder_layer.1} parent=11 // pred_fallthru
          _
        // Predicated region
        $region85: #{decoder_layer.1} parent=11 // pred_check
          %p737 = pneg %p569
        $region86: #{decoder_layer.1} parent=11 // pred_check_branch
          %739 = sbr.rel (%p737) target = $region88
        $region87: #{decoder_layer.1} parent=11 // pred_region
          _
        $region88: #{decoder_layer.1} parent=11 // pred_fallthru
          _
        // Predicated region
        $region89: #{decoder_layer.1} parent=11 // pred_check
          %p740 = pneg %p590
        $region90: #{decoder_layer.1} parent=11 // pred_check_branch
          %742 = sbr.rel (%p740) target = $region92
        $region91: #{decoder_layer.1} parent=11 // pred_region
          _
        $region92: #{decoder_layer.1} parent=11 // pred_fallthru
          _
      $region12: #{decoder_layer.1} parent=5 // pred_fallthru
        _
      %p743 = scmp.lt.s32.totalorder %s40, 2
      // Predicated region
      $region93: #{decoder_layer.1} parent=5 // pred_check
        %p744 = pneg %p743
      $region94: #{decoder_layer.1} parent=5 // pred_check_branch
        %746 = sbr.rel (%p744) target = $region96
      $region95: #{decoder_layer.1} parent=5 // pred_region
        // Predicated region
        $region97: #{decoder_layer.1} parent=95 // pred_check
          %p747 = pneg %p60
        $region98: #{decoder_layer.1} parent=95 // pred_check_branch
          %749 = sbr.rel (%p747) target = $region100
        $region99: #{decoder_layer.1} parent=95 // pred_region
          %p750 = scmp.lt.s32.totalorder %s40, 1
          %s751 = scalar_select %p750, %s40, 1
          %s752 = smul.addr %s751, 8
          %s753 = scalar_lea.vmem %s0, %s752
        $region100: #{decoder_layer.1} parent=95 // pred_fallthru
          _
        // Predicated region
        $region101: #{decoder_layer.1} parent=95 // pred_check
          %p754 = pneg %p86
        $region102: #{decoder_layer.1} parent=95 // pred_check_branch
          %756 = sbr.rel (%p754) target = $region104
        $region103: #{decoder_layer.1} parent=95 // pred_region
          %p757 = scmp.lt.s32.totalorder %s40, 1
          %s758 = scalar_select %p757, %s40, 1
          %s759 = smul.addr %s758, 2
          %s760 = smul.addr %s759, 8
          %s761 = scalar_lea.vmem %s1, %s760
        $region104: #{decoder_layer.1} parent=95 // pred_fallthru
          _
        // Predicated region
        $region105: #{decoder_layer.1} parent=95 // pred_check
          %p762 = pneg %p112
        $region106: #{decoder_layer.1} parent=95 // pred_check_branch
          %764 = sbr.rel (%p762) target = $region108
        $region107: #{decoder_layer.1} parent=95 // pred_region
          %p765 = scmp.lt.s32.totalorder %s40, 1
          %s766 = scalar_select %p765, %s40, 1
          %s767 = smul.addr %s766, 8
          %s768 = scalar_lea.vmem %s2, %s767
        $region108: #{decoder_layer.1} parent=95 // pred_fallthru
          _
        // Predicated region
        $region109: #{decoder_layer.1} parent=95 // pred_check
          %p769 = pneg %p138
        $region110: #{decoder_layer.1} parent=95 // pred_check_branch
          %771 = sbr.rel (%p769) target = $region112
        $region111: #{decoder_layer.1} parent=95 // pred_region
          %p772 = scmp.lt.s32.totalorder %s40, 1
          %s773 = scalar_select %p772, %s40, 1
          %s774 = smul.addr %s773, 8
          %s775 = scalar_lea.vmem %s3, %s774
        $region112: #{decoder_layer.1} parent=95 // pred_fallthru
          _
        // Predicated region
        $region113: #{decoder_layer.1} parent=95 // pred_check
          %p776 = pneg %p164
        $region114: #{decoder_layer.1} parent=95 // pred_check_branch
          %778 = sbr.rel (%p776) target = $region116
        $region115: #{decoder_layer.1} parent=95 // pred_region
          %p779 = scmp.lt.s32.totalorder %s40, 1
          %s780 = scalar_select %p779, %s40, 1
          %s781 = smul.addr %s780, 8
          %s782 = scalar_lea.vmem %s4, %s781
        $region116: #{decoder_layer.1} parent=95 // pred_fallthru
          _
      $region96: #{decoder_layer.1} parent=5 // pred_fallthru
        _
      %p783 = scmp.le.s32.totalorder 1, %s40
      %p784 = scmp.lt.s32.totalorder %s40, 3
      %p785 = pnand %p783, %p784
      %p786 = pneg %p785
      // Predicated region
      $region117: #{decoder_layer.1} parent=5 // pred_check
        _
      $region118: #{decoder_layer.1} parent=5 // pred_check_branch
        %788 = sbr.rel (%p785) target = $region120
      $region119: #{decoder_layer.1} parent=5 // pred_region
        %s789 = ssub.s32 %s40, 1
        %p790 = scmp.lt.s32.totalorder %s45, 1
        %s791 = scalar_select %p790, %s45, 1
        %s792 = smul.addr %s791, 8
        %s793 = scalar_lea.vmem %s0, %s792
        %p794 = pneg %p66
        %p795 = pneg %p63
        %p796 = scmp.lt.s32.totalorder %s45, 1
        %s797 = scalar_select %p796, %s45, 1
        %s798 = smul.addr %s797, 2
        %s799 = smul.addr %s798, 8
        %s800 = scalar_lea.vmem %s1, %s799
        %p801 = pneg %p92
        %p802 = pneg %p89
        %p803 = scmp.lt.s32.totalorder %s45, 1
        %s804 = scalar_select %p803, %s45, 1
        %s805 = smul.addr %s804, 8
        %s806 = scalar_lea.vmem %s2, %s805
        %p807 = pneg %p118
        %p808 = pneg %p115
        %p809 = scmp.lt.s32.totalorder %s45, 1
        %s810 = scalar_select %p809, %s45, 1
        %s811 = smul.addr %s810, 8
        %s812 = scalar_lea.vmem %s3, %s811
        %p813 = pneg %p144
        %p814 = pneg %p141
        %p815 = scmp.lt.s32.totalorder %s45, 1
        %s816 = scalar_select %p815, %s45, 1
        %s817 = smul.addr %s816, 8
        %s818 = scalar_lea.vmem %s4, %s817
        %p819 = pneg %p170
        %p820 = pneg %p167
        %p821 = pneg %p191
        %p822 = pneg %p188
        %p823 = pneg %p212
        %p824 = pneg %p209
        %p825 = pneg %p233
        %p826 = pneg %p230
        %p827 = pneg %p254
        %p828 = pneg %p251
        %p829 = pneg %p275
        %p830 = pneg %p272
        %p831 = pneg %p296
        %p832 = pneg %p293
        %p833 = pneg %p317
        %p834 = pneg %p314
        %p835 = pneg %p338
        %p836 = pneg %p335
        %p837 = pneg %p359
        %p838 = pneg %p356
        %p839 = pneg %p380
        %p840 = pneg %p377
        %p841 = pneg %p401
        %p842 = pneg %p398
        %p843 = pneg %p422
        %p844 = pneg %p419
        %p845 = pneg %p443
        %p846 = pneg %p440
        %p847 = pneg %p464
        %p848 = pneg %p461
        %p849 = pneg %p485
        %p850 = pneg %p482
        %p851 = pneg %p506
        %p852 = pneg %p503
        %p853 = pneg %p527
        %p854 = pneg %p524
        %p855 = pneg %p548
        %p856 = pneg %p545
        %p857 = pneg %p569
        %p858 = pneg %p566
        %p859 = pneg %p590
        %p860 = pneg %p587
        %p861 = pneg %p616
        %p862 = pneg %p613
        %s863 = sand.u32 %s603, 1
        %s864 = scalar_lea.sflag [#allocation3], %s863
        %s865 = sand.u32 %s603, 1
        %s866 = smul.addr %s865, 8
        %s867 = scalar_lea.vmem [#allocation2], %s866
        %p868 = pneg %p642
        %p869 = pneg %p639
        %s870 = sand.u32 %s45, 1
        %s871 = scalar_lea.sflag [#allocation5], %s870
        %s872 = sand.u32 %s629, 1
        %s873 = smul.addr %s872, 32
        %s874 = scalar_lea.vmem [#allocation4], %s873
        %p875 = pneg %p668
        %p876 = pneg %p665
        %s877 = sand.u32 %s45, 1
        %s878 = scalar_lea.sflag [#allocation5], %s877
        %s879 = sand.u32 %s655, 1
        %s880 = smul.addr %s879, 32
        %s881 = scalar_lea.vmem [#allocation6], %s880
        %p882 = scmp.lt.s32.totalorder %s45, 1
        %s883 = scalar_select %p882, %s45, 1
        %s884 = smul.addr %s883, 8
        %s885 = scalar_lea.vmem %s0, %s884
        %p886 = scmp.lt.s32.totalorder %s45, 1
        %s887 = scalar_select %p886, %s45, 1
        %s888 = smul.addr %s887, 2
        %s889 = smul.addr %s888, 8
        %s890 = scalar_lea.vmem %s1, %s889
        %p891 = scmp.lt.s32.totalorder %s45, 1
        %s892 = scalar_select %p891, %s45, 1
        %s893 = smul.addr %s892, 8
        %s894 = scalar_lea.vmem %s2, %s893
        %p895 = scmp.lt.s32.totalorder %s45, 1
        %s896 = scalar_select %p895, %s45, 1
        %s897 = smul.addr %s896, 8
        %s898 = scalar_lea.vmem %s3, %s897
        %p899 = scmp.lt.s32.totalorder %s45, 1
        %s900 = scalar_select %p899, %s45, 1
        %s901 = smul.addr %s900, 8
        %s902 = scalar_lea.vmem %s4, %s901
        %v903 = vld [vmem:[%s902] sm:$0xff]
        %v904 = vld [vmem:[%s885] sm:$0xff]
        %v905 = vld [vmem:[%s890] sm:$0xff]
        %v906 = vld [vmem:[%s890 + $0x8] sm:$0xff]
        %v907 = vld [vmem:[%s5] sm:$0xff]
        %v908 = vld [vmem:[%s5 + $0x8] sm:$0xff]
        %v909 = vld [vmem:[%s5 + $0x10] sm:$0xff]
        %v910 = vld [vmem:[%s5 + $0x18] sm:$0xff]
        %v911 = vld [vmem:[%s6] sm:$0x1]
        %v913 = vlaneseq
        %v914 = vshrl.u32 %v913, 7
        %v915 = vsub.s32 0, %v914
        %v916 = vrot.slane %v911, %v915
        %vm918 = vcmask 261120
        %v920 = vsel %vm918, %v904, 0
        %922 = vmatprep.subr.mxu0 0.0
        %923 = vmatpush1.msra.mxu0 %v907
        %924 = vmatprep.subr.mxu0 0.0
        %925 = vmatpush1.msra.mxu0 %v908
        %926 = vmatprep.subr.mxu0 0.0
        %927 = vmatpush1.msra.mxu0 %v909
        %928 = vmatprep.subr.mxu0 0.0
        %929 = vmatpush1.msra.mxu0 %v910
        %930 = vmatprep.subr.mxu0 0.0
        %931 = vmatpush1.msra.mxu0 0.0
        %932 = vmatprep.subr.mxu0 0.0
        %933 = vmatpush1.msra.mxu0 0.0
        %934 = vmatprep.subr.mxu0 0.0
        %935 = vmatpush1.msra.mxu0 0.0
        %936 = vmatprep.subr.mxu0 0.0
        %937 = vmatpush1.msra.mxu0 0.0
        %938 = vmatprep.subr.mxu0 0.0
        %939 = vmatpush1.msra.mxu0 0.0
        %940 = vmatprep.subr.mxu0 0.0
        %941 = vmatpush1.msra.mxu0 0.0
        %942 = vmatprep.subr.mxu0 0.0
        %943 = vmatpush1.msra.mxu0 0.0
        %944 = vmatprep.subr.mxu0 0.0
        %945 = vmatpush1.msra.mxu0 0.0
        %946 = vmatprep.subr.mxu0 0.0
        %947 = vmatpush1.msra.mxu0 0.0
        %948 = vmatprep.subr.mxu0 0.0
        %949 = vmatpush1.msra.mxu0 0.0
        %950 = vmatprep.subr.mxu0 0.0
        %951 = vmatpush1.msra.mxu0 0.0
        %952 = vmatprep.subr.mxu0 0.0
        %953 = vmatpush1.msra.mxu0 0.0
        %954 = vmatprep.subr.mxu0 0.0
        %955 = vmatpush1.msra.mxu0 0.0
        %956 = vmatprep.subr.mxu0 0.0
        %957 = vmatpush1.msra.mxu0 0.0
        %958 = vmatprep.subr.mxu0 0.0
        %959 = vmatpush1.msra.mxu0 0.0
        %960 = vmatprep.subr.mxu0 0.0
        %961 = vmatpush1.msra.mxu0 0.0
        %962 = vmatprep.subr.mxu0 0.0
        %963 = vmatpush1.msra.mxu0 0.0
        %964 = vmatprep.subr.mxu0 0.0
        %965 = vmatpush1.msra.mxu0 0.0
        %966 = vmatprep.subr.mxu0 0.0
        %967 = vmatpush1.msra.mxu0 0.0
        %968 = vmatprep.subr.mxu0 0.0
        %969 = vmatpush1.msra.mxu0 0.0
        %970 = vmatprep.subr.mxu0 0.0
        %971 = vmatpush1.msra.mxu0 0.0
        %972 = vmatprep.subr.mxu0 0.0
        %973 = vmatpush1.msra.mxu0 0.0
        %974 = vmatprep.subr.mxu0 0.0
        %975 = vmatpush1.msra.mxu0 0.0
        %976 = vmatprep.subr.mxu0 0.0
        %977 = vmatpush1.msra.mxu0 0.0
        %978 = vmatprep.subr.mxu0 0.0
        %979 = vmatpush1.msra.mxu0 0.0
        %980 = vmatprep.subr.mxu0 0.0
        %981 = vmatpush1.msra.mxu0 0.0
        %982 = vmatprep.subr.mxu0 0.0
        %983 = vmatpush1.msra.mxu0 0.0
        %984 = vmatprep.subr.mxu0 0.0
        %985 = vmatpush1.msra.mxu0 0.0
        %986 = vmatprep.mubr.f32.mxu0 0.0
        %987 = vmatmul.mubr.f32.gmra.mrb[0].mxu0 %v920
        %v988 = vpop.f32.mrb[0].mxu0
        %v989 = vadd.f32 %v916, %v988
        %v990 = vpop.f32.mrb[0].mxu0
        %991 = vdwg.mxu0
        %v992 = vmul.f32 %v989, 0.35355338
        %v993 = vld [vmem:[%s894] sm:$0xff]
        %v994 = vld [vmem:[%s7] sm:$0xff]
        %v995 = vld [vmem:[%s7 + $0x8] sm:$0xff]
        %v996 = vld [vmem:[%s7 + $0x10] sm:$0xff]
        %v997 = vld [vmem:[%s7 + $0x18] sm:$0xff]
        %v998 = vld [vmem:[%s8] sm:$0x1]
        %v999 = vld [vmem:[%s9] sm:$0x1]
        %v1000 = vld [vmem:[%s10] sm:$0x1]
        %1002 = vrot.lane.b32.xlu0 %v992, 120
        %v1003 = vpop.permute.xlu0 %1002
        %1004 = vrot.lane.b32.xlu0 %v992, 112
        %v1005 = vpop.permute.xlu0 %1004
        %1006 = vrot.lane.b32.xlu0 %v992, 104
        %v1007 = vpop.permute.xlu0 %1006
        %1009 = vrot.lane.b32.xlu0 %v989, 120
        %v1010 = vpop.permute.xlu0 %1009
        %1011 = vrot.lane.b32.xlu0 %v989, 112
        %v1012 = vpop.permute.xlu0 %1011
        %1013 = vrot.lane.b32.xlu0 %v989, 104
        %v1014 = vpop.permute.xlu0 %1013
        %v1015 = vmul.f32 %v993, -1e+30
        %1016 = vrot.lane.b32.xlu0 %v989, 96
        %v1017 = vpop.permute.xlu0 %1016
        %vm1018 = vcmask 64512
        %v1019 = vsel %vm1018, %v992, 0
        %v1021 = vsel %vm1018, %v1017, 0
        %1023 = vmatprep.subr.mxu0 0.0
        %1024 = vmatpush1.xpose.msra.mxu0 %v1021
        %1025 = vmatprep.subr.mxu0 0.0
        %1026 = vmatpush1.xpose.msra.mxu0 0.0
        %1027 = vmatprep.subr.mxu0 0.0
        %1028 = vmatpush1.xpose.msra.mxu0 0.0
        %1029 = vmatprep.subr.mxu0 0.0
        %1030 = vmatpush1.xpose.msra.mxu0 0.0
        %1031 = vmatprep.subr.mxu0 0.0
        %1032 = vmatpush1.xpose.msra.mxu0 0.0
        %1033 = vmatprep.subr.mxu0 0.0
        %1034 = vmatpush1.xpose.msra.mxu0 0.0
        %1035 = vmatprep.subr.mxu0 0.0
        %1036 = vmatpush1.xpose.msra.mxu0 0.0
        %1037 = vmatprep.subr.mxu0 0.0
        %1038 = vmatpush1.xpose.msra.mxu0 0.0
        %1039 = vmatprep.subr.mxu0 0.0
        %1040 = vmatpush1.xpose.msra.mxu0 0.0
        %1041 = vmatprep.subr.mxu0 0.0
        %1042 = vmatpush1.xpose.msra.mxu0 0.0
        %1043 = vmatprep.subr.mxu0 0.0
        %1044 = vmatpush1.xpose.msra.mxu0 0.0
        %1045 = vmatprep.subr.mxu0 0.0
        %1046 = vmatpush1.xpose.msra.mxu0 0.0
        %1047 = vmatprep.subr.mxu0 0.0
        %1048 = vmatpush1.xpose.msra.mxu0 0.0
        %1049 = vmatprep.subr.mxu0 0.0
        %1050 = vmatpush1.xpose.msra.mxu0 0.0
        %1051 = vmatprep.subr.mxu0 0.0
        %1052 = vmatpush1.xpose.msra.mxu0 0.0
        %1053 = vmatprep.subr.mxu0 0.0
        %1054 = vmatpush1.xpose.msra.mxu0 0.0
        %1055 = vmatprep.subr.mxu0 0.0
        %1056 = vmatpush1.xpose.msra.mxu0 0.0
        %1057 = vmatprep.subr.mxu0 0.0
        %1058 = vmatpush1.xpose.msra.mxu0 0.0
        %1059 = vmatprep.subr.mxu0 0.0
        %1060 = vmatpush1.xpose.msra.mxu0 0.0
        %1061 = vmatprep.subr.mxu0 0.0
        %1062 = vmatpush1.xpose.msra.mxu0 0.0
        %1063 = vmatprep.subr.mxu0 0.0
        %1064 = vmatpush1.xpose.msra.mxu0 0.0
        %1065 = vmatprep.subr.mxu0 0.0
        %1066 = vmatpush1.xpose.msra.mxu0 0.0
        %1067 = vmatprep.subr.mxu0 0.0
        %1068 = vmatpush1.xpose.msra.mxu0 0.0
        %1069 = vmatprep.subr.mxu0 0.0
        %1070 = vmatpush1.xpose.msra.mxu0 0.0
        %1071 = vmatprep.subr.mxu0 0.0
        %1072 = vmatpush1.xpose.msra.mxu0 0.0
        %1073 = vmatprep.subr.mxu0 0.0
        %1074 = vmatpush1.xpose.msra.mxu0 0.0
        %1075 = vmatprep.subr.mxu0 0.0
        %1076 = vmatpush1.xpose.msra.mxu0 0.0
        %1077 = vmatprep.subr.mxu0 0.0
        %1078 = vmatpush1.xpose.msra.mxu0 0.0
        %1079 = vmatprep.subr.mxu0 0.0
        %1080 = vmatpush1.xpose.msra.mxu0 0.0
        %1081 = vmatprep.subr.mxu0 0.0
        %1082 = vmatpush1.xpose.msra.mxu0 0.0
        %1083 = vmatprep.subr.mxu0 0.0
        %1084 = vmatpush1.xpose.msra.mxu0 0.0
        %1085 = vmatprep.subr.mxu0 0.0
        %1086 = vmatpush1.xpose.msra.mxu0 0.0
        %1087 = vmatprep.mubr.f32.mxu0 0.0
        %1088 = vmatmul.mubr.f32.gmra.mrb[0].mxu0 %v1019
        %v1089 = vpop.f32.mrb[0].mxu0
        %v1090 = vadd.f32 %v1015, %v1089
        %v1091 = vpop.f32.mrb[0].mxu0
        %1092 = vdwg.mxu0
        %1093 = vrot.lane.b32.xlu0 %v1010, 96
        %v1094 = vpop.permute.xlu0 %1093
        %v1095 = vsel %vm1018, %v1003, 0
        %v1097 = vsel %vm1018, %v1094, 0
        %1099 = vmatprep.subr.mxu0 0.0
        %1100 = vmatpush1.xpose.msra.mxu0 %v1097
        %1101 = vmatprep.subr.mxu0 0.0
        %1102 = vmatpush1.xpose.msra.mxu0 0.0
        %1103 = vmatprep.subr.mxu0 0.0
        %1104 = vmatpush1.xpose.msra.mxu0 0.0
        %1105 = vmatprep.subr.mxu0 0.0
        %1106 = vmatpush1.xpose.msra.mxu0 0.0
        %1107 = vmatprep.subr.mxu0 0.0
        %1108 = vmatpush1.xpose.msra.mxu0 0.0
        %1109 = vmatprep.subr.mxu0 0.0
        %1110 = vmatpush1.xpose.msra.mxu0 0.0
        %1111 = vmatprep.subr.mxu0 0.0
        %1112 = vmatpush1.xpose.msra.mxu0 0.0
        %1113 = vmatprep.subr.mxu0 0.0
        %1114 = vmatpush1.xpose.msra.mxu0 0.0
        %1115 = vmatprep.subr.mxu0 0.0
        %1116 = vmatpush1.xpose.msra.mxu0 0.0
        %1117 = vmatprep.subr.mxu0 0.0
        %1118 = vmatpush1.xpose.msra.mxu0 0.0
        %1119 = vmatprep.subr.mxu0 0.0
        %1120 = vmatpush1.xpose.msra.mxu0 0.0
        %1121 = vmatprep.subr.mxu0 0.0
        %1122 = vmatpush1.xpose.msra.mxu0 0.0
        %1123 = vmatprep.subr.mxu0 0.0
        %1124 = vmatpush1.xpose.msra.mxu0 0.0
        %1125 = vmatprep.subr.mxu0 0.0
        %1126 = vmatpush1.xpose.msra.mxu0 0.0
        %1127 = vmatprep.subr.mxu0 0.0
        %1128 = vmatpush1.xpose.msra.mxu0 0.0
        %1129 = vmatprep.subr.mxu0 0.0
        %1130 = vmatpush1.xpose.msra.mxu0 0.0
        %1131 = vmatprep.subr.mxu0 0.0
        %1132 = vmatpush1.xpose.msra.mxu0 0.0
        %1133 = vmatprep.subr.mxu0 0.0
        %1134 = vmatpush1.xpose.msra.mxu0 0.0
        %1135 = vmatprep.subr.mxu0 0.0
        %1136 = vmatpush1.xpose.msra.mxu0 0.0
        %1137 = vmatprep.subr.mxu0 0.0
        %1138 = vmatpush1.xpose.msra.mxu0 0.0
        %1139 = vmatprep.subr.mxu0 0.0
        %1140 = vmatpush1.xpose.msra.mxu0 0.0
        %1141 = vmatprep.subr.mxu0 0.0
        %1142 = vmatpush1.xpose.msra.mxu0 0.0
        %1143 = vmatprep.subr.mxu0 0.0
        %1144 = vmatpush1.xpose.msra.mxu0 0.0
        %1145 = vmatprep.subr.mxu0 0.0
        %1146 = vmatpush1.xpose.msra.mxu0 0.0
        %1147 = vmatprep.subr.mxu0 0.0
        %1148 = vmatpush1.xpose.msra.mxu0 0.0
        %1149 = vmatprep.subr.mxu0 0.0
        %1150 = vmatpush1.xpose.msra.mxu0 0.0
        %1151 = vmatprep.subr.mxu0 0.0
        %1152 = vmatpush1.xpose.msra.mxu0 0.0
        %1153 = vmatprep.subr.mxu0 0.0
        %1154 = vmatpush1.xpose.msra.mxu0 0.0
        %1155 = vmatprep.subr.mxu0 0.0
        %1156 = vmatpush1.xpose.msra.mxu0 0.0
        %1157 = vmatprep.subr.mxu0 0.0
        %1158 = vmatpush1.xpose.msra.mxu0 0.0
        %1159 = vmatprep.subr.mxu0 0.0
        %1160 = vmatpush1.xpose.msra.mxu0 0.0
        %1161 = vmatprep.subr.mxu0 0.0
        %1162 = vmatpush1.xpose.msra.mxu0 0.0
        %1163 = vmatprep.mubr.f32.mxu0 0.0
        %1164 = vmatmul.mubr.f32.gmra.mrb[0].mxu0 %v1095
        %v1165 = vpop.f32.mrb[0].mxu0
        %v1166 = vadd.f32 %v1015, %v1165
        %v1167 = vpop.f32.mrb[0].mxu0
        %1168 = vdwg.mxu0
        %1169 = vrot.lane.b32.xlu0 %v1012, 96
        %v1170 = vpop.permute.xlu0 %1169
        %v1171 = vsel %vm1018, %v1005, 0
        %v1173 = vsel %vm1018, %v1170, 0
        %1175 = vmatprep.subr.mxu0 0.0
        %1176 = vmatpush1.xpose.msra.mxu0 %v1173
        %1177 = vmatprep.subr.mxu0 0.0
        %1178 = vmatpush1.xpose.msra.mxu0 0.0
        %1179 = vmatprep.subr.mxu0 0.0
        %1180 = vmatpush1.xpose.msra.mxu0 0.0
        %1181 = vmatprep.subr.mxu0 0.0
        %1182 = vmatpush1.xpose.msra.mxu0 0.0
        %1183 = vmatprep.subr.mxu0 0.0
        %1184 = vmatpush1.xpose.msra.mxu0 0.0
        %1185 = vmatprep.subr.mxu0 0.0
        %1186 = vmatpush1.xpose.msra.mxu0 0.0
        %1187 = vmatprep.subr.mxu0 0.0
        %1188 = vmatpush1.xpose.msra.mxu0 0.0
        %1189 = vmatprep.subr.mxu0 0.0
        %1190 = vmatpush1.xpose.msra.mxu0 0.0
        %1191 = vmatprep.subr.mxu0 0.0
        %1192 = vmatpush1.xpose.msra.mxu0 0.0
        %1193 = vmatprep.subr.mxu0 0.0
        %1194 = vmatpush1.xpose.msra.mxu0 0.0
        %1195 = vmatprep.subr.mxu0 0.0
        %1196 = vmatpush1.xpose.msra.mxu0 0.0
        %1197 = vmatprep.subr.mxu0 0.0
        %1198 = vmatpush1.xpose.msra.mxu0 0.0
        %1199 = vmatprep.subr.mxu0 0.0
        %1200 = vmatpush1.xpose.msra.mxu0 0.0
        %1201 = vmatprep.subr.mxu0 0.0
        %1202 = vmatpush1.xpose.msra.mxu0 0.0
        %1203 = vmatprep.subr.mxu0 0.0
        %1204 = vmatpush1.xpose.msra.mxu0 0.0
        %1205 = vmatprep.subr.mxu0 0.0
        %1206 = vmatpush1.xpose.msra.mxu0 0.0
        %1207 = vmatprep.subr.mxu0 0.0
        %1208 = vmatpush1.xpose.msra.mxu0 0.0
        %1209 = vmatprep.subr.mxu0 0.0
        %1210 = vmatpush1.xpose.msra.mxu0 0.0
        %1211 = vmatprep.subr.mxu0 0.0
        %1212 = vmatpush1.xpose.msra.mxu0 0.0
        %1213 = vmatprep.subr.mxu0 0.0
        %1214 = vmatpush1.xpose.msra.mxu0 0.0
        %1215 = vmatprep.subr.mxu0 0.0
        %1216 = vmatpush1.xpose.msra.mxu0 0.0
        %1217 = vmatprep.subr.mxu0 0.0
        %1218 = vmatpush1.xpose.msra.mxu0 0.0
        %1219 = vmatprep.subr.mxu0 0.0
        %1220 = vmatpush1.xpose.msra.mxu0 0.0
        %1221 = vmatprep.subr.mxu0 0.0
        %1222 = vmatpush1.xpose.msra.mxu0 0.0
        %1223 = vmatprep.subr.mxu0 0.0
        %1224 = vmatpush1.xpose.msra.mxu0 0.0
        %1225 = vmatprep.subr.mxu0 0.0
        %1226 = vmatpush1.xpose.msra.mxu0 0.0
        %1227 = vmatprep.subr.mxu0 0.0
        %1228 = vmatpush1.xpose.msra.mxu0 0.0
        %1229 = vmatprep.subr.mxu0 0.0
        %1230 = vmatpush1.xpose.msra.mxu0 0.0
        %1231 = vmatprep.subr.mxu0 0.0
        %1232 = vmatpush1.xpose.msra.mxu0 0.0
        %1233 = vmatprep.subr.mxu0 0.0
        %1234 = vmatpush1.xpose.msra.mxu0 0.0
        %1235 = vmatprep.subr.mxu0 0.0
        %1236 = vmatpush1.xpose.msra.mxu0 0.0
        %1237 = vmatprep.subr.mxu0 0.0
        %1238 = vmatpush1.xpose.msra.mxu0 0.0
        %1239 = vmatprep.mubr.f32.mxu0 0.0
        %1240 = vmatmul.mubr.f32.gmra.mrb[0].mxu0 %v1171
        %v1241 = vpop.f32.mrb[0].mxu0
        %v1242 = vadd.f32 %v1015, %v1241
        %v1243 = vpop.f32.mrb[0].mxu0
        %1244 = vdwg.mxu0
        %1245 = vrot.lane.b32.xlu0 %v1014, 96
        %v1246 = vpop.permute.xlu0 %1245
        %v1247 = vsel %vm1018, %v1007, 0
        %v1249 = vsel %vm1018, %v1246, 0
        %1251 = vmatprep.subr.mxu0 0.0
        %1252 = vmatpush1.xpose.msra.mxu0 %v1249
        %1253 = vmatprep.subr.mxu0 0.0
        %1254 = vmatpush1.xpose.msra.mxu0 0.0
        %1255 = vmatprep.subr.mxu0 0.0
        %1256 = vmatpush1.xpose.msra.mxu0 0.0
        %1257 = vmatprep.subr.mxu0 0.0
        %1258 = vmatpush1.xpose.msra.mxu0 0.0
        %1259 = vmatprep.subr.mxu0 0.0
        %1260 = vmatpush1.xpose.msra.mxu0 0.0
        %1261 = vmatprep.subr.mxu0 0.0
        %1262 = vmatpush1.xpose.msra.mxu0 0.0
        %1263 = vmatprep.subr.mxu0 0.0
        %1264 = vmatpush1.xpose.msra.mxu0 0.0
        %1265 = vmatprep.subr.mxu0 0.0
        %1266 = vmatpush1.xpose.msra.mxu0 0.0
        %1267 = vmatprep.subr.mxu0 0.0
        %1268 = vmatpush1.xpose.msra.mxu0 0.0
        %1269 = vmatprep.subr.mxu0 0.0
        %1270 = vmatpush1.xpose.msra.mxu0 0.0
        %1271 = vmatprep.subr.mxu0 0.0
        %1272 = vmatpush1.xpose.msra.mxu0 0.0
        %1273 = vmatprep.subr.mxu0 0.0
        %1274 = vmatpush1.xpose.msra.mxu0 0.0
        %1275 = vmatprep.subr.mxu0 0.0
        %1276 = vmatpush1.xpose.msra.mxu0 0.0
        %1277 = vmatprep.subr.mxu0 0.0
        %1278 = vmatpush1.xpose.msra.mxu0 0.0
        %1279 = vmatprep.subr.mxu0 0.0
        %1280 = vmatpush1.xpose.msra.mxu0 0.0
        %1281 = vmatprep.subr.mxu0 0.0
        %1282 = vmatpush1.xpose.msra.mxu0 0.0
        %1283 = vmatprep.subr.mxu0 0.0
        %1284 = vmatpush1.xpose.msra.mxu0 0.0
        %1285 = vmatprep.subr.mxu0 0.0
        %1286 = vmatpush1.xpose.msra.mxu0 0.0
        %1287 = vmatprep.subr.mxu0 0.0
        %1288 = vmatpush1.xpose.msra.mxu0 0.0
        %1289 = vmatprep.subr.mxu0 0.0
        %1290 = vmatpush1.xpose.msra.mxu0 0.0
        %1291 = vmatprep.subr.mxu0 0.0
        %1292 = vmatpush1.xpose.msra.mxu0 0.0
        %1293 = vmatprep.subr.mxu0 0.0
        %1294 = vmatpush1.xpose.msra.mxu0 0.0
        %1295 = vmatprep.subr.mxu0 0.0
        %1296 = vmatpush1.xpose.msra.mxu0 0.0
        %1297 = vmatprep.subr.mxu0 0.0
        %1298 = vmatpush1.xpose.msra.mxu0 0.0
        %1299 = vmatprep.subr.mxu0 0.0
        %1300 = vmatpush1.xpose.msra.mxu0 0.0
        %1301 = vmatprep.subr.mxu0 0.0
        %1302 = vmatpush1.xpose.msra.mxu0 0.0
        %1303 = vmatprep.subr.mxu0 0.0
        %1304 = vmatpush1.xpose.msra.mxu0 0.0
        %1305 = vmatprep.subr.mxu0 0.0
        %1306 = vmatpush1.xpose.msra.mxu0 0.0
        %1307 = vmatprep.subr.mxu0 0.0
        %1308 = vmatpush1.xpose.msra.mxu0 0.0
        %1309 = vmatprep.subr.mxu0 0.0
        %1310 = vmatpush1.xpose.msra.mxu0 0.0
        %1311 = vmatprep.subr.mxu0 0.0
        %1312 = vmatpush1.xpose.msra.mxu0 0.0
        %1313 = vmatprep.subr.mxu0 0.0
        %1314 = vmatpush1.xpose.msra.mxu0 0.0
        %1315 = vmatprep.mubr.f32.mxu0 0.0
        %1316 = vmatmul.mubr.f32.gmra.mrb[0].mxu0 %v1247
        %v1317 = vpop.f32.mrb[0].mxu0
        %v1318 = vadd.f32 %v1015, %v1317
        %v1319 = vpop.f32.mrb[0].mxu0
        %1320 = vdwg.mxu0
        %v1321 = vsel %vm1018, %v1090, -inf
        %1322 = vmax.xlane.f32.xlu0 %v1321
        %v1323 = vpop.xlane.xlu0 %1322
        %v1324 = vsel %vm1018, %v1166, -inf
        %1325 = vmax.xlane.f32.xlu0 %v1324
        %v1326 = vpop.xlane.xlu0 %1325
        %v1327 = vsel %vm1018, %v1242, -inf
        %1328 = vmax.xlane.f32.xlu0 %v1327
        %v1329 = vpop.xlane.xlu0 %1328
        %v1330 = vsel %vm1018, %v1318, -inf
        %1331 = vmax.xlane.f32.xlu0 %v1330
        %v1332 = vpop.xlane.xlu0 %1331
        %v1333 = vsub.f32 %v1090, %v1323
        %v1334 = vsub.f32 %v1166, %v1326
        %v1335 = vsub.f32 %v1242, %v1329
        %v1336 = vsub.f32 %v1318, %v1332
        %v1337 = vmul.f32 %v1333, 1.442695
        %v1338 = vpow.pop %v1337
        %v1339 = vmul.f32 %v1334, 1.442695
        %v1340 = vpow.pop %v1339
        %v1341 = vmul.f32 %v1335, 1.442695
        %v1342 = vpow.pop %v1341
        %v1343 = vmul.f32 %v1336, 1.442695
        %v1344 = vpow.pop %v1343
        %v1345 = vsel %vm1018, %v1338, 0.0
        %1346 = vadd.xlane.f32.xlu0 %v1345
        %v1347 = vpop.xlane.xlu0 %1346
        %v1348 = vsel %vm1018, %v1340, 0.0
        %1349 = vadd.xlane.f32.xlu0 %v1348
        %v1350 = vpop.xlane.xlu0 %1349
        %v1351 = vsel %vm1018, %v1342, 0.0
        %1352 = vadd.xlane.f32.xlu0 %v1351
        %v1353 = vpop.xlane.xlu0 %1352
        %v1354 = vsel %vm1018, %v1344, 0.0
        %1355 = vadd.xlane.f32.xlu0 %v1354
        %v1356 = vpop.xlane.xlu0 %1355
        %v1357 = vrcp.pop %v1347
        %v1358 = vrcp.pop %v1350
        %v1359 = vrcp.pop %v1353
        %v1360 = vrcp.pop %v1356
        %v1361 = vmul.f32 %v1338, %v1357
        %v1362 = vmul.f32 %v1340, %v1358
        %v1363 = vmul.f32 %v1342, %v1359
        %v1364 = vmul.f32 %v1344, %v1360
        %1365 = vrot.lane.b32.xlu0 %v989, 64
        %v1366 = vpop.permute.xlu0 %1365
        %v1369 = vsel %vm1018, %v1361, 0
        %1371 = vmatprep.subr.mxu0 0.0
        %1372 = vmatpush1.msra.mxu0 %v1366
        %1373 = vmatprep.subr.mxu0 0.0
        %1374 = vmatpush1.msra.mxu0 0.0
        %1375 = vmatprep.subr.mxu0 0.0
        %1376 = vmatpush1.msra.mxu0 0.0
        %1377 = vmatprep.subr.mxu0 0.0
        %1378 = vmatpush1.msra.mxu0 0.0
        %1379 = vmatprep.subr.mxu0 0.0
        %1380 = vmatpush1.msra.mxu0 0.0
        %1381 = vmatprep.subr.mxu0 0.0
        %1382 = vmatpush1.msra.mxu0 0.0
        %1383 = vmatprep.subr.mxu0 0.0
        %1384 = vmatpush1.msra.mxu0 0.0
        %1385 = vmatprep.subr.mxu0 0.0
        %1386 = vmatpush1.msra.mxu0 0.0
        %1387 = vmatprep.subr.mxu0 0.0
        %1388 = vmatpush1.msra.mxu0 0.0
        %1389 = vmatprep.subr.mxu0 0.0
        %1390 = vmatpush1.msra.mxu0 0.0
        %1391 = vmatprep.subr.mxu0 0.0
        %1392 = vmatpush1.msra.mxu0 0.0
        %1393 = vmatprep.subr.mxu0 0.0
        %1394 = vmatpush1.msra.mxu0 0.0
        %1395 = vmatprep.subr.mxu0 0.0
        %1396 = vmatpush1.msra.mxu0 0.0
        %1397 = vmatprep.subr.mxu0 0.0
        %1398 = vmatpush1.msra.mxu0 0.0
        %1399 = vmatprep.subr.mxu0 0.0
        %1400 = vmatpush1.msra.mxu0 0.0
        %1401 = vmatprep.subr.mxu0 0.0
        %1402 = vmatpush1.msra.mxu0 0.0
        %1403 = vmatprep.subr.mxu0 0.0
        %1404 = vmatpush1.msra.mxu0 0.0
        %1405 = vmatprep.subr.mxu0 0.0
        %1406 = vmatpush1.msra.mxu0 0.0
        %1407 = vmatprep.subr.mxu0 0.0
        %1408 = vmatpush1.msra.mxu0 0.0
        %1409 = vmatprep.subr.mxu0 0.0
        %1410 = vmatpush1.msra.mxu0 0.0
        %1411 = vmatprep.subr.mxu0 0.0
        %1412 = vmatpush1.msra.mxu0 0.0
        %1413 = vmatprep.subr.mxu0 0.0
        %1414 = vmatpush1.msra.mxu0 0.0
        %1415 = vmatprep.subr.mxu0 0.0
        %1416 = vmatpush1.msra.mxu0 0.0
        %1417 = vmatprep.subr.mxu0 0.0
        %1418 = vmatpush1.msra.mxu0 0.0
        %1419 = vmatprep.subr.mxu0 0.0
        %1420 = vmatpush1.msra.mxu0 0.0
        %1421 = vmatprep.subr.mxu0 0.0
        %1422 = vmatpush1.msra.mxu0 0.0
        %1423 = vmatprep.subr.mxu0 0.0
        %1424 = vmatpush1.msra.mxu0 0.0
        %1425 = vmatprep.subr.mxu0 0.0
        %1426 = vmatpush1.msra.mxu0 0.0
        %1427 = vmatprep.subr.mxu0 0.0
        %1428 = vmatpush1.msra.mxu0 0.0
        %1429 = vmatprep.subr.mxu0 0.0
        %1430 = vmatpush1.msra.mxu0 0.0
        %1431 = vmatprep.subr.mxu0 0.0
        %1432 = vmatpush1.msra.mxu0 0.0
        %1433 = vmatprep.subr.mxu0 0.0
        %1434 = vmatpush1.msra.mxu0 0.0
        %1435 = vmatprep.mubr.f32.mxu0 0.0
        %1436 = vmatmul.mubr.f32.gmra.mrb[0].mxu0 %v1369
        %v1437 = vpop.f32.mrb[0].mxu0
        %v1438 = vadd.f32 0.0, %v1437
        %v1439 = vpop.f32.mrb[0].mxu0
        %1440 = vdwg.mxu0
        %1441 = vrot.lane.b32.xlu0 %v1010, 64
        %v1442 = vpop.permute.xlu0 %1441
        %v1445 = vsel %vm1018, %v1362, 0
        %1447 = vmatprep.subr.mxu0 0.0
        %1448 = vmatpush1.msra.mxu0 %v1442
        %1449 = vmatprep.subr.mxu0 0.0
        %1450 = vmatpush1.msra.mxu0 0.0
        %1451 = vmatprep.subr.mxu0 0.0
        %1452 = vmatpush1.msra.mxu0 0.0
        %1453 = vmatprep.subr.mxu0 0.0
        %1454 = vmatpush1.msra.mxu0 0.0
        %1455 = vmatprep.subr.mxu0 0.0
        %1456 = vmatpush1.msra.mxu0 0.0
        %1457 = vmatprep.subr.mxu0 0.0
        %1458 = vmatpush1.msra.mxu0 0.0
        %1459 = vmatprep.subr.mxu0 0.0
        %1460 = vmatpush1.msra.mxu0 0.0
        %1461 = vmatprep.subr.mxu0 0.0
        %1462 = vmatpush1.msra.mxu0 0.0
        %1463 = vmatprep.subr.mxu0 0.0
        %1464 = vmatpush1.msra.mxu0 0.0
        %1465 = vmatprep.subr.mxu0 0.0
        %1466 = vmatpush1.msra.mxu0 0.0
        %1467 = vmatprep.subr.mxu0 0.0
        %1468 = vmatpush1.msra.mxu0 0.0
        %1469 = vmatprep.subr.mxu0 0.0
        %1470 = vmatpush1.msra.mxu0 0.0
        %1471 = vmatprep.subr.mxu0 0.0
        %1472 = vmatpush1.msra.mxu0 0.0
        %1473 = vmatprep.subr.mxu0 0.0
        %1474 = vmatpush1.msra.mxu0 0.0
        %1475 = vmatprep.subr.mxu0 0.0
        %1476 = vmatpush1.msra.mxu0 0.0
        %1477 = vmatprep.subr.mxu0 0.0
        %1478 = vmatpush1.msra.mxu0 0.0
        %1479 = vmatprep.subr.mxu0 0.0
        %1480 = vmatpush1.msra.mxu0 0.0
        %1481 = vmatprep.subr.mxu0 0.0
        %1482 = vmatpush1.msra.mxu0 0.0
        %1483 = vmatprep.subr.mxu0 0.0
        %1484 = vmatpush1.msra.mxu0 0.0
        %1485 = vmatprep.subr.mxu0 0.0
        %1486 = vmatpush1.msra.mxu0 0.0
        %1487 = vmatprep.subr.mxu0 0.0
        %1488 = vmatpush1.msra.mxu0 0.0
        %1489 = vmatprep.subr.mxu0 0.0
        %1490 = vmatpush1.msra.mxu0 0.0
        %1491 = vmatprep.subr.mxu0 0.0
        %1492 = vmatpush1.msra.mxu0 0.0
        %1493 = vmatprep.subr.mxu0 0.0
        %1494 = vmatpush1.msra.mxu0 0.0
        %1495 = vmatprep.subr.mxu0 0.0
        %1496 = vmatpush1.msra.mxu0 0.0
        %1497 = vmatprep.subr.mxu0 0.0
        %1498 = vmatpush1.msra.mxu0 0.0
        %1499 = vmatprep.subr.mxu0 0.0
        %1500 = vmatpush1.msra.mxu0 0.0
        %1501 = vmatprep.subr.mxu0 0.0
        %1502 = vmatpush1.msra.mxu0 0.0
        %1503 = vmatprep.subr.mxu0 0.0
        %1504 = vmatpush1.msra.mxu0 0.0
        %1505 = vmatprep.subr.mxu0 0.0
        %1506 = vmatpush1.msra.mxu0 0.0
        %1507 = vmatprep.subr.mxu0 0.0
        %1508 = vmatpush1.msra.mxu0 0.0
        %1509 = vmatprep.subr.mxu0 0.0
        %1510 = vmatpush1.msra.mxu0 0.0
        %1511 = vmatprep.mubr.f32.mxu0 0.0
        %1512 = vmatmul.mubr.f32.gmra.mrb[0].mxu0 %v1445
        %v1513 = vpop.f32.mrb[0].mxu0
        %v1514 = vadd.f32 0.0, %v1513
        %v1515 = vpop.f32.mrb[0].mxu0
        %1516 = vdwg.mxu0
        %1517 = vrot.lane.b32.xlu0 %v1012, 64
        %v1518 = vpop.permute.xlu0 %1517
        %v1521 = vsel %vm1018, %v1363, 0
        %1523 = vmatprep.subr.mxu0 0.0
        %1524 = vmatpush1.msra.mxu0 %v1518
        %1525 = vmatprep.subr.mxu0 0.0
        %1526 = vmatpush1.msra.mxu0 0.0
        %1527 = vmatprep.subr.mxu0 0.0
        %1528 = vmatpush1.msra.mxu0 0.0
        %1529 = vmatprep.subr.mxu0 0.0
        %1530 = vmatpush1.msra.mxu0 0.0
        %1531 = vmatprep.subr.mxu0 0.0
        %1532 = vmatpush1.msra.mxu0 0.0
        %1533 = vmatprep.subr.mxu0 0.0
        %1534 = vmatpush1.msra.mxu0 0.0
        %1535 = vmatprep.subr.mxu0 0.0
        %1536 = vmatpush1.msra.mxu0 0.0
        %1537 = vmatprep.subr.mxu0 0.0
        %1538 = vmatpush1.msra.mxu0 0.0
        %1539 = vmatprep.subr.mxu0 0.0
        %1540 = vmatpush1.msra.mxu0 0.0
        %1541 = vmatprep.subr.mxu0 0.0
        %1542 = vmatpush1.msra.mxu0 0.0
        %1543 = vmatprep.subr.mxu0 0.0
        %1544 = vmatpush1.msra.mxu0 0.0
        %1545 = vmatprep.subr.mxu0 0.0
        %1546 = vmatpush1.msra.mxu0 0.0
        %1547 = vmatprep.subr.mxu0 0.0
        %1548 = vmatpush1.msra.mxu0 0.0
        %1549 = vmatprep.subr.mxu0 0.0
        %1550 = vmatpush1.msra.mxu0 0.0
        %1551 = vmatprep.subr.mxu0 0.0
        %1552 = vmatpush1.msra.mxu0 0.0
        %1553 = vmatprep.subr.mxu0 0.0
        %1554 = vmatpush1.msra.mxu0 0.0
        %1555 = vmatprep.subr.mxu0 0.0
        %1556 = vmatpush1.msra.mxu0 0.0
        %1557 = vmatprep.subr.mxu0 0.0
        %1558 = vmatpush1.msra.mxu0 0.0
        %1559 = vmatprep.subr.mxu0 0.0
        %1560 = vmatpush1.msra.mxu0 0.0
        %1561 = vmatprep.subr.mxu0 0.0
        %1562 = vmatpush1.msra.mxu0 0.0
        %1563 = vmatprep.subr.mxu0 0.0
        %1564 = vmatpush1.msra.mxu0 0.0
        %1565 = vmatprep.subr.mxu0 0.0
        %1566 = vmatpush1.msra.mxu0 0.0
        %1567 = vmatprep.subr.mxu0 0.0
        %1568 = vmatpush1.msra.mxu0 0.0
        %1569 = vmatprep.subr.mxu0 0.0
        %1570 = vmatpush1.msra.mxu0 0.0
        %1571 = vmatprep.subr.mxu0 0.0
        %1572 = vmatpush1.msra.mxu0 0.0
        %1573 = vmatprep.subr.mxu0 0.0
        %1574 = vmatpush1.msra.mxu0 0.0
        %1575 = vmatprep.subr.mxu0 0.0
        %1576 = vmatpush1.msra.mxu0 0.0
        %1577 = vmatprep.subr.mxu0 0.0
        %1578 = vmatpush1.msra.mxu0 0.0
        %1579 = vmatprep.subr.mxu0 0.0
        %1580 = vmatpush1.msra.mxu0 0.0
        %1581 = vmatprep.subr.mxu0 0.0
        %1582 = vmatpush1.msra.mxu0 0.0
        %1583 = vmatprep.subr.mxu0 0.0
        %1584 = vmatpush1.msra.mxu0 0.0
        %1585 = vmatprep.subr.mxu0 0.0
        %1586 = vmatpush1.msra.mxu0 0.0
        %1587 = vmatprep.mubr.f32.mxu0 0.0
        %1588 = vmatmul.mubr.f32.gmra.mrb[0].mxu0 %v1521
        %v1589 = vpop.f32.mrb[0].mxu0
        %v1590 = vadd.f32 0.0, %v1589
        %v1591 = vpop.f32.mrb[0].mxu0
        %1592 = vdwg.mxu0
        %1593 = vrot.lane.b32.xlu0 %v1014, 64
        %v1594 = vpop.permute.xlu0 %1593
        %v1597 = vsel %vm1018, %v1364, 0
        %1599 = vmatprep.subr.mxu0 0.0
        %1600 = vmatpush1.msra.mxu0 %v1594
        %1601 = vmatprep.subr.mxu0 0.0
        %1602 = vmatpush1.msra.mxu0 0.0
        %1603 = vmatprep.subr.mxu0 0.0
        %1604 = vmatpush1.msra.mxu0 0.0
        %1605 = vmatprep.subr.mxu0 0.0
        %1606 = vmatpush1.msra.mxu0 0.0
        %1607 = vmatprep.subr.mxu0 0.0
        %1608 = vmatpush1.msra.mxu0 0.0
        %1609 = vmatprep.subr.mxu0 0.0
        %1610 = vmatpush1.msra.mxu0 0.0
        %1611 = vmatprep.subr.mxu0 0.0
        %1612 = vmatpush1.msra.mxu0 0.0
        %1613 = vmatprep.subr.mxu0 0.0
        %1614 = vmatpush1.msra.mxu0 0.0
        %1615 = vmatprep.subr.mxu0 0.0
        %1616 = vmatpush1.msra.mxu0 0.0
        %1617 = vmatprep.subr.mxu0 0.0
        %1618 = vmatpush1.msra.mxu0 0.0
        %1619 = vmatprep.subr.mxu0 0.0
        %1620 = vmatpush1.msra.mxu0 0.0
        %1621 = vmatprep.subr.mxu0 0.0
        %1622 = vmatpush1.msra.mxu0 0.0
        %1623 = vmatprep.subr.mxu0 0.0
        %1624 = vmatpush1.msra.mxu0 0.0
        %1625 = vmatprep.subr.mxu0 0.0
        %1626 = vmatpush1.msra.mxu0 0.0
        %1627 = vmatprep.subr.mxu0 0.0
        %1628 = vmatpush1.msra.mxu0 0.0
        %1629 = vmatprep.subr.mxu0 0.0
        %1630 = vmatpush1.msra.mxu0 0.0
        %1631 = vmatprep.subr.mxu0 0.0
        %1632 = vmatpush1.msra.mxu0 0.0
        %1633 = vmatprep.subr.mxu0 0.0
        %1634 = vmatpush1.msra.mxu0 0.0
        %1635 = vmatprep.subr.mxu0 0.0
        %1636 = vmatpush1.msra.mxu0 0.0
        %1637 = vmatprep.subr.mxu0 0.0
        %1638 = vmatpush1.msra.mxu0 0.0
        %1639 = vmatprep.subr.mxu0 0.0
        %1640 = vmatpush1.msra.mxu0 0.0
        %1641 = vmatprep.subr.mxu0 0.0
        %1642 = vmatpush1.msra.mxu0 0.0
        %1643 = vmatprep.subr.mxu0 0.0
        %1644 = vmatpush1.msra.mxu0 0.0
        %1645 = vmatprep.subr.mxu0 0.0
        %1646 = vmatpush1.msra.mxu0 0.0
        %1647 = vmatprep.subr.mxu0 0.0
        %1648 = vmatpush1.msra.mxu0 0.0
        %1649 = vmatprep.subr.mxu0 0.0
        %1650 = vmatpush1.msra.mxu0 0.0
        %1651 = vmatprep.subr.mxu0 0.0
        %1652 = vmatpush1.msra.mxu0 0.0
        %1653 = vmatprep.subr.mxu0 0.0
        %1654 = vmatpush1.msra.mxu0 0.0
        %1655 = vmatprep.subr.mxu0 0.0
        %1656 = vmatpush1.msra.mxu0 0.0
        %1657 = vmatprep.subr.mxu0 0.0
        %1658 = vmatpush1.msra.mxu0 0.0
        %1659 = vmatprep.subr.mxu0 0.0
        %1660 = vmatpush1.msra.mxu0 0.0
        %1661 = vmatprep.subr.mxu0 0.0
        %1662 = vmatpush1.msra.mxu0 0.0
        %1663 = vmatprep.mubr.f32.mxu0 0.0
        %1664 = vmatmul.mubr.f32.gmra.mrb[0].mxu0 %v1597
        %v1665 = vpop.f32.mrb[0].mxu0
        %v1666 = vadd.f32 0.0, %v1665
        %v1667 = vpop.f32.mrb[0].mxu0
        %1668 = vdwg.mxu0
        %1670 = vrot.lane.b32.xlu0 %v1514, 8
        %v1671 = vpop.permute.xlu0 %1670
        %1674 = vrot.lane.b32.xlu0 %v1590, 16
        %v1675 = vpop.permute.xlu0 %1674
        %1678 = vrot.lane.b32.xlu0 %v1666, 24
        %v1679 = vpop.permute.xlu0 %1678
        %v1681 = vsel %vm1018, %v1438, %v1671
        %vm1682 = vcmask 130048
        %v1683 = vsel %vm1682, %v1681, %v1675
        %vm1684 = vcmask 195584
        %v1685 = vsel %vm1684, %v1683, %v1679
        %v1687 = vlaneseq
        %v1688 = vshrl.u32 %v1687, 7
        %v1689 = vsub.s32 0, %v1688
        %v1690 = vrot.slane %v998, %v1689
        %v1693 = vsel %vm918, %v1685, 0
        %1695 = vmatprep.subr.mxu0 0.0
        %1696 = vmatpush1.msra.mxu0 %v994
        %1697 = vmatprep.subr.mxu0 0.0
        %1698 = vmatpush1.msra.mxu0 %v995
        %1699 = vmatprep.subr.mxu0 0.0
        %1700 = vmatpush1.msra.mxu0 %v996
        %1701 = vmatprep.subr.mxu0 0.0
        %1702 = vmatpush1.msra.mxu0 %v997
        %1703 = vmatprep.subr.mxu0 0.0
        %1704 = vmatpush1.msra.mxu0 0.0
        %1705 = vmatprep.subr.mxu0 0.0
        %1706 = vmatpush1.msra.mxu0 0.0
        %1707 = vmatprep.subr.mxu0 0.0
        %1708 = vmatpush1.msra.mxu0 0.0
        %1709 = vmatprep.subr.mxu0 0.0
        %1710 = vmatpush1.msra.mxu0 0.0
        %1711 = vmatprep.subr.mxu0 0.0
        %1712 = vmatpush1.msra.mxu0 0.0
        %1713 = vmatprep.subr.mxu0 0.0
        %1714 = vmatpush1.msra.mxu0 0.0
        %1715 = vmatprep.subr.mxu0 0.0
        %1716 = vmatpush1.msra.mxu0 0.0
        %1717 = vmatprep.subr.mxu0 0.0
        %1718 = vmatpush1.msra.mxu0 0.0
        %1719 = vmatprep.subr.mxu0 0.0
        %1720 = vmatpush1.msra.mxu0 0.0
        %1721 = vmatprep.subr.mxu0 0.0
        %1722 = vmatpush1.msra.mxu0 0.0
        %1723 = vmatprep.subr.mxu0 0.0
        %1724 = vmatpush1.msra.mxu0 0.0
        %1725 = vmatprep.subr.mxu0 0.0
        %1726 = vmatpush1.msra.mxu0 0.0
        %1727 = vmatprep.subr.mxu0 0.0
        %1728 = vmatpush1.msra.mxu0 0.0
        %1729 = vmatprep.subr.mxu0 0.0
        %1730 = vmatpush1.msra.mxu0 0.0
        %1731 = vmatprep.subr.mxu0 0.0
        %1732 = vmatpush1.msra.mxu0 0.0
        %1733 = vmatprep.subr.mxu0 0.0
        %1734 = vmatpush1.msra.mxu0 0.0
        %1735 = vmatprep.subr.mxu0 0.0
        %1736 = vmatpush1.msra.mxu0 0.0
        %1737 = vmatprep.subr.mxu0 0.0
        %1738 = vmatpush1.msra.mxu0 0.0
        %1739 = vmatprep.subr.mxu0 0.0
        %1740 = vmatpush1.msra.mxu0 0.0
        %1741 = vmatprep.subr.mxu0 0.0
        %1742 = vmatpush1.msra.mxu0 0.0
        %1743 = vmatprep.subr.mxu0 0.0
        %1744 = vmatpush1.msra.mxu0 0.0
        %1745 = vmatprep.subr.mxu0 0.0
        %1746 = vmatpush1.msra.mxu0 0.0
        %1747 = vmatprep.subr.mxu0 0.0
        %1748 = vmatpush1.msra.mxu0 0.0
        %1749 = vmatprep.subr.mxu0 0.0
        %1750 = vmatpush1.msra.mxu0 0.0
        %1751 = vmatprep.subr.mxu0 0.0
        %1752 = vmatpush1.msra.mxu0 0.0
        %1753 = vmatprep.subr.mxu0 0.0
        %1754 = vmatpush1.msra.mxu0 0.0
        %1755 = vmatprep.subr.mxu0 0.0
        %1756 = vmatpush1.msra.mxu0 0.0
        %1757 = vmatprep.subr.mxu0 0.0
        %1758 = vmatpush1.msra.mxu0 0.0
        %1759 = vmatprep.mubr.f32.mxu0 0.0
        %1760 = vmatmul.mubr.f32.gmra.mrb[0].mxu0 %v1693
        %v1761 = vpop.f32.mrb[0].mxu0
        %v1762 = vadd.f32 %v1690, %v1761
        %v1763 = vpop.f32.mrb[0].mxu0
        %1764 = vdwg.mxu0
        %v1765 = vadd.f32 %v1762, %v904
        %v1766 = vsel %vm918, %v1765, 0.0
        %1767 = vadd.xlane.f32.xlu0 %v1766
        %v1768 = vpop.xlane.xlu0 %1767
        %v1769 = vrcp.pop 32.0
        %v1770 = vmul.f32 %v1768, %v1769
        %v1771 = vsub.f32 %v1765, %v1770
        %v1772 = vmul.f32 %v1771, %v1771
        %v1773 = vsel %vm918, %v1772, 0.0
        %1774 = vadd.xlane.f32.xlu0 %v1773
        %v1775 = vpop.xlane.xlu0 %1774
        %v1776 = vmul.f32 %v1775, %v1769
        %v1777 = vadd.f32 %v1776, 1e-05
        %v1778 = vrsqrt.pop %v1777
        %v1779 = vmul.f32 %v1771, %v1778
        %v1781 = vlaneseq
        %v1782 = vshrl.u32 %v1781, 7
        %v1783 = vsub.s32 0, %v1782
        %v1784 = vrot.slane %v999, %v1783
        %v1786 = vmul.f32 %v1779, %v1784
        %v1788 = vlaneseq
        %v1789 = vshrl.u32 %v1788, 7
        %v1790 = vsub.s32 0, %v1789
        %v1791 = vrot.slane %v1000, %v1790
        %v1793 = vadd.f32 %v1786, %v1791
        %1794 = vst.msk [vmem:[%s874] sm:$0xff] %vm1018, %v1361
        %1795 = vst.msk [vmem:[%s874 + $0x8] sm:$0xff] %vm1018, %v1362
        %1796 = vst.msk [vmem:[%s874 + $0x10] sm:$0xff] %vm1018, %v1363
        %1797 = vst.msk [vmem:[%s874 + $0x18] sm:$0xff] %vm1018, %v1364
        %1799 = vset.pattern.permute.xlu0 0
        %1800 = vperm.xlu0 %1799, %v903
        %v1801 = vpop.permute.xlu0 %1800
        %v1803 = vmul.f32 %v1793, %v1801
        %v1804 = vld [vmem:[%s11] sm:$0xff]
        %v1805 = vld [vmem:[%s11 + $0x8] sm:$0xff]
        %v1806 = vld [vmem:[%s11 + $0x10] sm:$0xff]
        %v1807 = vld [vmem:[%s11 + $0x18] sm:$0xff]
        %v1808 = vld [vmem:[%s12] sm:$0x1]
        %v1810 = vlaneseq
        %v1811 = vshrl.u32 %v1810, 7
        %v1812 = vsub.s32 0, %v1811
        %v1813 = vrot.slane %v1808, %v1812
        %v1816 = vsel %vm918, %v1803, 0
        %1818 = vmatprep.subr.mxu0 0.0
        %1819 = vmatpush1.msra.mxu0 %v1804
        %1820 = vmatprep.subr.mxu0 0.0
        %1821 = vmatpush1.msra.mxu0 %v1805
        %1822 = vmatprep.subr.mxu0 0.0
        %1823 = vmatpush1.msra.mxu0 %v1806
        %1824 = vmatprep.subr.mxu0 0.0
        %1825 = vmatpush1.msra.mxu0 %v1807
        %1826 = vmatprep.subr.mxu0 0.0
        %1827 = vmatpush1.msra.mxu0 0.0
        %1828 = vmatprep.subr.mxu0 0.0
        %1829 = vmatpush1.msra.mxu0 0.0
        %1830 = vmatprep.subr.mxu0 0.0
        %1831 = vmatpush1.msra.mxu0 0.0
        %1832 = vmatprep.subr.mxu0 0.0
        %1833 = vmatpush1.msra.mxu0 0.0
        %1834 = vmatprep.subr.mxu0 0.0
        %1835 = vmatpush1.msra.mxu0 0.0
        %1836 = vmatprep.subr.mxu0 0.0
        %1837 = vmatpush1.msra.mxu0 0.0
        %1838 = vmatprep.subr.mxu0 0.0
        %1839 = vmatpush1.msra.mxu0 0.0
        %1840 = vmatprep.subr.mxu0 0.0
        %1841 = vmatpush1.msra.mxu0 0.0
        %1842 = vmatprep.subr.mxu0 0.0
        %1843 = vmatpush1.msra.mxu0 0.0
        %1844 = vmatprep.subr.mxu0 0.0
        %1845 = vmatpush1.msra.mxu0 0.0
        %1846 = vmatprep.subr.mxu0 0.0
        %1847 = vmatpush1.msra.mxu0 0.0
        %1848 = vmatprep.subr.mxu0 0.0
        %1849 = vmatpush1.msra.mxu0 0.0
        %1850 = vmatprep.subr.mxu0 0.0
        %1851 = vmatpush1.msra.mxu0 0.0
        %1852 = vmatprep.subr.mxu0 0.0
        %1853 = vmatpush1.msra.mxu0 0.0
        %1854 = vmatprep.subr.mxu0 0.0
        %1855 = vmatpush1.msra.mxu0 0.0
        %1856 = vmatprep.subr.mxu0 0.0
        %1857 = vmatpush1.msra.mxu0 0.0
        %1858 = vmatprep.subr.mxu0 0.0
        %1859 = vmatpush1.msra.mxu0 0.0
        %1860 = vmatprep.subr.mxu0 0.0
        %1861 = vmatpush1.msra.mxu0 0.0
        %1862 = vmatprep.subr.mxu0 0.0
        %1863 = vmatpush1.msra.mxu0 0.0
        %1864 = vmatprep.subr.mxu0 0.0
        %1865 = vmatpush1.msra.mxu0 0.0
        %1866 = vmatprep.subr.mxu0 0.0
        %1867 = vmatpush1.msra.mxu0 0.0
        %1868 = vmatprep.subr.mxu0 0.0
        %1869 = vmatpush1.msra.mxu0 0.0
        %1870 = vmatprep.subr.mxu0 0.0
        %1871 = vmatpush1.msra.mxu0 0.0
        %1872 = vmatprep.subr.mxu0 0.0
        %1873 = vmatpush1.msra.mxu0 0.0
        %1874 = vmatprep.subr.mxu0 0.0
        %1875 = vmatpush1.msra.mxu0 0.0
        %1876 = vmatprep.subr.mxu0 0.0
        %1877 = vmatpush1.msra.mxu0 0.0
        %1878 = vmatprep.subr.mxu0 0.0
        %1879 = vmatpush1.msra.mxu0 0.0
        %1880 = vmatprep.subr.mxu0 0.0
        %1881 = vmatpush1.msra.mxu0 0.0
        %1882 = vmatprep.mubr.f32.mxu0 0.0
        %1883 = vmatmul.mubr.f32.gmra.mrb[0].mxu0 %v1816
        %v1884 = vpop.f32.mrb[0].mxu0
        %v1885 = vadd.f32 %v1813, %v1884
        %v1886 = vpop.f32.mrb[0].mxu0
        %1887 = vdwg.mxu0
        %v1888 = vmul.f32 %v1885, 0.35355338
        %v1889 = vld [vmem:[%s13] sm:$0xff]
        %v1890 = vld [vmem:[%s13 + $0x8] sm:$0xff]
        %v1891 = vld [vmem:[%s13 + $0x10] sm:$0xff]
        %v1892 = vld [vmem:[%s13 + $0x18] sm:$0xff]
        %v1893 = vld [vmem:[%s14] sm:$0x1]
        %v1895 = vlaneseq
        %v1896 = vshrl.u32 %v1895, 7
        %v1897 = vsub.s32 0, %v1896
        %v1898 = vrot.slane %v1893, %v1897
        %v1901 = vsel %vm918, %v905, 0
        %v1904 = vsel %vm918, %v906, 0
        %1906 = vmatprep.subr.mxu0 0.0
        %1907 = vmatpush1.msra.mxu0 %v1889
        %1908 = vmatprep.subr.mxu0 0.0
        %1909 = vmatpush1.msra.mxu0 %v1890
        %1910 = vmatprep.subr.mxu0 0.0
        %1911 = vmatpush1.msra.mxu0 %v1891
        %1912 = vmatprep.subr.mxu0 0.0
        %1913 = vmatpush1.msra.mxu0 %v1892
        %1914 = vmatprep.subr.mxu0 0.0
        %1915 = vmatpush1.msra.mxu0 0.0
        %1916 = vmatprep.subr.mxu0 0.0
        %1917 = vmatpush1.msra.mxu0 0.0
        %1918 = vmatprep.subr.mxu0 0.0
        %1919 = vmatpush1.msra.mxu0 0.0
        %1920 = vmatprep.subr.mxu0 0.0
        %1921 = vmatpush1.msra.mxu0 0.0
        %1922 = vmatprep.subr.mxu0 0.0
        %1923 = vmatpush1.msra.mxu0 0.0
        %1924 = vmatprep.subr.mxu0 0.0
        %1925 = vmatpush1.msra.mxu0 0.0
        %1926 = vmatprep.subr.mxu0 0.0
        %1927 = vmatpush1.msra.mxu0 0.0
        %1928 = vmatprep.subr.mxu0 0.0
        %1929 = vmatpush1.msra.mxu0 0.0
        %1930 = vmatprep.subr.mxu0 0.0
        %1931 = vmatpush1.msra.mxu0 0.0
        %1932 = vmatprep.subr.mxu0 0.0
        %1933 = vmatpush1.msra.mxu0 0.0
        %1934 = vmatprep.subr.mxu0 0.0
        %1935 = vmatpush1.msra.mxu0 0.0
        %1936 = vmatprep.subr.mxu0 0.0
        %1937 = vmatpush1.msra.mxu0 0.0
        %1938 = vmatprep.subr.mxu0 0.0
        %1939 = vmatpush1.msra.mxu0 0.0
        %1940 = vmatprep.subr.mxu0 0.0
        %1941 = vmatpush1.msra.mxu0 0.0
        %1942 = vmatprep.subr.mxu0 0.0
        %1943 = vmatpush1.msra.mxu0 0.0
        %1944 = vmatprep.subr.mxu0 0.0
        %1945 = vmatpush1.msra.mxu0 0.0
        %1946 = vmatprep.subr.mxu0 0.0
        %1947 = vmatpush1.msra.mxu0 0.0
        %1948 = vmatprep.subr.mxu0 0.0
        %1949 = vmatpush1.msra.mxu0 0.0
        %1950 = vmatprep.subr.mxu0 0.0
        %1951 = vmatpush1.msra.mxu0 0.0
        %1952 = vmatprep.subr.mxu0 0.0
        %1953 = vmatpush1.msra.mxu0 0.0
        %1954 = vmatprep.subr.mxu0 0.0
        %1955 = vmatpush1.msra.mxu0 0.0
        %1956 = vmatprep.subr.mxu0 0.0
        %1957 = vmatpush1.msra.mxu0 0.0
        %1958 = vmatprep.subr.mxu0 0.0
        %1959 = vmatpush1.msra.mxu0 0.0
        %1960 = vmatprep.subr.mxu0 0.0
        %1961 = vmatpush1.msra.mxu0 0.0
        %1962 = vmatprep.subr.mxu0 0.0
        %1963 = vmatpush1.msra.mxu0 0.0
        %1964 = vmatprep.subr.mxu0 0.0
        %1965 = vmatpush1.msra.mxu0 0.0
        %1966 = vmatprep.subr.mxu0 0.0
        %1967 = vmatpush1.msra.mxu0 0.0
        %1968 = vmatprep.subr.mxu0 0.0
        %1969 = vmatpush1.msra.mxu0 0.0
        %1970 = vmatprep.mubr.f32.mxu0 0.0
        %1971 = vmatmul.mubr.f32.gmra.mrb[0].mxu0 %v1901
        %v1972 = vpop.f32.mrb[0].mxu0
        %v1973 = vadd.f32 %v1898, %v1972
        %v1974 = vpop.f32.mrb[0].mxu0
        %1975 = vmatprep.mubr.f32.mxu0 0.0
        %1976 = vmatmul.mubr.f32.gmra.mrb[0].mxu0 %v1904
        %v1977 = vpop.f32.mrb[0].mxu0
        %v1978 = vadd.f32 %v1898, %v1977
        %v1979 = vpop.f32.mrb[0].mxu0
        %1980 = vdwg.mxu0
        %v1981 = vld [vmem:[%s898] sm:$0xff]
        %v1982 = vld [vmem:[%s15] sm:$0xff]
        %v1983 = vld [vmem:[%s15 + $0x8] sm:$0xff]
        %v1984 = vld [vmem:[%s15 + $0x10] sm:$0xff]
        %v1985 = vld [vmem:[%s15 + $0x18] sm:$0xff]
        %v1986 = vld [vmem:[%s16] sm:$0x1]
        %v1987 = vld [vmem:[%s17] sm:$0x1]
        %v1988 = vld [vmem:[%s18] sm:$0x1]
        %1990 = vrot.lane.b32.xlu0 %v1888, 120
        %v1991 = vpop.permute.xlu0 %1990
        %1992 = vrot.lane.b32.xlu0 %v1888, 112
        %v1993 = vpop.permute.xlu0 %1992
        %1994 = vrot.lane.b32.xlu0 %v1888, 104
        %v1995 = vpop.permute.xlu0 %1994
        %1998 = vrot.lane.b32.xlu0 %v1973, 120
        %v1999 = vpop.permute.xlu0 %1998
        %2000 = vrot.lane.b32.xlu0 %v1978, 120
        %v2001 = vpop.permute.xlu0 %2000
        %2002 = vrot.lane.b32.xlu0 %v1973, 112
        %v2003 = vpop.permute.xlu0 %2002
        %2004 = vrot.lane.b32.xlu0 %v1978, 112
        %v2005 = vpop.permute.xlu0 %2004
        %2006 = vrot.lane.b32.xlu0 %v1973, 104
        %v2007 = vpop.permute.xlu0 %2006
        %2008 = vrot.lane.b32.xlu0 %v1978, 104
        %v2009 = vpop.permute.xlu0 %2008
        %v2010 = vmul.f32 %v1981, -1e+30
        %v2011 = vsel %vm1018, %v1888, 0
        %v2013 = vsel %vm1018, %v1973, 0
        %v2015 = vsel %vm1018, %v1978, 0
        %2017 = vmatprep.subr.mxu0 0.0
        %2018 = vmatpush1.xpose.msra.mxu0 %v2013
        %2019 = vmatprep.subr.mxu0 0.0
        %2020 = vmatpush1.xpose.msra.mxu0 %v2015
        %2021 = vmatprep.subr.mxu0 0.0
        %2022 = vmatpush1.xpose.msra.mxu0 0.0
        %2023 = vmatprep.subr.mxu0 0.0
        %2024 = vmatpush1.xpose.msra.mxu0 0.0
        %2025 = vmatprep.subr.mxu0 0.0
        %2026 = vmatpush1.xpose.msra.mxu0 0.0
        %2027 = vmatprep.subr.mxu0 0.0
        %2028 = vmatpush1.xpose.msra.mxu0 0.0
        %2029 = vmatprep.subr.mxu0 0.0
        %2030 = vmatpush1.xpose.msra.mxu0 0.0
        %2031 = vmatprep.subr.mxu0 0.0
        %2032 = vmatpush1.xpose.msra.mxu0 0.0
        %2033 = vmatprep.subr.mxu0 0.0
        %2034 = vmatpush1.xpose.msra.mxu0 0.0
        %2035 = vmatprep.subr.mxu0 0.0
        %2036 = vmatpush1.xpose.msra.mxu0 0.0
        %2037 = vmatprep.subr.mxu0 0.0
        %2038 = vmatpush1.xpose.msra.mxu0 0.0
        %2039 = vmatprep.subr.mxu0 0.0
        %2040 = vmatpush1.xpose.msra.mxu0 0.0
        %2041 = vmatprep.subr.mxu0 0.0
        %2042 = vmatpush1.xpose.msra.mxu0 0.0
        %2043 = vmatprep.subr.mxu0 0.0
        %2044 = vmatpush1.xpose.msra.mxu0 0.0
        %2045 = vmatprep.subr.mxu0 0.0
        %2046 = vmatpush1.xpose.msra.mxu0 0.0
        %2047 = vmatprep.subr.mxu0 0.0
        %2048 = vmatpush1.xpose.msra.mxu0 0.0
        %2049 = vmatprep.subr.mxu0 0.0
        %2050 = vmatpush1.xpose.msra.mxu0 0.0
        %2051 = vmatprep.subr.mxu0 0.0
        %2052 = vmatpush1.xpose.msra.mxu0 0.0
        %2053 = vmatprep.subr.mxu0 0.0
        %2054 = vmatpush1.xpose.msra.mxu0 0.0
        %2055 = vmatprep.subr.mxu0 0.0
        %2056 = vmatpush1.xpose.msra.mxu0 0.0
        %2057 = vmatprep.subr.mxu0 0.0
        %2058 = vmatpush1.xpose.msra.mxu0 0.0
        %2059 = vmatprep.subr.mxu0 0.0
        %2060 = vmatpush1.xpose.msra.mxu0 0.0
        %2061 = vmatprep.subr.mxu0 0.0
        %2062 = vmatpush1.xpose.msra.mxu0 0.0
        %2063 = vmatprep.subr.mxu0 0.0
        %2064 = vmatpush1.xpose.msra.mxu0 0.0
        %2065 = vmatprep.subr.mxu0 0.0
        %2066 = vmatpush1.xpose.msra.mxu0 0.0
        %2067 = vmatprep.subr.mxu0 0.0
        %2068 = vmatpush1.xpose.msra.mxu0 0.0
        %2069 = vmatprep.subr.mxu0 0.0
        %2070 = vmatpush1.xpose.msra.mxu0 0.0
        %2071 = vmatprep.subr.mxu0 0.0
        %2072 = vmatpush1.xpose.msra.mxu0 0.0
        %2073 = vmatprep.subr.mxu0 0.0
        %2074 = vmatpush1.xpose.msra.mxu0 0.0
        %2075 = vmatprep.subr.mxu0 0.0
        %2076 = vmatpush1.xpose.msra.mxu0 0.0
        %2077 = vmatprep.subr.mxu0 0.0
        %2078 = vmatpush1.xpose.msra.mxu0 0.0
        %2079 = vmatprep.subr.mxu0 0.0
        %2080 = vmatpush1.xpose.msra.mxu0 0.0
        %2081 = vmatprep.mubr.f32.mxu0 0.0
        %2082 = vmatmul.mubr.f32.gmra.mrb[0].mxu0 %v2011
        %v2083 = vpop.f32.mrb[0].mxu0
        %v2084 = vadd.f32 %v2010, %v2083
        %v2085 = vpop.f32.mrb[0].mxu0
        %2086 = vdwg.mxu0
        %v2087 = vsel %vm1018, %v1991, 0
        %v2089 = vsel %vm1018, %v1999, 0
        %v2091 = vsel %vm1018, %v2001, 0
        %2093 = vmatprep.subr.mxu0 0.0
        %2094 = vmatpush1.xpose.msra.mxu0 %v2089
        %2095 = vmatprep.subr.mxu0 0.0
        %2096 = vmatpush1.xpose.msra.mxu0 %v2091
        %2097 = vmatprep.subr.mxu0 0.0
        %2098 = vmatpush1.xpose.msra.mxu0 0.0
        %2099 = vmatprep.subr.mxu0 0.0
        %2100 = vmatpush1.xpose.msra.mxu0 0.0
        %2101 = vmatprep.subr.mxu0 0.0
        %2102 = vmatpush1.xpose.msra.mxu0 0.0
        %2103 = vmatprep.subr.mxu0 0.0
        %2104 = vmatpush1.xpose.msra.mxu0 0.0
        %2105 = vmatprep.subr.mxu0 0.0
        %2106 = vmatpush1.xpose.msra.mxu0 0.0
        %2107 = vmatprep.subr.mxu0 0.0
        %2108 = vmatpush1.xpose.msra.mxu0 0.0
        %2109 = vmatprep.subr.mxu0 0.0
        %2110 = vmatpush1.xpose.msra.mxu0 0.0
        %2111 = vmatprep.subr.mxu0 0.0
        %2112 = vmatpush1.xpose.msra.mxu0 0.0
        %2113 = vmatprep.subr.mxu0 0.0
        %2114 = vmatpush1.xpose.msra.mxu0 0.0
        %2115 = vmatprep.subr.mxu0 0.0
        %2116 = vmatpush1.xpose.msra.mxu0 0.0
        %2117 = vmatprep.subr.mxu0 0.0
        %2118 = vmatpush1.xpose.msra.mxu0 0.0
        %2119 = vmatprep.subr.mxu0 0.0
        %2120 = vmatpush1.xpose.msra.mxu0 0.0
        %2121 = vmatprep.subr.mxu0 0.0
        %2122 = vmatpush1.xpose.msra.mxu0 0.0
        %2123 = vmatprep.subr.mxu0 0.0
        %2124 = vmatpush1.xpose.msra.mxu0 0.0
        %2125 = vmatprep.subr.mxu0 0.0
        %2126 = vmatpush1.xpose.msra.mxu0 0.0
        %2127 = vmatprep.subr.mxu0 0.0
        %2128 = vmatpush1.xpose.msra.mxu0 0.0
        %2129 = vmatprep.subr.mxu0 0.0
        %2130 = vmatpush1.xpose.msra.mxu0 0.0
        %2131 = vmatprep.subr.mxu0 0.0
        %2132 = vmatpush1.xpose.msra.mxu0 0.0
        %2133 = vmatprep.subr.mxu0 0.0
        %2134 = vmatpush1.xpose.msra.mxu0 0.0
        %2135 = vmatprep.subr.mxu0 0.0
        %2136 = vmatpush1.xpose.msra.mxu0 0.0
        %2137 = vmatprep.subr.mxu0 0.0
        %2138 = vmatpush1.xpose.msra.mxu0 0.0
        %2139 = vmatprep.subr.mxu0 0.0
        %2140 = vmatpush1.xpose.msra.mxu0 0.0
        %2141 = vmatprep.subr.mxu0 0.0
        %2142 = vmatpush1.xpose.msra.mxu0 0.0
        %2143 = vmatprep.subr.mxu0 0.0
        %2144 = vmatpush1.xpose.msra.mxu0 0.0
        %2145 = vmatprep.subr.mxu0 0.0
        %2146 = vmatpush1.xpose.msra.mxu0 0.0
        %2147 = vmatprep.subr.mxu0 0.0
        %2148 = vmatpush1.xpose.msra.mxu0 0.0
        %2149 = vmatprep.subr.mxu0 0.0
        %2150 = vmatpush1.xpose.msra.mxu0 0.0
        %2151 = vmatprep.subr.mxu0 0.0
        %2152 = vmatpush1.xpose.msra.mxu0 0.0
        %2153 = vmatprep.subr.mxu0 0.0
        %2154 = vmatpush1.xpose.msra.mxu0 0.0
        %2155 = vmatprep.subr.mxu0 0.0
        %2156 = vmatpush1.xpose.msra.mxu0 0.0
        %2157 = vmatprep.mubr.f32.mxu0 0.0
        %2158 = vmatmul.mubr.f32.gmra.mrb[0].mxu0 %v2087
        %v2159 = vpop.f32.mrb[0].mxu0
        %v2160 = vadd.f32 %v2010, %v2159
        %v2161 = vpop.f32.mrb[0].mxu0
        %2162 = vdwg.mxu0
        %v2163 = vsel %vm1018, %v1993, 0
        %v2165 = vsel %vm1018, %v2003, 0
        %v2167 = vsel %vm1018, %v2005, 0
        %2169 = vmatprep.subr.mxu0 0.0
        %2170 = vmatpush1.xpose.msra.mxu0 %v2165
        %2171 = vmatprep.subr.mxu0 0.0
        %2172 = vmatpush1.xpose.msra.mxu0 %v2167
        %2173 = vmatprep.subr.mxu0 0.0
        %2174 = vmatpush1.xpose.msra.mxu0 0.0
        %2175 = vmatprep.subr.mxu0 0.0
        %2176 = vmatpush1.xpose.msra.mxu0 0.0
        %2177 = vmatprep.subr.mxu0 0.0
        %2178 = vmatpush1.xpose.msra.mxu0 0.0
        %2179 = vmatprep.subr.mxu0 0.0
        %2180 = vmatpush1.xpose.msra.mxu0 0.0
        %2181 = vmatprep.subr.mxu0 0.0
        %2182 = vmatpush1.xpose.msra.mxu0 0.0
        %2183 = vmatprep.subr.mxu0 0.0
        %2184 = vmatpush1.xpose.msra.mxu0 0.0
        %2185 = vmatprep.subr.mxu0 0.0
        %2186 = vmatpush1.xpose.msra.mxu0 0.0
        %2187 = vmatprep.subr.mxu0 0.0
        %2188 = vmatpush1.xpose.msra.mxu0 0.0
        %2189 = vmatprep.subr.mxu0 0.0
        %2190 = vmatpush1.xpose.msra.mxu0 0.0
        %2191 = vmatprep.subr.mxu0 0.0
        %2192 = vmatpush1.xpose.msra.mxu0 0.0
        %2193 = vmatprep.subr.mxu0 0.0
        %2194 = vmatpush1.xpose.msra.mxu0 0.0
        %2195 = vmatprep.subr.mxu0 0.0
        %2196 = vmatpush1.xpose.msra.mxu0 0.0
        %2197 = vmatprep.subr.mxu0 0.0
        %2198 = vmatpush1.xpose.msra.mxu0 0.0
        %2199 = vmatprep.subr.mxu0 0.0
        %2200 = vmatpush1.xpose.msra.mxu0 0.0
        %2201 = vmatprep.subr.mxu0 0.0
        %2202 = vmatpush1.xpose.msra.mxu0 0.0
        %2203 = vmatprep.subr.mxu0 0.0
        %2204 = vmatpush1.xpose.msra.mxu0 0.0
        %2205 = vmatprep.subr.mxu0 0.0
        %2206 = vmatpush1.xpose.msra.mxu0 0.0
        %2207 = vmatprep.subr.mxu0 0.0
        %2208 = vmatpush1.xpose.msra.mxu0 0.0
        %2209 = vmatprep.subr.mxu0 0.0
        %2210 = vmatpush1.xpose.msra.mxu0 0.0
        %2211 = vmatprep.subr.mxu0 0.0
        %2212 = vmatpush1.xpose.msra.mxu0 0.0
        %2213 = vmatprep.subr.mxu0 0.0
        %2214 = vmatpush1.xpose.msra.mxu0 0.0
        %2215 = vmatprep.subr.mxu0 0.0
        %2216 = vmatpush1.xpose.msra.mxu0 0.0
        %2217 = vmatprep.subr.mxu0 0.0
        %2218 = vmatpush1.xpose.msra.mxu0 0.0
        %2219 = vmatprep.subr.mxu0 0.0
        %2220 = vmatpush1.xpose.msra.mxu0 0.0
        %2221 = vmatprep.subr.mxu0 0.0
        %2222 = vmatpush1.xpose.msra.mxu0 0.0
        %2223 = vmatprep.subr.mxu0 0.0
        %2224 = vmatpush1.xpose.msra.mxu0 0.0
        %2225 = vmatprep.subr.mxu0 0.0
        %2226 = vmatpush1.xpose.msra.mxu0 0.0
        %2227 = vmatprep.subr.mxu0 0.0
        %2228 = vmatpush1.xpose.msra.mxu0 0.0
        %2229 = vmatprep.subr.mxu0 0.0
        %2230 = vmatpush1.xpose.msra.mxu0 0.0
        %2231 = vmatprep.subr.mxu0 0.0
        %2232 = vmatpush1.xpose.msra.mxu0 0.0
        %2233 = vmatprep.mubr.f32.mxu0 0.0
        %2234 = vmatmul.mubr.f32.gmra.mrb[0].mxu0 %v2163
        %v2235 = vpop.f32.mrb[0].mxu0
        %v2236 = vadd.f32 %v2010, %v2235
        %v2237 = vpop.f32.mrb[0].mxu0
        %2238 = vdwg.mxu0
        %v2239 = vsel %vm1018, %v1995, 0
        %v2241 = vsel %vm1018, %v2007, 0
        %v2243 = vsel %vm1018, %v2009, 0
        %2245 = vmatprep.subr.mxu0 0.0
        %2246 = vmatpush1.xpose.msra.mxu0 %v2241
        %2247 = vmatprep.subr.mxu0 0.0
        %2248 = vmatpush1.xpose.msra.mxu0 %v2243
        %2249 = vmatprep.subr.mxu0 0.0
        %2250 = vmatpush1.xpose.msra.mxu0 0.0
        %2251 = vmatprep.subr.mxu0 0.0
        %2252 = vmatpush1.xpose.msra.mxu0 0.0
        %2253 = vmatprep.subr.mxu0 0.0
        %2254 = vmatpush1.xpose.msra.mxu0 0.0
        %2255 = vmatprep.subr.mxu0 0.0
        %2256 = vmatpush1.xpose.msra.mxu0 0.0
        %2257 = vmatprep.subr.mxu0 0.0
        %2258 = vmatpush1.xpose.msra.mxu0 0.0
        %2259 = vmatprep.subr.mxu0 0.0
        %2260 = vmatpush1.xpose.msra.mxu0 0.0
        %2261 = vmatprep.subr.mxu0 0.0
        %2262 = vmatpush1.xpose.msra.mxu0 0.0
        %2263 = vmatprep.subr.mxu0 0.0
        %2264 = vmatpush1.xpose.msra.mxu0 0.0
        %2265 = vmatprep.subr.mxu0 0.0
        %2266 = vmatpush1.xpose.msra.mxu0 0.0
        %2267 = vmatprep.subr.mxu0 0.0
        %2268 = vmatpush1.xpose.msra.mxu0 0.0
        %2269 = vmatprep.subr.mxu0 0.0
        %2270 = vmatpush1.xpose.msra.mxu0 0.0
        %2271 = vmatprep.subr.mxu0 0.0
        %2272 = vmatpush1.xpose.msra.mxu0 0.0
        %2273 = vmatprep.subr.mxu0 0.0
        %2274 = vmatpush1.xpose.msra.mxu0 0.0
        %2275 = vmatprep.subr.mxu0 0.0
        %2276 = vmatpush1.xpose.msra.mxu0 0.0
        %2277 = vmatprep.subr.mxu0 0.0
        %2278 = vmatpush1.xpose.msra.mxu0 0.0
        %2279 = vmatprep.subr.mxu0 0.0
        %2280 = vmatpush1.xpose.msra.mxu0 0.0
        %2281 = vmatprep.subr.mxu0 0.0
        %2282 = vmatpush1.xpose.msra.mxu0 0.0
        %2283 = vmatprep.subr.mxu0 0.0
        %2284 = vmatpush1.xpose.msra.mxu0 0.0
        %2285 = vmatprep.subr.mxu0 0.0
        %2286 = vmatpush1.xpose.msra.mxu0 0.0
        %2287 = vmatprep.subr.mxu0 0.0
        %2288 = vmatpush1.xpose.msra.mxu0 0.0
        %2289 = vmatprep.subr.mxu0 0.0
        %2290 = vmatpush1.xpose.msra.mxu0 0.0
        %2291 = vmatprep.subr.mxu0 0.0
        %2292 = vmatpush1.xpose.msra.mxu0 0.0
        %2293 = vmatprep.subr.mxu0 0.0
        %2294 = vmatpush1.xpose.msra.mxu0 0.0
        %2295 = vmatprep.subr.mxu0 0.0
        %2296 = vmatpush1.xpose.msra.mxu0 0.0
        %2297 = vmatprep.subr.mxu0 0.0
        %2298 = vmatpush1.xpose.msra.mxu0 0.0
        %2299 = vmatprep.subr.mxu0 0.0
        %2300 = vmatpush1.xpose.msra.mxu0 0.0
        %2301 = vmatprep.subr.mxu0 0.0
        %2302 = vmatpush1.xpose.msra.mxu0 0.0
        %2303 = vmatprep.subr.mxu0 0.0
        %2304 = vmatpush1.xpose.msra.mxu0 0.0
        %2305 = vmatprep.subr.mxu0 0.0
        %2306 = vmatpush1.xpose.msra.mxu0 0.0
        %2307 = vmatprep.subr.mxu0 0.0
        %2308 = vmatpush1.xpose.msra.mxu0 0.0
        %2309 = vmatprep.mubr.f32.mxu0 0.0
        %2310 = vmatmul.mubr.f32.gmra.mrb[0].mxu0 %v2239
        %v2311 = vpop.f32.mrb[0].mxu0
        %v2312 = vadd.f32 %v2010, %v2311
        %v2313 = vpop.f32.mrb[0].mxu0
        %2314 = vdwg.mxu0
        %v2315 = vsel %vm1682, %v2084, -inf
        %2316 = vmax.xlane.f32.xlu0 %v2315
        %v2317 = vpop.xlane.xlu0 %2316
        %v2318 = vsel %vm1682, %v2160, -inf
        %2319 = vmax.xlane.f32.xlu0 %v2318
        %v2320 = vpop.xlane.xlu0 %2319
        %v2321 = vsel %vm1682, %v2236, -inf
        %2322 = vmax.xlane.f32.xlu0 %v2321
        %v2323 = vpop.xlane.xlu0 %2322
        %v2324 = vsel %vm1682, %v2312, -inf
        %2325 = vmax.xlane.f32.xlu0 %v2324
        %v2326 = vpop.xlane.xlu0 %2325
        %v2327 = vsub.f32 %v2084, %v2317
        %v2328 = vsub.f32 %v2160, %v2320
        %v2329 = vsub.f32 %v2236, %v2323
        %v2330 = vsub.f32 %v2312, %v2326
        %v2331 = vmul.f32 %v2327, 1.442695
        %v2332 = vpow.pop %v2331
        %v2333 = vmul.f32 %v2328, 1.442695
        %v2334 = vpow.pop %v2333
        %v2335 = vmul.f32 %v2329, 1.442695
        %v2336 = vpow.pop %v2335
        %v2337 = vmul.f32 %v2330, 1.442695
        %v2338 = vpow.pop %v2337
        %v2339 = vsel %vm1682, %v2332, 0.0
        %2340 = vadd.xlane.f32.xlu0 %v2339
        %v2341 = vpop.xlane.xlu0 %2340
        %v2342 = vsel %vm1682, %v2334, 0.0
        %2343 = vadd.xlane.f32.xlu0 %v2342
        %v2344 = vpop.xlane.xlu0 %2343
        %v2345 = vsel %vm1682, %v2336, 0.0
        %2346 = vadd.xlane.f32.xlu0 %v2345
        %v2347 = vpop.xlane.xlu0 %2346
        %v2348 = vsel %vm1682, %v2338, 0.0
        %2349 = vadd.xlane.f32.xlu0 %v2348
        %v2350 = vpop.xlane.xlu0 %2349
        %v2351 = vrcp.pop %v2341
        %v2352 = vrcp.pop %v2344
        %v2353 = vrcp.pop %v2347
        %v2354 = vrcp.pop %v2350
        %v2355 = vmul.f32 %v2332, %v2351
        %v2356 = vmul.f32 %v2334, %v2352
        %v2357 = vmul.f32 %v2336, %v2353
        %v2358 = vmul.f32 %v2338, %v2354
        %2359 = vrot.lane.b32.xlu0 %v1973, 96
        %v2360 = vpop.permute.xlu0 %2359
        %2361 = vrot.lane.b32.xlu0 %v1978, 96
        %v2362 = vpop.permute.xlu0 %2361
        %v2366 = vsel %vm1682, %v2355, 0
        %2368 = vmatprep.subr.mxu0 0.0
        %2369 = vmatpush1.msra.mxu0 %v2360
        %2370 = vmatprep.subr.mxu0 0.0
        %2371 = vmatpush1.msra.mxu0 %v2362
        %2372 = vmatprep.subr.mxu0 0.0
        %2373 = vmatpush1.msra.mxu0 0.0
        %2374 = vmatprep.subr.mxu0 0.0
        %2375 = vmatpush1.msra.mxu0 0.0
        %2376 = vmatprep.subr.mxu0 0.0
        %2377 = vmatpush1.msra.mxu0 0.0
        %2378 = vmatprep.subr.mxu0 0.0
        %2379 = vmatpush1.msra.mxu0 0.0
        %2380 = vmatprep.subr.mxu0 0.0
        %2381 = vmatpush1.msra.mxu0 0.0
        %2382 = vmatprep.subr.mxu0 0.0
        %2383 = vmatpush1.msra.mxu0 0.0
        %2384 = vmatprep.subr.mxu0 0.0
        %2385 = vmatpush1.msra.mxu0 0.0
        %2386 = vmatprep.subr.mxu0 0.0
        %2387 = vmatpush1.msra.mxu0 0.0
        %2388 = vmatprep.subr.mxu0 0.0
        %2389 = vmatpush1.msra.mxu0 0.0
        %2390 = vmatprep.subr.mxu0 0.0
        %2391 = vmatpush1.msra.mxu0 0.0
        %2392 = vmatprep.subr.mxu0 0.0
        %2393 = vmatpush1.msra.mxu0 0.0
        %2394 = vmatprep.subr.mxu0 0.0
        %2395 = vmatpush1.msra.mxu0 0.0
        %2396 = vmatprep.subr.mxu0 0.0
        %2397 = vmatpush1.msra.mxu0 0.0
        %2398 = vmatprep.subr.mxu0 0.0
        %2399 = vmatpush1.msra.mxu0 0.0
        %2400 = vmatprep.subr.mxu0 0.0
        %2401 = vmatpush1.msra.mxu0 0.0
        %2402 = vmatprep.subr.mxu0 0.0
        %2403 = vmatpush1.msra.mxu0 0.0
        %2404 = vmatprep.subr.mxu0 0.0
        %2405 = vmatpush1.msra.mxu0 0.0
        %2406 = vmatprep.subr.mxu0 0.0
        %2407 = vmatpush1.msra.mxu0 0.0
        %2408 = vmatprep.subr.mxu0 0.0
        %2409 = vmatpush1.msra.mxu0 0.0
        %2410 = vmatprep.subr.mxu0 0.0
        %2411 = vmatpush1.msra.mxu0 0.0
        %2412 = vmatprep.subr.mxu0 0.0
        %2413 = vmatpush1.msra.mxu0 0.0
        %2414 = vmatprep.subr.mxu0 0.0
        %2415 = vmatpush1.msra.mxu0 0.0
        %2416 = vmatprep.subr.mxu0 0.0
        %2417 = vmatpush1.msra.mxu0 0.0
        %2418 = vmatprep.subr.mxu0 0.0
        %2419 = vmatpush1.msra.mxu0 0.0
        %2420 = vmatprep.subr.mxu0 0.0
        %2421 = vmatpush1.msra.mxu0 0.0
        %2422 = vmatprep.subr.mxu0 0.0
        %2423 = vmatpush1.msra.mxu0 0.0
        %2424 = vmatprep.subr.mxu0 0.0
        %2425 = vmatpush1.msra.mxu0 0.0
        %2426 = vmatprep.subr.mxu0 0.0
        %2427 = vmatpush1.msra.mxu0 0.0
        %2428 = vmatprep.subr.mxu0 0.0
        %2429 = vmatpush1.msra.mxu0 0.0
        %2430 = vmatprep.subr.mxu0 0.0
        %2431 = vmatpush1.msra.mxu0 0.0
        %2432 = vmatprep.mubr.f32.mxu0 0.0
        %2433 = vmatmul.mubr.f32.gmra.mrb[0].mxu0 %v2366
        %v2434 = vpop.f32.mrb[0].mxu0
        %v2435 = vadd.f32 0.0, %v2434
        %v2436 = vpop.f32.mrb[0].mxu0
        %2437 = vdwg.mxu0
        %2438 = vrot.lane.b32.xlu0 %v1999, 96
        %v2439 = vpop.permute.xlu0 %2438
        %2440 = vrot.lane.b32.xlu0 %v2001, 96
        %v2441 = vpop.permute.xlu0 %2440
        %v2445 = vsel %vm1682, %v2356, 0
        %2447 = vmatprep.subr.mxu0 0.0
        %2448 = vmatpush1.msra.mxu0 %v2439
        %2449 = vmatprep.subr.mxu0 0.0
        %2450 = vmatpush1.msra.mxu0 %v2441
        %2451 = vmatprep.subr.mxu0 0.0
        %2452 = vmatpush1.msra.mxu0 0.0
        %2453 = vmatprep.subr.mxu0 0.0
        %2454 = vmatpush1.msra.mxu0 0.0
        %2455 = vmatprep.subr.mxu0 0.0
        %2456 = vmatpush1.msra.mxu0 0.0
        %2457 = vmatprep.subr.mxu0 0.0
        %2458 = vmatpush1.msra.mxu0 0.0
        %2459 = vmatprep.subr.mxu0 0.0
        %2460 = vmatpush1.msra.mxu0 0.0
        %2461 = vmatprep.subr.mxu0 0.0
        %2462 = vmatpush1.msra.mxu0 0.0
        %2463 = vmatprep.subr.mxu0 0.0
        %2464 = vmatpush1.msra.mxu0 0.0
        %2465 = vmatprep.subr.mxu0 0.0
        %2466 = vmatpush1.msra.mxu0 0.0
        %2467 = vmatprep.subr.mxu0 0.0
        %2468 = vmatpush1.msra.mxu0 0.0
        %2469 = vmatprep.subr.mxu0 0.0
        %2470 = vmatpush1.msra.mxu0 0.0
        %2471 = vmatprep.subr.mxu0 0.0
        %2472 = vmatpush1.msra.mxu0 0.0
        %2473 = vmatprep.subr.mxu0 0.0
        %2474 = vmatpush1.msra.mxu0 0.0
        %2475 = vmatprep.subr.mxu0 0.0
        %2476 = vmatpush1.msra.mxu0 0.0
        %2477 = vmatprep.subr.mxu0 0.0
        %2478 = vmatpush1.msra.mxu0 0.0
        %2479 = vmatprep.subr.mxu0 0.0
        %2480 = vmatpush1.msra.mxu0 0.0
        %2481 = vmatprep.subr.mxu0 0.0
        %2482 = vmatpush1.msra.mxu0 0.0
        %2483 = vmatprep.subr.mxu0 0.0
        %2484 = vmatpush1.msra.mxu0 0.0
        %2485 = vmatprep.subr.mxu0 0.0
        %2486 = vmatpush1.msra.mxu0 0.0
        %2487 = vmatprep.subr.mxu0 0.0
        %2488 = vmatpush1.msra.mxu0 0.0
        %2489 = vmatprep.subr.mxu0 0.0
        %2490 = vmatpush1.msra.mxu0 0.0
        %2491 = vmatprep.subr.mxu0 0.0
        %2492 = vmatpush1.msra.mxu0 0.0
        %2493 = vmatprep.subr.mxu0 0.0
        %2494 = vmatpush1.msra.mxu0 0.0
        %2495 = vmatprep.subr.mxu0 0.0
        %2496 = vmatpush1.msra.mxu0 0.0
        %2497 = vmatprep.subr.mxu0 0.0
        %2498 = vmatpush1.msra.mxu0 0.0
        %2499 = vmatprep.subr.mxu0 0.0
        %2500 = vmatpush1.msra.mxu0 0.0
        %2501 = vmatprep.subr.mxu0 0.0
        %2502 = vmatpush1.msra.mxu0 0.0
        %2503 = vmatprep.subr.mxu0 0.0
        %2504 = vmatpush1.msra.mxu0 0.0
        %2505 = vmatprep.subr.mxu0 0.0
        %2506 = vmatpush1.msra.mxu0 0.0
        %2507 = vmatprep.subr.mxu0 0.0
        %2508 = vmatpush1.msra.mxu0 0.0
        %2509 = vmatprep.subr.mxu0 0.0
        %2510 = vmatpush1.msra.mxu0 0.0
        %2511 = vmatprep.mubr.f32.mxu0 0.0
        %2512 = vmatmul.mubr.f32.gmra.mrb[0].mxu0 %v2445
        %v2513 = vpop.f32.mrb[0].mxu0
        %v2514 = vadd.f32 0.0, %v2513
        %v2515 = vpop.f32.mrb[0].mxu0
        %2516 = vdwg.mxu0
        %2517 = vrot.lane.b32.xlu0 %v2003, 96
        %v2518 = vpop.permute.xlu0 %2517
        %2519 = vrot.lane.b32.xlu0 %v2005, 96
        %v2520 = vpop.permute.xlu0 %2519
        %v2524 = vsel %vm1682, %v2357, 0
        %2526 = vmatprep.subr.mxu0 0.0
        %2527 = vmatpush1.msra.mxu0 %v2518
        %2528 = vmatprep.subr.mxu0 0.0
        %2529 = vmatpush1.msra.mxu0 %v2520
        %2530 = vmatprep.subr.mxu0 0.0
        %2531 = vmatpush1.msra.mxu0 0.0
        %2532 = vmatprep.subr.mxu0 0.0
        %2533 = vmatpush1.msra.mxu0 0.0
        %2534 = vmatprep.subr.mxu0 0.0
        %2535 = vmatpush1.msra.mxu0 0.0
        %2536 = vmatprep.subr.mxu0 0.0
        %2537 = vmatpush1.msra.mxu0 0.0
        %2538 = vmatprep.subr.mxu0 0.0
        %2539 = vmatpush1.msra.mxu0 0.0
        %2540 = vmatprep.subr.mxu0 0.0
        %2541 = vmatpush1.msra.mxu0 0.0
        %2542 = vmatprep.subr.mxu0 0.0
        %2543 = vmatpush1.msra.mxu0 0.0
        %2544 = vmatprep.subr.mxu0 0.0
        %2545 = vmatpush1.msra.mxu0 0.0
        %2546 = vmatprep.subr.mxu0 0.0
        %2547 = vmatpush1.msra.mxu0 0.0
        %2548 = vmatprep.subr.mxu0 0.0
        %2549 = vmatpush1.msra.mxu0 0.0
        %2550 = vmatprep.subr.mxu0 0.0
        %2551 = vmatpush1.msra.mxu0 0.0
        %2552 = vmatprep.subr.mxu0 0.0
        %2553 = vmatpush1.msra.mxu0 0.0
        %2554 = vmatprep.subr.mxu0 0.0
        %2555 = vmatpush1.msra.mxu0 0.0
        %2556 = vmatprep.subr.mxu0 0.0
        %2557 = vmatpush1.msra.mxu0 0.0
        %2558 = vmatprep.subr.mxu0 0.0
        %2559 = vmatpush1.msra.mxu0 0.0
        %2560 = vmatprep.subr.mxu0 0.0
        %2561 = vmatpush1.msra.mxu0 0.0
        %2562 = vmatprep.subr.mxu0 0.0
        %2563 = vmatpush1.msra.mxu0 0.0
        %2564 = vmatprep.subr.mxu0 0.0
        %2565 = vmatpush1.msra.mxu0 0.0
        %2566 = vmatprep.subr.mxu0 0.0
        %2567 = vmatpush1.msra.mxu0 0.0
        %2568 = vmatprep.subr.mxu0 0.0
        %2569 = vmatpush1.msra.mxu0 0.0
        %2570 = vmatprep.subr.mxu0 0.0
        %2571 = vmatpush1.msra.mxu0 0.0
        %2572 = vmatprep.subr.mxu0 0.0
        %2573 = vmatpush1.msra.mxu0 0.0
        %2574 = vmatprep.subr.mxu0 0.0
        %2575 = vmatpush1.msra.mxu0 0.0
        %2576 = vmatprep.subr.mxu0 0.0
        %2577 = vmatpush1.msra.mxu0 0.0
        %2578 = vmatprep.subr.mxu0 0.0
        %2579 = vmatpush1.msra.mxu0 0.0
        %2580 = vmatprep.subr.mxu0 0.0
        %2581 = vmatpush1.msra.mxu0 0.0
        %2582 = vmatprep.subr.mxu0 0.0
        %2583 = vmatpush1.msra.mxu0 0.0
        %2584 = vmatprep.subr.mxu0 0.0
        %2585 = vmatpush1.msra.mxu0 0.0
        %2586 = vmatprep.subr.mxu0 0.0
        %2587 = vmatpush1.msra.mxu0 0.0
        %2588 = vmatprep.subr.mxu0 0.0
        %2589 = vmatpush1.msra.mxu0 0.0
        %2590 = vmatprep.mubr.f32.mxu0 0.0
        %2591 = vmatmul.mubr.f32.gmra.mrb[0].mxu0 %v2524
        %v2592 = vpop.f32.mrb[0].mxu0
        %v2593 = vadd.f32 0.0, %v2592
        %v2594 = vpop.f32.mrb[0].mxu0
        %2595 = vdwg.mxu0
        %2596 = vrot.lane.b32.xlu0 %v2007, 96
        %v2597 = vpop.permute.xlu0 %2596
        %2598 = vrot.lane.b32.xlu0 %v2009, 96
        %v2599 = vpop.permute.xlu0 %2598
        %v2603 = vsel %vm1682, %v2358, 0
        %2605 = vmatprep.subr.mxu0 0.0
        %2606 = vmatpush1.msra.mxu0 %v2597
        %2607 = vmatprep.subr.mxu0 0.0
        %2608 = vmatpush1.msra.mxu0 %v2599
        %2609 = vmatprep.subr.mxu0 0.0
        %2610 = vmatpush1.msra.mxu0 0.0
        %2611 = vmatprep.subr.mxu0 0.0
        %2612 = vmatpush1.msra.mxu0 0.0
        %2613 = vmatprep.subr.mxu0 0.0
        %2614 = vmatpush1.msra.mxu0 0.0
        %2615 = vmatprep.subr.mxu0 0.0
        %2616 = vmatpush1.msra.mxu0 0.0
        %2617 = vmatprep.subr.mxu0 0.0
        %2618 = vmatpush1.msra.mxu0 0.0
        %2619 = vmatprep.subr.mxu0 0.0
        %2620 = vmatpush1.msra.mxu0 0.0
        %2621 = vmatprep.subr.mxu0 0.0
        %2622 = vmatpush1.msra.mxu0 0.0
        %2623 = vmatprep.subr.mxu0 0.0
        %2624 = vmatpush1.msra.mxu0 0.0
        %2625 = vmatprep.subr.mxu0 0.0
        %2626 = vmatpush1.msra.mxu0 0.0
        %2627 = vmatprep.subr.mxu0 0.0
        %2628 = vmatpush1.msra.mxu0 0.0
        %2629 = vmatprep.subr.mxu0 0.0
        %2630 = vmatpush1.msra.mxu0 0.0
        %2631 = vmatprep.subr.mxu0 0.0
        %2632 = vmatpush1.msra.mxu0 0.0
        %2633 = vmatprep.subr.mxu0 0.0
        %2634 = vmatpush1.msra.mxu0 0.0
        %2635 = vmatprep.subr.mxu0 0.0
        %2636 = vmatpush1.msra.mxu0 0.0
        %2637 = vmatprep.subr.mxu0 0.0
        %2638 = vmatpush1.msra.mxu0 0.0
        %2639 = vmatprep.subr.mxu0 0.0
        %2640 = vmatpush1.msra.mxu0 0.0
        %2641 = vmatprep.subr.mxu0 0.0
        %2642 = vmatpush1.msra.mxu0 0.0
        %2643 = vmatprep.subr.mxu0 0.0
        %2644 = vmatpush1.msra.mxu0 0.0
        %2645 = vmatprep.subr.mxu0 0.0
        %2646 = vmatpush1.msra.mxu0 0.0
        %2647 = vmatprep.subr.mxu0 0.0
        %2648 = vmatpush1.msra.mxu0 0.0
        %2649 = vmatprep.subr.mxu0 0.0
        %2650 = vmatpush1.msra.mxu0 0.0
        %2651 = vmatprep.subr.mxu0 0.0
        %2652 = vmatpush1.msra.mxu0 0.0
        %2653 = vmatprep.subr.mxu0 0.0
        %2654 = vmatpush1.msra.mxu0 0.0
        %2655 = vmatprep.subr.mxu0 0.0
        %2656 = vmatpush1.msra.mxu0 0.0
        %2657 = vmatprep.subr.mxu0 0.0
        %2658 = vmatpush1.msra.mxu0 0.0
        %2659 = vmatprep.subr.mxu0 0.0
        %2660 = vmatpush1.msra.mxu0 0.0
        %2661 = vmatprep.subr.mxu0 0.0
        %2662 = vmatpush1.msra.mxu0 0.0
        %2663 = vmatprep.subr.mxu0 0.0
        %2664 = vmatpush1.msra.mxu0 0.0
        %2665 = vmatprep.subr.mxu0 0.0
        %2666 = vmatpush1.msra.mxu0 0.0
        %2667 = vmatprep.subr.mxu0 0.0
        %2668 = vmatpush1.msra.mxu0 0.0
        %2669 = vmatprep.mubr.f32.mxu0 0.0
        %2670 = vmatmul.mubr.f32.gmra.mrb[0].mxu0 %v2603
        %v2671 = vpop.f32.mrb[0].mxu0
        %v2672 = vadd.f32 0.0, %v2671
        %v2673 = vpop.f32.mrb[0].mxu0
        %2674 = vdwg.mxu0
        %2676 = vrot.lane.b32.xlu0 %v2514, 8
        %v2677 = vpop.permute.xlu0 %2676
        %2680 = vrot.lane.b32.xlu0 %v2593, 16
        %v2681 = vpop.permute.xlu0 %2680
        %2684 = vrot.lane.b32.xlu0 %v2672, 24
        %v2685 = vpop.permute.xlu0 %2684
        %v2687 = vsel %vm1018, %v2435, %v2677
        %v2688 = vsel %vm1682, %v2687, %v2681
        %v2689 = vsel %vm1684, %v2688, %v2685
        %v2691 = vlaneseq
        %v2692 = vshrl.u32 %v2691, 7
        %v2693 = vsub.s32 0, %v2692
        %v2694 = vrot.slane %v1986, %v2693
        %v2697 = vsel %vm918, %v2689, 0
        %2699 = vmatprep.subr.mxu0 0.0
        %2700 = vmatpush1.msra.mxu0 %v1982
        %2701 = vmatprep.subr.mxu0 0.0
        %2702 = vmatpush1.msra.mxu0 %v1983
        %2703 = vmatprep.subr.mxu0 0.0
        %2704 = vmatpush1.msra.mxu0 %v1984
        %2705 = vmatprep.subr.mxu0 0.0
        %2706 = vmatpush1.msra.mxu0 %v1985
        %2707 = vmatprep.subr.mxu0 0.0
        %2708 = vmatpush1.msra.mxu0 0.0
        %2709 = vmatprep.subr.mxu0 0.0
        %2710 = vmatpush1.msra.mxu0 0.0
        %2711 = vmatprep.subr.mxu0 0.0
        %2712 = vmatpush1.msra.mxu0 0.0
        %2713 = vmatprep.subr.mxu0 0.0
        %2714 = vmatpush1.msra.mxu0 0.0
        %2715 = vmatprep.subr.mxu0 0.0
        %2716 = vmatpush1.msra.mxu0 0.0
        %2717 = vmatprep.subr.mxu0 0.0
        %2718 = vmatpush1.msra.mxu0 0.0
        %2719 = vmatprep.subr.mxu0 0.0
        %2720 = vmatpush1.msra.mxu0 0.0
        %2721 = vmatprep.subr.mxu0 0.0
        %2722 = vmatpush1.msra.mxu0 0.0
        %2723 = vmatprep.subr.mxu0 0.0
        %2724 = vmatpush1.msra.mxu0 0.0
        %2725 = vmatprep.subr.mxu0 0.0
        %2726 = vmatpush1.msra.mxu0 0.0
        %2727 = vmatprep.subr.mxu0 0.0
        %2728 = vmatpush1.msra.mxu0 0.0
        %2729 = vmatprep.subr.mxu0 0.0
        %2730 = vmatpush1.msra.mxu0 0.0
        %2731 = vmatprep.subr.mxu0 0.0
        %2732 = vmatpush1.msra.mxu0 0.0
        %2733 = vmatprep.subr.mxu0 0.0
        %2734 = vmatpush1.msra.mxu0 0.0
        %2735 = vmatprep.subr.mxu0 0.0
        %2736 = vmatpush1.msra.mxu0 0.0
        %2737 = vmatprep.subr.mxu0 0.0
        %2738 = vmatpush1.msra.mxu0 0.0
        %2739 = vmatprep.subr.mxu0 0.0
        %2740 = vmatpush1.msra.mxu0 0.0
        %2741 = vmatprep.subr.mxu0 0.0
        %2742 = vmatpush1.msra.mxu0 0.0
        %2743 = vmatprep.subr.mxu0 0.0
        %2744 = vmatpush1.msra.mxu0 0.0
        %2745 = vmatprep.subr.mxu0 0.0
        %2746 = vmatpush1.msra.mxu0 0.0
        %2747 = vmatprep.subr.mxu0 0.0
        %2748 = vmatpush1.msra.mxu0 0.0
        %2749 = vmatprep.subr.mxu0 0.0
        %2750 = vmatpush1.msra.mxu0 0.0
        %2751 = vmatprep.subr.mxu0 0.0
        %2752 = vmatpush1.msra.mxu0 0.0
        %2753 = vmatprep.subr.mxu0 0.0
        %2754 = vmatpush1.msra.mxu0 0.0
        %2755 = vmatprep.subr.mxu0 0.0
        %2756 = vmatpush1.msra.mxu0 0.0
        %2757 = vmatprep.subr.mxu0 0.0
        %2758 = vmatpush1.msra.mxu0 0.0
        %2759 = vmatprep.subr.mxu0 0.0
        %2760 = vmatpush1.msra.mxu0 0.0
        %2761 = vmatprep.subr.mxu0 0.0
        %2762 = vmatpush1.msra.mxu0 0.0
        %2763 = vmatprep.mubr.f32.mxu0 0.0
        %2764 = vmatmul.mubr.f32.gmra.mrb[0].mxu0 %v2697
        %v2765 = vpop.f32.mrb[0].mxu0
        %v2766 = vadd.f32 %v2694, %v2765
        %v2767 = vpop.f32.mrb[0].mxu0
        %2768 = vdwg.mxu0
        %v2769 = vadd.f32 %v2766, %v1803
        %v2770 = vsel %vm918, %v2769, 0.0
        %2771 = vadd.xlane.f32.xlu0 %v2770
        %v2772 = vpop.xlane.xlu0 %2771
        %v2773 = vmul.f32 %v2772, %v1769
        %v2774 = vsub.f32 %v2769, %v2773
        %v2775 = vmul.f32 %v2774, %v2774
        %v2776 = vsel %vm918, %v2775, 0.0
        %2777 = vadd.xlane.f32.xlu0 %v2776
        %v2778 = vpop.xlane.xlu0 %2777
        %v2779 = vmul.f32 %v2778, %v1769
        %v2780 = vadd.f32 %v2779, 1e-05
        %v2781 = vrsqrt.pop %v2780
        %v2782 = vmul.f32 %v2774, %v2781
        %v2784 = vlaneseq
        %v2785 = vshrl.u32 %v2784, 7
        %v2786 = vsub.s32 0, %v2785
        %v2787 = vrot.slane %v1987, %v2786
        %v2789 = vmul.f32 %v2782, %v2787
        %v2791 = vlaneseq
        %v2792 = vshrl.u32 %v2791, 7
        %v2793 = vsub.s32 0, %v2792
        %v2794 = vrot.slane %v1988, %v2793
        %v2796 = vadd.f32 %v2789, %v2794
        %2797 = vst.msk [vmem:[%s881] sm:$0xff] %vm1682, %v2355
        %2798 = vst.msk [vmem:[%s881 + $0x8] sm:$0xff] %vm1682, %v2356
        %2799 = vst.msk [vmem:[%s881 + $0x10] sm:$0xff] %vm1682, %v2357
        %2800 = vst.msk [vmem:[%s881 + $0x18] sm:$0xff] %vm1682, %v2358
        %v2801 = vmul.f32 %v2796, %v1801
        %v2802 = vld [vmem:[%s19] sm:$0xff]
        %v2803 = vld [vmem:[%s19 + $0x8] sm:$0xff]
        %v2804 = vld [vmem:[%s19 + $0x10] sm:$0xff]
        %v2805 = vld [vmem:[%s19 + $0x18] sm:$0xff]
        %v2806 = vld [vmem:[%s20] sm:$0x1]
        %v2808 = vlaneseq
        %v2809 = vshrl.u32 %v2808, 7
        %v2810 = vsub.s32 0, %v2809
        %v2811 = vrot.slane %v2806, %v2810
        %v2814 = vsel %vm918, %v2801, 0
        %2816 = vmatprep.subr.mxu0 0.0
        %2817 = vmatpush1.msra.mxu0 %v2802
        %2818 = vmatprep.subr.mxu0 0.0
        %2819 = vmatpush1.msra.mxu0 %v2803
        %2820 = vmatprep.subr.mxu0 0.0
        %2821 = vmatpush1.msra.mxu0 %v2804
        %2822 = vmatprep.subr.mxu0 0.0
        %2823 = vmatpush1.msra.mxu0 %v2805
        %2824 = vmatprep.subr.mxu0 0.0
        %2825 = vmatpush1.msra.mxu0 0.0
        %2826 = vmatprep.subr.mxu0 0.0
        %2827 = vmatpush1.msra.mxu0 0.0
        %2828 = vmatprep.subr.mxu0 0.0
        %2829 = vmatpush1.msra.mxu0 0.0
        %2830 = vmatprep.subr.mxu0 0.0
        %2831 = vmatpush1.msra.mxu0 0.0
        %2832 = vmatprep.subr.mxu0 0.0
        %2833 = vmatpush1.msra.mxu0 0.0
        %2834 = vmatprep.subr.mxu0 0.0
        %2835 = vmatpush1.msra.mxu0 0.0
        %2836 = vmatprep.subr.mxu0 0.0
        %2837 = vmatpush1.msra.mxu0 0.0
        %2838 = vmatprep.subr.mxu0 0.0
        %2839 = vmatpush1.msra.mxu0 0.0
        %2840 = vmatprep.subr.mxu0 0.0
        %2841 = vmatpush1.msra.mxu0 0.0
        %2842 = vmatprep.subr.mxu0 0.0
        %2843 = vmatpush1.msra.mxu0 0.0
        %2844 = vmatprep.subr.mxu0 0.0
        %2845 = vmatpush1.msra.mxu0 0.0
        %2846 = vmatprep.subr.mxu0 0.0
        %2847 = vmatpush1.msra.mxu0 0.0
        %2848 = vmatprep.subr.mxu0 0.0
        %2849 = vmatpush1.msra.mxu0 0.0
        %2850 = vmatprep.subr.mxu0 0.0
        %2851 = vmatpush1.msra.mxu0 0.0
        %2852 = vmatprep.subr.mxu0 0.0
        %2853 = vmatpush1.msra.mxu0 0.0
        %2854 = vmatprep.subr.mxu0 0.0
        %2855 = vmatpush1.msra.mxu0 0.0
        %2856 = vmatprep.subr.mxu0 0.0
        %2857 = vmatpush1.msra.mxu0 0.0
        %2858 = vmatprep.subr.mxu0 0.0
        %2859 = vmatpush1.msra.mxu0 0.0
        %2860 = vmatprep.subr.mxu0 0.0
        %2861 = vmatpush1.msra.mxu0 0.0
        %2862 = vmatprep.subr.mxu0 0.0
        %2863 = vmatpush1.msra.mxu0 0.0
        %2864 = vmatprep.subr.mxu0 0.0
        %2865 = vmatpush1.msra.mxu0 0.0
        %2866 = vmatprep.subr.mxu0 0.0
        %2867 = vmatpush1.msra.mxu0 0.0
        %2868 = vmatprep.subr.mxu0 0.0
        %2869 = vmatpush1.msra.mxu0 0.0
        %2870 = vmatprep.subr.mxu0 0.0
        %2871 = vmatpush1.msra.mxu0 0.0
        %2872 = vmatprep.subr.mxu0 0.0
        %2873 = vmatpush1.msra.mxu0 0.0
        %2874 = vmatprep.subr.mxu0 0.0
        %2875 = vmatpush1.msra.mxu0 0.0
        %2876 = vmatprep.subr.mxu0 0.0
        %2877 = vmatpush1.msra.mxu0 0.0
        %2878 = vmatprep.subr.mxu0 0.0
        %2879 = vmatpush1.msra.mxu0 0.0
        %2880 = vmatprep.mubr.f32.mxu0 0.0
        %2881 = vmatmul.mubr.f32.gmra.mrb[0].mxu0 %v2814
        %v2882 = vpop.f32.mrb[0].mxu0
        %v2883 = vadd.f32 %v2811, %v2882
        %v2884 = vpop.f32.mrb[0].mxu0
        %2885 = vdwg.mxu0
        %v2886 = vmax.f32 %v2883, 0.0
        %v2887 = vld [vmem:[%s21] sm:$0xff]
        %v2888 = vld [vmem:[%s21 + $0x8] sm:$0xff]
        %v2889 = vld [vmem:[%s21 + $0x10] sm:$0xff]
        %v2890 = vld [vmem:[%s21 + $0x18] sm:$0xff]
        %v2891 = vld [vmem:[%s21 + $0x20] sm:$0xff]
        %v2892 = vld [vmem:[%s21 + $0x28] sm:$0xff]
        %v2893 = vld [vmem:[%s21 + $0x30] sm:$0xff]
        %v2894 = vld [vmem:[%s21 + $0x38] sm:$0xff]
        %v2895 = vld [vmem:[%s22] sm:$0x1]
        %v2897 = vlaneseq
        %v2898 = vshrl.u32 %v2897, 7
        %v2899 = vsub.s32 0, %v2898
        %v2900 = vrot.slane %v2895, %v2899
        %vm2902 = vcmask 523264
        %v2904 = vsel %vm2902, %v2886, 0
        %2906 = vmatprep.subr.mxu0 0.0
        %2907 = vmatpush1.msra.mxu0 %v2887
        %2908 = vmatprep.subr.mxu0 0.0
        %2909 = vmatpush1.msra.mxu0 %v2888
        %2910 = vmatprep.subr.mxu0 0.0
        %2911 = vmatpush1.msra.mxu0 %v2889
        %2912 = vmatprep.subr.mxu0 0.0
        %2913 = vmatpush1.msra.mxu0 %v2890
        %2914 = vmatprep.subr.mxu0 0.0
        %2915 = vmatpush1.msra.mxu0 %v2891
        %2916 = vmatprep.subr.mxu0 0.0
        %2917 = vmatpush1.msra.mxu0 %v2892
        %2918 = vmatprep.subr.mxu0 0.0
        %2919 = vmatpush1.msra.mxu0 %v2893
        %2920 = vmatprep.subr.mxu0 0.0
        %2921 = vmatpush1.msra.mxu0 %v2894
        %2922 = vmatprep.subr.mxu0 0.0
        %2923 = vmatpush1.msra.mxu0 0.0
        %2924 = vmatprep.subr.mxu0 0.0
        %2925 = vmatpush1.msra.mxu0 0.0
        %2926 = vmatprep.subr.mxu0 0.0
        %2927 = vmatpush1.msra.mxu0 0.0
        %2928 = vmatprep.subr.mxu0 0.0
        %2929 = vmatpush1.msra.mxu0 0.0
        %2930 = vmatprep.subr.mxu0 0.0
        %2931 = vmatpush1.msra.mxu0 0.0
        %2932 = vmatprep.subr.mxu0 0.0
        %2933 = vmatpush1.msra.mxu0 0.0
        %2934 = vmatprep.subr.mxu0 0.0
        %2935 = vmatpush1.msra.mxu0 0.0
        %2936 = vmatprep.subr.mxu0 0.0
        %2937 = vmatpush1.msra.mxu0 0.0
        %2938 = vmatprep.subr.mxu0 0.0
        %2939 = vmatpush1.msra.mxu0 0.0
        %2940 = vmatprep.subr.mxu0 0.0
        %2941 = vmatpush1.msra.mxu0 0.0
        %2942 = vmatprep.subr.mxu0 0.0
        %2943 = vmatpush1.msra.mxu0 0.0
        %2944 = vmatprep.subr.mxu0 0.0
        %2945 = vmatpush1.msra.mxu0 0.0
        %2946 = vmatprep.subr.mxu0 0.0
        %2947 = vmatpush1.msra.mxu0 0.0
        %2948 = vmatprep.subr.mxu0 0.0
        %2949 = vmatpush1.msra.mxu0 0.0
        %2950 = vmatprep.subr.mxu0 0.0
        %2951 = vmatpush1.msra.mxu0 0.0
        %2952 = vmatprep.subr.mxu0 0.0
        %2953 = vmatpush1.msra.mxu0 0.0
        %2954 = vmatprep.subr.mxu0 0.0
        %2955 = vmatpush1.msra.mxu0 0.0
        %2956 = vmatprep.subr.mxu0 0.0
        %2957 = vmatpush1.msra.mxu0 0.0
        %2958 = vmatprep.subr.mxu0 0.0
        %2959 = vmatpush1.msra.mxu0 0.0
        %2960 = vmatprep.subr.mxu0 0.0
        %2961 = vmatpush1.msra.mxu0 0.0
        %2962 = vmatprep.subr.mxu0 0.0
        %2963 = vmatpush1.msra.mxu0 0.0
        %2964 = vmatprep.subr.mxu0 0.0
        %2965 = vmatpush1.msra.mxu0 0.0
        %2966 = vmatprep.subr.mxu0 0.0
        %2967 = vmatpush1.msra.mxu0 0.0
        %2968 = vmatprep.subr.mxu0 0.0
        %2969 = vmatpush1.msra.mxu0 0.0
        %2970 = vmatprep.mubr.f32.mxu0 0.0
        %2971 = vmatmul.mubr.f32.gmra.mrb[0].mxu0 %v2904
        %v2972 = vpop.f32.mrb[0].mxu0
        %v2973 = vadd.f32 %v2900, %v2972
        %v2974 = vpop.f32.mrb[0].mxu0
        %2975 = vdwg.mxu0
        %v2976 = vadd.f32 %v2973, %v2801
        %v2977 = vld [vmem:[%s23] sm:$0x1]
        %v2978 = vld [vmem:[%s24] sm:$0x1]
        %v2979 = vsel %vm918, %v2976, 0.0
        %2980 = vadd.xlane.f32.xlu0 %v2979
        %v2981 = vpop.xlane.xlu0 %2980
        %v2982 = vmul.f32 %v2981, %v1769
        %v2983 = vsub.f32 %v2976, %v2982
        %v2984 = vmul.f32 %v2983, %v2983
        %v2985 = vsel %vm918, %v2984, 0.0
        %2986 = vadd.xlane.f32.xlu0 %v2985
        %v2987 = vpop.xlane.xlu0 %2986
        %v2988 = vmul.f32 %v2987, %v1769
        %v2989 = vadd.f32 %v2988, 1e-05
        %v2990 = vrsqrt.pop %v2989
        %v2991 = vmul.f32 %v2983, %v2990
        %v2993 = vlaneseq
        %v2994 = vshrl.u32 %v2993, 7
        %v2995 = vsub.s32 0, %v2994
        %v2996 = vrot.slane %v2977, %v2995
        %v2998 = vmul.f32 %v2991, %v2996
        %v3000 = vlaneseq
        %v3001 = vshrl.u32 %v3000, 7
        %v3002 = vsub.s32 0, %v3001
        %v3003 = vrot.slane %v2978, %v3002
        %v3005 = vadd.f32 %v2998, %v3003
        %v3006 = vmul.f32 %v3005, %v1801
        %3007 = vst.msk [vmem:[%s867] sm:$0xff] %vm918, %v3006
        %s3008 = sand.u32 %s603, 1
        %s3009 = scalar_lea.sflag [#allocation3], %s3008
        %s3010 = sand.u32 %s603, 1
        %s3011 = smul.addr %s3010, 8
        %s3012 = scalar_lea.vmem [#allocation2], %s3011
        %s3013 = sand.u32 %s45, 1
        %s3014 = scalar_lea.sflag [#allocation5], %s3013
        %s3015 = sand.u32 %s629, 1
        %s3016 = smul.addr %s3015, 32
        %s3017 = scalar_lea.vmem [#allocation4], %s3016
        %s3018 = sand.u32 %s45, 1
        %s3019 = scalar_lea.sflag [#allocation5], %s3018
        %s3020 = sand.u32 %s655, 1
        %s3021 = smul.addr %s3020, 32
        %s3022 = scalar_lea.vmem [#allocation6], %s3021
        // Predicated region
        $region121: #{decoder_layer.1} parent=119 // pred_check
          %p3023 = pneg %p613
        $region122: #{decoder_layer.1} parent=119 // pred_check_branch
          %3025 = sbr.rel (%p3023) target = $region124
        $region123: #{decoder_layer.1} parent=119 // pred_region
          %s3027 = ssub.s32 128, 128
          %3028 = vsyncadd %s3009, %s3027
          %s3029 = smul.addr %s45, 128
          %s3030 = scalar_lea.hbm %s25, %s3029
          %s3032 = sshll.u32 %s3012, 4
          %s3033 = int_to_ptr.vmem [resolvable:$true] %s3032
          %3035 = dma.vmem_to_hbm [thread:$0]  %s3033, 128, %s3030, %s3009
        $region124: #{decoder_layer.1} parent=119 // pred_fallthru
          _
        // Predicated region
        $region125: #{decoder_layer.1} parent=119 // pred_check
          %p3036 = pneg %p639
        $region126: #{decoder_layer.1} parent=119 // pred_check_branch
          %3038 = sbr.rel (%p3036) target = $region128
        $region127: #{decoder_layer.1} parent=119 // pred_region
          %s3040 = ssub.s32 512, 512
          %3041 = vsyncadd %s3014, %s3040
          %s3042 = smul.addr %s45, 128
          %s3043 = scalar_lea.hbm %s26, %s3042
          %s3044 = sshll.u32 %s3017, 4
          %s3045 = int_to_ptr.vmem [resolvable:$true] %s3044
          %3050 = dma.vmem_to_hbm [thread:$0]  %s3045, 512, %s3043, %s3014, 128, 256, 8
        $region128: #{decoder_layer.1} parent=119 // pred_fallthru
          _
        // Predicated region
        $region129: #{decoder_layer.1} parent=119 // pred_check
          %p3051 = pneg %p665
        $region130: #{decoder_layer.1} parent=119 // pred_check_branch
          %3053 = sbr.rel (%p3051) target = $region132
        $region131: #{decoder_layer.1} parent=119 // pred_region
          %s3055 = ssub.s32 512, 512
          %3056 = vsyncadd %s3019, %s3055
          %s3057 = smul.addr %s45, 128
          %s3058 = scalar_lea.hbm %s27, %s3057
          %s3059 = sshll.u32 %s3022, 4
          %s3060 = int_to_ptr.vmem [resolvable:$true] %s3059
          %3065 = dma.vmem_to_hbm [thread:$0]  %s3060, 512, %s3058, %s3019, 128, 256, 8
        $region132: #{decoder_layer.1} parent=119 // pred_fallthru
          _
      $region120: #{decoder_layer.1} parent=5 // pred_fallthru
        _
      %p3066 = scmp.le.s32.totalorder 2, %s40
      // Predicated region
      $region133: #{decoder_layer.1} parent=5 // pred_check
        %p3067 = pneg %p3066
      $region134: #{decoder_layer.1} parent=5 // pred_check_branch
        %3069 = sbr.rel (%p3067) target = $region136
      $region135: #{decoder_layer.1} parent=5 // pred_region
        %s3070 = ssub.s32 %s40, 2
        // Predicated region
        $region137: #{decoder_layer.1} parent=135 // pred_check
          %p3071 = pneg %p619
        $region138: #{decoder_layer.1} parent=135 // pred_check_branch
          %3073 = sbr.rel (%p3071) target = $region140
        $region139: #{decoder_layer.1} parent=135 // pred_region
          %s3074 = sand.u32 %s604, 1
          %s3075 = scalar_lea.sflag [#allocation3], %s3074
          %s3076 = sand.u32 %s604, 1
          %s3077 = smul.addr %s3076, 8
          %s3078 = scalar_lea.vmem [#allocation2], %s3077
          %3079 = dma.done %s3075, 128
        $region140: #{decoder_layer.1} parent=135 // pred_fallthru
          _
        // Predicated region
        $region141: #{decoder_layer.1} parent=135 // pred_check
          %p3080 = pneg %p645
        $region142: #{decoder_layer.1} parent=135 // pred_check_branch
          %3082 = sbr.rel (%p3080) target = $region144
        $region143: #{decoder_layer.1} parent=135 // pred_region
          %s3083 = sand.u32 %s46, 1
          %s3084 = scalar_lea.sflag [#allocation5], %s3083
          %s3085 = sand.u32 %s630, 1
          %s3086 = smul.addr %s3085, 32
          %s3087 = scalar_lea.vmem [#allocation4], %s3086
          %3088 = dma.done %s3084, 512
        $region144: #{decoder_layer.1} parent=135 // pred_fallthru
          _
        // Predicated region
        $region145: #{decoder_layer.1} parent=135 // pred_check
          %p3089 = pneg %p671
        $region146: #{decoder_layer.1} parent=135 // pred_check_branch
          %3091 = sbr.rel (%p3089) target = $region148
        $region147: #{decoder_layer.1} parent=135 // pred_region
          %s3092 = sand.u32 %s46, 1
          %s3093 = scalar_lea.sflag [#allocation5], %s3092
          %s3094 = sand.u32 %s656, 1
          %s3095 = smul.addr %s3094, 32
          %s3096 = scalar_lea.vmem [#allocation6], %s3095
          %3097 = dma.done %s3093, 512
        $region148: #{decoder_layer.1} parent=135 // pred_fallthru
          _
      $region136: #{decoder_layer.1} parent=5 // pred_fallthru
        _
    $region6: #{decoder_layer.1} parent=1 // loop_footer
      %s44 = sadd.s32 1, %s40
    $region7: #{decoder_layer.1} parent=1 // loop_footer_branch
      %39 = sbr.rel target = $region3
    $region8: #{decoder_layer.1} parent=1 // loop_exit
      _
    %3098 = vsyncpa [#allocation3], 1
    %s3099 = scalar_lea.sflag [#allocation3], 1
    %3100 = vsyncpa %s3099, 1
    %3101 = vsyncpa [#allocation5], 1
    %s3102 = scalar_lea.sflag [#allocation5], 1
    %3103 = vsyncpa %s3102, 1

</llo_original>
